<compile_context>
chip_gen: v6e
topology: v6e:2x2x1
jax: 0.10.0
libtpu: 0.0.40
codegen_flags: <defaults>
</compile_context>

<pallas_src>
import functools
import math

import jax
import jax.numpy as jnp
from jax import lax
from jax.experimental import pallas as pl
from jax.experimental.pallas import tpu as pltpu

# Compute dtype for activations / weights (f32 accumulation inside kernels).
DTYPE = jnp.bfloat16

# Matmul tile targets: MXU-friendly (multiples of 128/256) and VMEM-safe on
# v5e / v6e / v7x even double-buffered.
TM, TN, TK = 256, 256, 512
LN_TM = 512

# NT contraction (a @ b.T) without materialising a transpose.
_NT_DIMS = (((1,), (1,)), ((), ()))


def _tile(dim, target, align):
    """Largest `align`-aligned divisor of `dim` that is <= target (or full dim)."""
    if dim <= target:
        return dim
    t = (target // align) * align
    while t >= align:
        if dim % t == 0:
            return t
        t -= align
    return dim  # fall back to an untiled (full) dimension


# --------------------------------------------------------------------------- #
# Pallas kernels
# --------------------------------------------------------------------------- #
def _linear_kernel(a_ref, b_ref, *rest, has_bias, has_res, act):
    # a: (tm, tk), b: (tk, tn), optional bias (1, tn), optional residual (tm, tn)
    if has_bias and has_res:
        bias_ref, res_ref, o_ref, acc_ref = rest
    elif has_bias:
        bias_ref, o_ref, acc_ref = rest
        res_ref = None
    elif has_res:
        res_ref, o_ref, acc_ref = rest
        bias_ref = None
    else:
        o_ref, acc_ref = rest
        bias_ref = res_ref = None

    k = pl.program_id(2)

    @pl.when(k == 0)
    def _():
        acc_ref[...] = jnp.zeros_like(acc_ref)

    acc_ref[...] += jnp.dot(a_ref[...], b_ref[...],
                            preferred_element_type=jnp.float32)

    @pl.when(k == pl.num_programs(2) - 1)
    def _():
        out = acc_ref[...]
        if has_bias:
            out = out + bias_ref[...].astype(jnp.float32)
        if act == "quick_gelu":
            out = out * jax.nn.sigmoid(1.702 * out)
        if has_res:
            out = out + res_ref[...].astype(jnp.float32)
        o_ref[...] = out.astype(o_ref.dtype)


def _layernorm_kernel(x_ref, g_ref, b_ref, o_ref):
    # x: (tm, D), gamma/beta: (1, D); statistics in f32.
    x = x_ref[...].astype(jnp.float32)
    mean = jnp.mean(x, axis=-1, keepdims=True)
    xc = x - mean
    var = jnp.mean(xc * xc, axis=-1, keepdims=True)
    y = xc * lax.rsqrt(var + 1e-5)
    o_ref[...] = (y * g_ref[...].astype(jnp.float32)
                  + b_ref[...].astype(jnp.float32)).astype(o_ref.dtype)


def _mha_kernel(qkv_ref, o_ref, *, heads, causal):
    # qkv block: (1, L, 3*D) packed [q | k | v]; output block: (1, L, D).
    L = qkv_ref.shape[1]
    d_model = qkv_ref.shape[2] // 3
    dh = d_model // heads
    scale = 1.0 / math.sqrt(dh)
    qkv = qkv_ref[0]                                   # (L, 3D) in compute dtype

    if causal:
        row = lax.broadcasted_iota(jnp.int32, (L, L), 0)
        col = lax.broadcasted_iota(jnp.int32, (L, L), 1)
        neg = jnp.where(col > row, -jnp.inf, 0.0).astype(jnp.float32)

    outs = []
    for h in range(heads):                             # static unroll over heads
        q = qkv[:, h * dh:(h + 1) * dh]
        k = qkv[:, d_model + h * dh:d_model + (h + 1) * dh]
        v = qkv[:, 2 * d_model + h * dh:2 * d_model + (h + 1) * dh]
        s = lax.dot_general(q, k, _NT_DIMS,
                            preferred_element_type=jnp.float32) * scale
        if causal:
            s = s + neg
        s = s - jnp.max(s, axis=-1, keepdims=True)
        p = jnp.exp(s)
        p = p * pl.reciprocal(jnp.sum(p, axis=-1, keepdims=True), approx=True)
        outs.append(jnp.dot(p.astype(v.dtype), v,
                            preferred_element_type=jnp.float32))
    o = jnp.concatenate(outs, axis=-1)                 # (L, D) f32, lane-dense
    o_ref[0] = o.astype(o_ref.dtype)


def _logits_kernel(img_ref, txt_ref, scale_ref, li_ref, lt_ref):
    img = img_ref[...].astype(jnp.float32)
    txt = txt_ref[...].astype(jnp.float32)
    img = img * lax.rsqrt(jnp.sum(img * img, axis=-1, keepdims=True))
    txt = txt * lax.rsqrt(jnp.sum(txt * txt, axis=-1, keepdims=True))
    logit_scale = jnp.exp(scale_ref[0, 0])
    li_ref[...] = (logit_scale * lax.dot_general(
        img, txt, _NT_DIMS, preferred_element_type=jnp.float32)).astype(li_ref.dtype)
    lt_ref[...] = (logit_scale * lax.dot_general(
        txt, img, _NT_DIMS, preferred_element_type=jnp.float32)).astype(lt_ref.dtype)


# --------------------------------------------------------------------------- #
# Pallas wrappers
# --------------------------------------------------------------------------- #
def pallas_linear(x, w, b=None, residual=None, act=None):
    """x: (..., K) @ w: (K, N) [+ b] [-> act] [+ residual] -> (..., N)."""
    lead = x.shape[:-1]
    K = x.shape[-1]
    N = w.shape[1]
    M = int(math.prod(lead)) if lead else 1
    a = x.reshape(M, K)

    tm = _tile(M, TM, 16)
    tn = _tile(N, TN, 128)
    tk = _tile(K, TK, 128)
    grid = (M // tm, N // tn, K // tk)

    in_specs = [pl.BlockSpec((tm, tk), lambda i, j, k: (i, k)),
                pl.BlockSpec((tk, tn), lambda i, j, k: (k, j))]
    args = [a, w]
    if b is not None:
        in_specs.append(pl.BlockSpec((1, tn), lambda i, j, k: (0, j)))
        args.append(b.reshape(1, N))
    if residual is not None:
        in_specs.append(pl.BlockSpec((tm, tn), lambda i, j, k: (i, j)))
        args.append(residual.reshape(M, N))

    kernel = functools.partial(_linear_kernel, has_bias=b is not None,
                               has_res=residual is not None, act=act)
    out = pl.pallas_call(
        kernel,
        grid=grid,
        in_specs=in_specs,
        out_specs=pl.BlockSpec((tm, tn), lambda i, j, k: (i, j)),
        out_shape=jax.ShapeDtypeStruct((M, N), x.dtype),
        scratch_shapes=[pltpu.VMEM((tm, tn), jnp.float32)],
        compiler_params=pltpu.CompilerParams(
            dimension_semantics=("parallel", "parallel", "arbitrary"),
            vmem_limit_bytes=64 << 20),
    )(*args)
    return out.reshape(lead + (N,))


def pallas_layernorm(x, gamma, beta):
    lead = x.shape[:-1]
    D = x.shape[-1]
    M = int(math.prod(lead)) if lead else 1
    tm = _tile(M, LN_TM, 16)
    out = pl.pallas_call(
        _layernorm_kernel,
        grid=(M // tm,),
        in_specs=[pl.BlockSpec((tm, D), lambda i: (i, 0)),
                  pl.BlockSpec((1, D), lambda i: (0, 0)),
                  pl.BlockSpec((1, D), lambda i: (0, 0))],
        out_specs=pl.BlockSpec((tm, D), lambda i: (i, 0)),
        out_shape=jax.ShapeDtypeStruct((M, D), x.dtype),
        compiler_params=pltpu.CompilerParams(dimension_semantics=("parallel",)),
    )(x.reshape(M, D), gamma.reshape(1, D), beta.reshape(1, D))
    return out.reshape(x.shape)


def pallas_attention(qkv, heads, causal):
    """qkv: (B, L, 3*D) packed projections -> (B, L, D)."""
    B, L, threeD = qkv.shape
    D = threeD // 3
    kernel = functools.partial(_mha_kernel, heads=heads, causal=causal)
    return pl.pallas_call(
        kernel,
        grid=(B,),
        in_specs=[pl.BlockSpec((1, L, threeD), lambda b: (b, 0, 0))],
        out_specs=pl.BlockSpec((1, L, D), lambda b: (b, 0, 0)),
        out_shape=jax.ShapeDtypeStruct((B, L, D), qkv.dtype),
        compiler_params=pltpu.CompilerParams(dimension_semantics=("parallel",)),
    )(qkv)


def pallas_clip_logits(img_feat, txt_feat, logit_scale):
    B, E = img_feat.shape
    Bt = txt_feat.shape[0]
    scale = jnp.asarray(logit_scale, jnp.float32).reshape(1, 1)
    li, lt = pl.pallas_call(
        _logits_kernel,
        grid=(1,),
        in_specs=[pl.BlockSpec((B, E), lambda i: (0, 0)),
                  pl.BlockSpec((Bt, E), lambda i: (0, 0)),
                  pl.BlockSpec((1, 1), lambda i: (0, 0))],
        out_specs=[pl.BlockSpec((B, Bt), lambda i: (0, 0)),
                   pl.BlockSpec((Bt, B), lambda i: (0, 0))],
        out_shape=[jax.ShapeDtypeStruct((B, Bt), jnp.float32),
                   jax.ShapeDtypeStruct((Bt, B), jnp.float32)],
    )(img_feat, txt_feat, scale)
    return li, lt


# --------------------------------------------------------------------------- #
# Model pieces (glue around the kernels)
# --------------------------------------------------------------------------- #
def residual_block(x, p, heads, causal):
    # x = x + attn(ln_1(x)); x = x + mlp(ln_2(x)); residuals fused into matmuls.
    h = pallas_layernorm(x, p['ln1_g'], p['ln1_b'])
    qkv = pallas_linear(h, p['in_w'], p['in_b'])                     # (B, L, 3D)
    attn = pallas_attention(qkv, heads, causal)                      # (B, L, D)
    x = pallas_linear(attn, p['out_w'], p['out_b'], residual=x)      # out-proj + residual

    h = pallas_layernorm(x, p['ln2_g'], p['ln2_b'])
    h = pallas_linear(h, p['fc_w'], p['fc_b'], act="quick_gelu")     # fc + bias + QuickGELU
    x = pallas_linear(h, p['proj_w'], p['proj_b'], residual=x)       # proj + bias + residual
    return x


def encode_image(image, vp, heads, patch_size):
    B, C, H, W = image.shape
    p = patch_size
    gh, gw = H // p, W // p
    x = image.astype(DTYPE)
    # patchify (NCHW -> (B, n_patches, C*p*p)); ordering matches conv weight (c, ph, pw)
    patches = x.reshape(B, C, gh, p, gw, p).transpose(0, 2, 4, 1, 3, 5) \
               .reshape(B, gh * gw, C * p * p)
    width = vp['conv1_w'].shape[1]
    x = pallas_linear(patches, vp['conv1_w'])                        # conv1 has bias=False
    cls = jnp.broadcast_to(vp['class_emb'].reshape(1, 1, width), (B, 1, width))
    x = jnp.concatenate([cls.astype(DTYPE), x], axis=1)              # (B, 1+n, width)
    x = x + vp['pos_emb'][None]
    x = pallas_layernorm(x, vp['ln_pre_g'], vp['ln_pre_b'])
    for lp in vp['layers']:
        x = residual_block(x, lp, heads, causal=False)
    x = pallas_layernorm(x[:, 0, :], vp['ln_post_g'], vp['ln_post_b'])
    x = pallas_linear(x, vp['proj'])                                 # (B, embed_dim)
    return x


def encode_text(tokens, tp, heads):
    B, L = tokens.shape
    x = jnp.take(tp['tok_emb'], tokens, axis=0)                      # embedding gather = glue
    x = x + tp['pos_emb'][None]
    for lp in tp['layers']:
        x = residual_block(x, lp, heads, causal=True)                # causal mask built in-kernel
    x = pallas_layernorm(x, tp['ln_final_g'], tp['ln_final_b'])
    eot = jnp.argmax(tokens, axis=-1)                                # x[arange(B), text.argmax(-1)]
    x = x[jnp.arange(B), eot]                                        # (B, width)
    x = pallas_linear(x, tp['text_proj'])                            # (B, embed_dim)
    return x


@functools.partial(jax.jit, static_argnames=("vision_heads", "text_heads", "patch_size"))
def clip_forward(params, image, tokens, *, vision_heads, text_heads, patch_size):
    image_features = encode_image(image, params['visual'], vision_heads, patch_size)
    text_features = encode_text(tokens, params['text'], text_heads)
    logits_per_image, logits_per_text = pallas_clip_logits(
        image_features, text_features, params['logit_scale'])
    return logits_per_image, logits_per_text


# --------------------------------------------------------------------------- #
# Deterministic parameter init (small synthetic config, weights stored (K, N))
# --------------------------------------------------------------------------- #
def init_params(seed=0, *, embed_dim=32, input_resolution=16, vision_layers=2,
                vision_width=128, vision_patch_size=8, context_length=8,
                transformer_layers=2, transformer_width=64, transformer_heads=2,
                vocab_size=100):
    keys = iter(jax.random.split(jax.random.PRNGKey(seed), 512))

    def nrm(shape, std=0.02):
        return (std * jax.random.normal(next(keys), shape, jnp.float32)).astype(DTYPE)

    def zeros(shape):
        return jnp.zeros(shape, DTYPE)

    def init_block(width):
        return dict(
            ln1_g=jnp.ones((width,), jnp.float32), ln1_b=jnp.zeros((width,), jnp.float32),
            in_w=nrm((width, 3 * width)), in_b=zeros((3 * width,)),
            out_w=nrm((width, width)), out_b=zeros((width,)),
            ln2_g=jnp.ones((width,), jnp.float32), ln2_b=jnp.zeros((width,), jnp.float32),
            fc_w=nrm((width, 4 * width)), fc_b=zeros((4 * width,)),
            proj_w=nrm((4 * width, width)), proj_b=zeros((width,)),
        )

    vision_heads = vision_width // 64
    n_patches = (input_resolution // vision_patch_size) ** 2

    visual = dict(
        conv1_w=nrm((3 * vision_patch_size * vision_patch_size, vision_width)),
        class_emb=nrm((vision_width,)),
        pos_emb=nrm((n_patches + 1, vision_width), 0.01),
        ln_pre_g=jnp.ones((vision_width,), jnp.float32),
        ln_pre_b=jnp.zeros((vision_width,), jnp.float32),
        layers=[init_block(vision_width) for _ in range(vision_layers)],
        ln_post_g=jnp.ones((vision_width,), jnp.float32),
        ln_post_b=jnp.zeros((vision_width,), jnp.float32),
        proj=nrm((vision_width, embed_dim), vision_width ** (-0.5)),
    )

    text = dict(
        tok_emb=nrm((vocab_size, transformer_width)),
        pos_emb=nrm((context_length, transformer_width), 0.01),
        layers=[init_block(transformer_width) for _ in range(transformer_layers)],
        ln_final_g=jnp.ones((transformer_width,), jnp.float32),
        ln_final_b=jnp.zeros((transformer_width,), jnp.float32),
        text_proj=nrm((transformer_width, embed_dim), transformer_width ** (-0.5)),
    )

    params = dict(
        visual=visual,
        text=text,
        logit_scale=jnp.asarray(math.log(1.0 / 0.07), jnp.float32),
    )
    cfg = dict(vision_heads=vision_heads, text_heads=transformer_heads,
               patch_size=vision_patch_size)
    return params, cfg


# --------------------------------------------------------------------------- #
if __name__ == "__main__":
    B = 2
    params, cfg = init_params(
        seed=0, embed_dim=32, input_resolution=16, vision_layers=2,
        vision_width=128, vision_patch_size=8, context_length=8,
        transformer_layers=2, transformer_width=64, transformer_heads=2,
        vocab_size=100)

    key = jax.random.PRNGKey(0)
    k_img, k_txt = jax.random.split(key)
    image = jax.random.normal(k_img, (B, 3, 16, 16), jnp.float32)         # NCHW
    tokens = jax.random.randint(k_txt, (B, 8), 1, 100, dtype=jnp.int32)   # pre-tokenized ids

    logits_per_image, logits_per_text = clip_forward(
        params, image, tokens,
        vision_heads=cfg['vision_heads'], text_heads=cfg['text_heads'],
        patch_size=cfg['patch_size'])
    jax.block_until_ready((logits_per_image, logits_per_text))

    assert logits_per_image.shape == (B, B)
    assert logits_per_text.shape == (B, B)
    assert bool(jnp.all(jnp.isfinite(logits_per_image)))
    assert bool(jnp.all(jnp.isfinite(logits_per_text)))
    assert bool(jnp.allclose(logits_per_text, logits_per_image.T, atol=1e-4))
    print("KERNEL_OK")
</pallas_src>

<mosaic_0001>
module attributes {stable_mosaic.version = 11 : i64} {
  func.func @_layernorm_kernel(%arg0: i32, %arg1: memref<10x128xbf16, #tpu.memory_space<vmem>>, %arg2: memref<1x128xf32, #tpu.memory_space<vmem>>, %arg3: memref<1x128xf32, #tpu.memory_space<vmem>>, %arg4: memref<10x128xbf16, #tpu.memory_space<vmem>>) attributes {dimension_semantics = [#tpu.dimension_semantics<parallel>], iteration_bounds = array<i64: 1>, scalar_prefetch = 0 : i64, scratch_operands = 0 : i64, tpu.core_type = #tpu.core_type<tc>, window_params = [{transform_indices = @transform_0, window_bounds = array<i64: 10, 128>}, {pipeline_mode = #tpu.pipeline_mode<synchronous>, transform_indices = @transform_1, window_bounds = array<i64: 1, 128>}, {pipeline_mode = #tpu.pipeline_mode<synchronous>, transform_indices = @transform_2, window_bounds = array<i64: 1, 128>}, {transform_indices = @transform_3, window_bounds = array<i64: 10, 128>}]} {
    %c0 = arith.constant 0 : index
    %c0_0 = arith.constant 0 : index
    %0 = vector.load %arg1[%c0, %c0_0] : memref<10x128xbf16, #tpu.memory_space<vmem>>, vector<10x128xbf16>
    %1 = arith.extf %0 : vector<10x128xbf16> to vector<10x128xf32>
    %cst = arith.constant dense<0.000000e+00> : vector<10xf32>
    %2 = vector.multi_reduction <add>, %1, %cst [1] : vector<10x128xf32> to vector<10xf32>
    %3 = vector.shape_cast %2 : vector<10xf32> to vector<10x1xf32>
    %cst_1 = arith.constant 1.280000e+02 : f32
    %4 = vector.broadcast %cst_1 : f32 to vector<10x1xf32>
    %5 = arith.divf %3, %4 : vector<10x1xf32>
    %6 = vector.broadcast %5 : vector<10x1xf32> to vector<10x128xf32>
    %7 = arith.subf %1, %6 : vector<10x128xf32>
    %8 = arith.mulf %7, %7 : vector<10x128xf32>
    %cst_2 = arith.constant dense<0.000000e+00> : vector<10xf32>
    %9 = vector.multi_reduction <add>, %8, %cst_2 [1] : vector<10x128xf32> to vector<10xf32>
    %10 = vector.shape_cast %9 : vector<10xf32> to vector<10x1xf32>
    %cst_3 = arith.constant 1.280000e+02 : f32
    %11 = vector.broadcast %cst_3 : f32 to vector<10x1xf32>
    %12 = arith.divf %10, %11 : vector<10x1xf32>
    %cst_4 = arith.constant 9.99999974E-6 : f32
    %13 = vector.broadcast %cst_4 : f32 to vector<10x1xf32>
    %14 = arith.addf %12, %13 : vector<10x1xf32>
    %15 = math.rsqrt %14 : vector<10x1xf32>
    %16 = vector.broadcast %15 : vector<10x1xf32> to vector<10x128xf32>
    %17 = arith.mulf %7, %16 : vector<10x128xf32>
    %c0_5 = arith.constant 0 : index
    %c0_6 = arith.constant 0 : index
    %18 = vector.load %arg2[%c0_5, %c0_6] : memref<1x128xf32, #tpu.memory_space<vmem>>, vector<1x128xf32>
    %19 = vector.broadcast %18 : vector<1x128xf32> to vector<10x128xf32>
    %20 = arith.mulf %17, %19 : vector<10x128xf32>
    %c0_7 = arith.constant 0 : index
    %c0_8 = arith.constant 0 : index
    %21 = vector.load %arg3[%c0_7, %c0_8] : memref<1x128xf32, #tpu.memory_space<vmem>>, vector<1x128xf32>
    %22 = vector.broadcast %21 : vector<1x128xf32> to vector<10x128xf32>
    %23 = arith.addf %20, %22 : vector<10x128xf32>
    %24 = arith.truncf %23 : vector<10x128xf32> to vector<10x128xbf16>
    %c0_9 = arith.constant 0 : index
    %c0_10 = arith.constant 0 : index
    %25 = vector.load %arg4[%c0_9, %c0_10] : memref<10x128xbf16, #tpu.memory_space<vmem>>, vector<10x128xbf16>
    tpu.vector_store %arg4[%c0_9, %c0_10], %24 {strides = array<i32>} : memref<10x128xbf16, #tpu.memory_space<vmem>>, vector<10x128xbf16>,
    return
  }
  func.func @transform_0(%arg0: i32) -> (i32, i32) {
    %c0_i32 = arith.constant 0 : i32
    %c0_i32_0 = arith.constant 0 : i32
    return %arg0, %c0_i32 : i32, i32
  }
  func.func @transform_1(%arg0: i32) -> (i32, i32) {
    %c0_i32 = arith.constant 0 : i32
    %c0_i32_0 = arith.constant 0 : i32
    %c0_i32_1 = arith.constant 0 : i32
    return %c0_i32, %c0_i32_0 : i32, i32
  }
  func.func @transform_2(%arg0: i32) -> (i32, i32) {
    %c0_i32 = arith.constant 0 : i32
    %c0_i32_0 = arith.constant 0 : i32
    %c0_i32_1 = arith.constant 0 : i32
    return %c0_i32, %c0_i32_0 : i32, i32
  }
  func.func @transform_3(%arg0: i32) -> (i32, i32) {
    %c0_i32 = arith.constant 0 : i32
    %c0_i32_0 = arith.constant 0 : i32
    return %arg0, %c0_i32 : i32, i32
  }
}

module attributes {stable_mosaic.version = 11 : i64} {
  func.func @_linear_kernel(%arg0: i32, %arg1: i32, %arg2: i32, %arg3: memref<8x192xbf16, #tpu.memory_space<vmem>>, %arg4: memref<192x128xbf16, #tpu.memory_space<vmem>>, %arg5: memref<8x128xbf16, #tpu.memory_space<vmem>>, %arg6: memref<8x128xf32, #tpu.memory_space<vmem>>) attributes {dimension_semantics = [#tpu.dimension_semantics<parallel>, #tpu.dimension_semantics<parallel>, #tpu.dimension_semantics<arbitrary>], iteration_bounds = array<i64: 1, 1, 1>, scalar_prefetch = 0 : i64, scratch_operands = 1 : i64, tpu.core_type = #tpu.core_type<tc>, window_params = [{transform_indices = @transform_0, window_bounds = array<i64: 8, 192>}, {transform_indices = @transform_1, window_bounds = array<i64: 192, 128>}, {transform_indices = @transform_2, window_bounds = array<i64: 8, 128>}]} {
    %c0_i32 = arith.constant 0 : i32
    %0 = arith.cmpi eq, %arg2, %c0_i32 : i32
    %1 = arith.extui %0 : i1 to i32
    %c0_i32_0 = arith.constant 0 : i32
    %2 = arith.cmpi ne, %1, %c0_i32_0 : i32
    scf.if %2 {
      %cst_10 = arith.constant 0.000000e+00 : f32
      %12 = vector.broadcast %cst_10 : f32 to vector<8x128xf32>
      %c0_11 = arith.constant 0 : index
      %c0_12 = arith.constant 0 : index
      %13 = vector.load %arg6[%c0_11, %c0_12] : memref<8x128xf32, #tpu.memory_space<vmem>>, vector<8x128xf32>
      tpu.vector_store %arg6[%c0_11, %c0_12], %12 {strides = array<i32>} : memref<8x128xf32, #tpu.memory_space<vmem>>, vector<8x128xf32>,
    } else {
    }
    %c0 = arith.constant 0 : index
    %c0_1 = arith.constant 0 : index
    %3 = vector.load %arg6[%c0, %c0_1] : memref<8x128xf32, #tpu.memory_space<vmem>>, vector<8x128xf32>
    %c0_2 = arith.constant 0 : index
    %c0_3 = arith.constant 0 : index
    %4 = vector.load %arg3[%c0_2, %c0_3] : memref<8x192xbf16, #tpu.memory_space<vmem>>, vector<8x192xbf16>
    %c0_4 = arith.constant 0 : index
    %c0_5 = arith.constant 0 : index
    %5 = vector.load %arg4[%c0_4, %c0_5] : memref<192x128xbf16, #tpu.memory_space<vmem>>, vector<192x128xbf16>
    %cst = arith.constant dense<0.000000e+00> : vector<8x128xf32>
    %6 = tpu.matmul %4, %5, %cst {dimension_numbers = #tpu.dot_dimension_numbers<[1], [0], [0], [1], [0, 0, 1, 1], [], []>} : vector<8x192xbf16>, vector<192x128xbf16>, vector<8x128xf32> -> vector<8x128xf32>
    %7 = arith.addf %3, %6 : vector<8x128xf32>
    %c0_6 = arith.constant 0 : index
    %c0_7 = arith.constant 0 : index
    %8 = vector.load %arg6[%c0_6, %c0_7] : memref<8x128xf32, #tpu.memory_space<vmem>>, vector<8x128xf32>
    tpu.vector_store %arg6[%c0_6, %c0_7], %7 {strides = array<i32>} : memref<8x128xf32, #tpu.memory_space<vmem>>, vector<8x128xf32>,
    %c0_i32_8 = arith.constant 0 : i32
    %9 = arith.cmpi eq, %arg2, %c0_i32_8 : i32
    %10 = arith.extui %9 : i1 to i32
    %c0_i32_9 = arith.constant 0 : i32
    %11 = arith.cmpi ne, %10, %c0_i32_9 : i32
    scf.if %11 {
      %c0_10 = arith.constant 0 : index
      %c0_11 = arith.constant 0 : index
      %12 = vector.load %arg6[%c0_10, %c0_11] : memref<8x128xf32, #tpu.memory_space<vmem>>, vector<8x128xf32>
      %13 = arith.truncf %12 : vector<8x128xf32> to vector<8x128xbf16>
      %c0_12 = arith.constant 0 : index
      %c0_13 = arith.constant 0 : index
      %14 = vector.load %arg5[%c0_12, %c0_13] : memref<8x128xbf16, #tpu.memory_space<vmem>>, vector<8x128xbf16>
      tpu.vector_store %arg5[%c0_12, %c0_13], %13 {strides = array<i32>} : memref<8x128xbf16, #tpu.memory_space<vmem>>, vector<8x128xbf16>,
    } else {
    }
    return
  }
  func.func @transform_0(%arg0: i32, %arg1: i32, %arg2: i32) -> (i32, i32) {
    %c0_i32 = arith.constant 0 : i32
    return %arg0, %arg2 : i32, i32
  }
  func.func @transform_1(%arg0: i32, %arg1: i32, %arg2: i32) -> (i32, i32) {
    %c0_i32 = arith.constant 0 : i32
    return %arg2, %arg1 : i32, i32
  }
  func.func @transform_2(%arg0: i32, %arg1: i32, %arg2: i32) -> (i32, i32) {
    %c0_i32 = arith.constant 0 : i32
    return %arg0, %arg1 : i32, i32
  }
}

module attributes {stable_mosaic.version = 11 : i64} {
  func.func @_linear_kernel(%arg0: i32, %arg1: i32, %arg2: i32, %arg3: memref<10x128xbf16, #tpu.memory_space<vmem>>, %arg4: memref<128x128xbf16, #tpu.memory_space<vmem>>, %arg5: memref<1x128xbf16, #tpu.memory_space<vmem>>, %arg6: memref<10x128xbf16, #tpu.memory_space<vmem>>, %arg7: memref<10x128xf32, #tpu.memory_space<vmem>>) attributes {dimension_semantics = [#tpu.dimension_semantics<parallel>, #tpu.dimension_semantics<parallel>, #tpu.dimension_semantics<arbitrary>], iteration_bounds = array<i64: 1, 3, 1>, scalar_prefetch = 0 : i64, scratch_operands = 1 : i64, tpu.core_type = #tpu.core_type<tc>, window_params = [{transform_indices = @transform_0, window_bounds = array<i64: 10, 128>}, {transform_indices = @transform_1, window_bounds = array<i64: 128, 128>}, {transform_indices = @transform_2, window_bounds = array<i64: 1, 128>}, {transform_indices = @transform_3, window_bounds = array<i64: 10, 128>}]} {
    %c0_i32 = arith.constant 0 : i32
    %0 = arith.cmpi eq, %arg2, %c0_i32 : i32
    %1 = arith.extui %0 : i1 to i32
    %c0_i32_0 = arith.constant 0 : i32
    %2 = arith.cmpi ne, %1, %c0_i32_0 : i32
    scf.if %2 {
      %cst_10 = arith.constant 0.000000e+00 : f32
      %12 = vector.broadcast %cst_10 : f32 to vector<10x128xf32>
      %c0_11 = arith.constant 0 : index
      %c0_12 = arith.constant 0 : index
      %13 = vector.load %arg7[%c0_11, %c0_12] : memref<10x128xf32, #tpu.memory_space<vmem>>, vector<10x128xf32>
      tpu.vector_store %arg7[%c0_11, %c0_12], %12 {strides = array<i32>} : memref<10x128xf32, #tpu.memory_space<vmem>>, vector<10x128xf32>,
    } else {
    }
    %c0 = arith.constant 0 : index
    %c0_1 = arith.constant 0 : index
    %3 = vector.load %arg7[%c0, %c0_1] : memref<10x128xf32, #tpu.memory_space<vmem>>, vector<10x128xf32>
    %c0_2 = arith.constant 0 : index
    %c0_3 = arith.constant 0 : index
    %4 = vector.load %arg3[%c0_2, %c0_3] : memref<10x128xbf16, #tpu.memory_space<vmem>>, vector<10x128xbf16>
    %c0_4 = arith.constant 0 : index
    %c0_5 = arith.constant 0 : index
    %5 = vector.load %arg4[%c0_4, %c0_5] : memref<128x128xbf16, #tpu.memory_space<vmem>>, vector<128x128xbf16>
    %cst = arith.constant dense<0.000000e+00> : vector<10x128xf32>
    %6 = tpu.matmul %4, %5, %cst {dimension_numbers = #tpu.dot_dimension_numbers<[1], [0], [0], [1], [0, 0, 1, 1], [], []>} : vector<10x128xbf16>, vector<128x128xbf16>, vector<10x128xf32> -> vector<10x128xf32>
    %7 = arith.addf %3, %6 : vector<10x128xf32>
    %c0_6 = arith.constant 0 : index
    %c0_7 = arith.constant 0 : index
    %8 = vector.load %arg7[%c0_6, %c0_7] : memref<10x128xf32, #tpu.memory_space<vmem>>, vector<10x128xf32>
    tpu.vector_store %arg7[%c0_6, %c0_7], %7 {strides = array<i32>} : memref<10x128xf32, #tpu.memory_space<vmem>>, vector<10x128xf32>,
    %c0_i32_8 = arith.constant 0 : i32
    %9 = arith.cmpi eq, %arg2, %c0_i32_8 : i32
    %10 = arith.extui %9 : i1 to i32
    %c0_i32_9 = arith.constant 0 : i32
    %11 = arith.cmpi ne, %10, %c0_i32_9 : i32
    scf.if %11 {
      %c0_10 = arith.constant 0 : index
      %c0_11 = arith.constant 0 : index
      %12 = vector.load %arg7[%c0_10, %c0_11] : memref<10x128xf32, #tpu.memory_space<vmem>>, vector<10x128xf32>
      %c0_12 = arith.constant 0 : index
      %c0_13 = arith.constant 0 : index
      %13 = vector.load %arg5[%c0_12, %c0_13] : memref<1x128xbf16, #tpu.memory_space<vmem>>, vector<1x128xbf16>
      %14 = arith.extf %13 : vector<1x128xbf16> to vector<1x128xf32>
      %15 = vector.broadcast %14 : vector<1x128xf32> to vector<10x128xf32>
      %16 = arith.addf %12, %15 : vector<10x128xf32>
      %17 = arith.truncf %16 : vector<10x128xf32> to vector<10x128xbf16>
      %c0_14 = arith.constant 0 : index
      %c0_15 = arith.constant 0 : index
      %18 = vector.load %arg6[%c0_14, %c0_15] : memref<10x128xbf16, #tpu.memory_space<vmem>>, vector<10x128xbf16>
      tpu.vector_store %arg6[%c0_14, %c0_15], %17 {strides = array<i32>} : memref<10x128xbf16, #tpu.memory_space<vmem>>, vector<10x128xbf16>,
    } else {
    }
    return
  }
  func.func @transform_0(%arg0: i32, %arg1: i32, %arg2: i32) -> (i32, i32) {
    %c0_i32 = arith.constant 0 : i32
    return %arg0, %arg2 : i32, i32
  }
  func.func @transform_1(%arg0: i32, %arg1: i32, %arg2: i32) -> (i32, i32) {
    %c0_i32 = arith.constant 0 : i32
    return %arg2, %arg1 : i32, i32
  }
  func.func @transform_2(%arg0: i32, %arg1: i32, %arg2: i32) -> (i32, i32) {
    %c0_i32 = arith.constant 0 : i32
    %c0_i32_0 = arith.constant 0 : i32
    return %c0_i32, %arg1 : i32, i32
  }
  func.func @transform_3(%arg0: i32, %arg1: i32, %arg2: i32) -> (i32, i32) {
    %c0_i32 = arith.constant 0 : i32
    return %arg0, %arg1 : i32, i32
  }
}

module attributes {stable_mosaic.version = 11 : i64} {
  func.func @_mha_kernel(%arg0: i32, %arg1: memref<1x5x384xbf16, #tpu.memory_space<vmem>>, %arg2: memref<1x5x128xbf16, #tpu.memory_space<vmem>>) attributes {dimension_semantics = [#tpu.dimension_semantics<parallel>], iteration_bounds = array<i64: 2>, scalar_prefetch = 0 : i64, scratch_operands = 0 : i64, tpu.core_type = #tpu.core_type<tc>, window_params = [{transform_indices = @transform_0, window_bounds = array<i64: 1, 5, 384>}, {transform_indices = @transform_1, window_bounds = array<i64: 1, 5, 128>}]} {
    %c0 = arith.constant 0 : index
    %c0_0 = arith.constant 0 : index
    %c0_1 = arith.constant 0 : index
    %0 = vector.load %arg1[%c0, %c0_0, %c0_1] : memref<1x5x384xbf16, #tpu.memory_space<vmem>>, vector<1x5x384xbf16>
    %1 = vector.shape_cast %0 : vector<1x5x384xbf16> to vector<5x384xbf16>
    %2 = vector.extract_strided_slice %1 {offsets = [0, 0], sizes = [5, 64], strides = [1, 1]} : vector<5x384xbf16> to vector<5x64xbf16>
    %3 = vector.extract_strided_slice %1 {offsets = [0, 128], sizes = [5, 64], strides = [1, 1]} : vector<5x384xbf16> to vector<5x64xbf16>
    %4 = vector.extract_strided_slice %1 {offsets = [0, 256], sizes = [5, 64], strides = [1, 1]} : vector<5x384xbf16> to vector<5x64xbf16>
    %cst = arith.constant dense<0.000000e+00> : vector<5x5xf32>
    %5 = tpu.matmul %2, %3, %cst {dimension_numbers = #tpu.dot_dimension_numbers<[1], [1], [0], [0], [0, 0, 1, 0], [], []>} : vector<5x64xbf16>, vector<5x64xbf16>, vector<5x5xf32> -> vector<5x5xf32>
    %cst_2 = arith.constant 1.250000e-01 : f32
    %6 = vector.broadcast %cst_2 : f32 to vector<5x5xf32>
    %7 = arith.mulf %5, %6 : vector<5x5xf32>
    %cst_3 = arith.constant dense<0xFF800000> : vector<5xf32>
    %8 = vector.multi_reduction <maximumf>, %7, %cst_3 [1] : vector<5x5xf32> to vector<5xf32>
    %9 = vector.shape_cast %8 : vector<5xf32> to vector<5x1xf32>
    %10 = vector.broadcast %9 : vector<5x1xf32> to vector<5x5xf32>
    %11 = arith.subf %7, %10 : vector<5x5xf32>
    %12 = math.exp %11 : vector<5x5xf32>
    %cst_4 = arith.constant dense<0.000000e+00> : vector<5xf32>
    %13 = vector.multi_reduction <add>, %12, %cst_4 [1] : vector<5x5xf32> to vector<5xf32>
    %14 = vector.shape_cast %13 : vector<5xf32> to vector<5x1xf32>
    %15 = tpu.reciprocal %14 {approx = true} : vector<5x1xf32> -> vector<5x1xf32>
    %16 = vector.broadcast %15 : vector<5x1xf32> to vector<5x5xf32>
    %17 = arith.mulf %12, %16 : vector<5x5xf32>
    %18 = arith.truncf %17 : vector<5x5xf32> to vector<5x5xbf16>
    %cst_5 = arith.constant dense<0.000000e+00> : vector<5x64xf32>
    %19 = tpu.matmul %18, %4, %cst_5 {dimension_numbers = #tpu.dot_dimension_numbers<[1], [0], [0], [1], [0, 0, 1, 1], [], []>} : vector<5x5xbf16>, vector<5x64xbf16>, vector<5x64xf32> -> vector<5x64xf32>
    %20 = vector.extract_strided_slice %1 {offsets = [0, 64], sizes = [5, 64], strides = [1, 1]} : vector<5x384xbf16> to vector<5x64xbf16>
    %21 = vector.extract_strided_slice %1 {offsets = [0, 192], sizes = [5, 64], strides = [1, 1]} : vector<5x384xbf16> to vector<5x64xbf16>
    %22 = vector.extract_strided_slice %1 {offsets = [0, 320], sizes = [5, 64], strides = [1, 1]} : vector<5x384xbf16> to vector<5x64xbf16>
    %cst_6 = arith.constant dense<0.000000e+00> : vector<5x5xf32>
    %23 = tpu.matmul %20, %21, %cst_6 {dimension_numbers = #tpu.dot_dimension_numbers<[1], [1], [0], [0], [0, 0, 1, 0], [], []>} : vector<5x64xbf16>, vector<5x64xbf16>, vector<5x5xf32> -> vector<5x5xf32>
    %cst_7 = arith.constant 1.250000e-01 : f32
    %24 = vector.broadcast %cst_7 : f32 to vector<5x5xf32>
    %25 = arith.mulf %23, %24 : vector<5x5xf32>
    %cst_8 = arith.constant dense<0xFF800000> : vector<5xf32>
    %26 = vector.multi_reduction <maximumf>, %25, %cst_8 [1] : vector<5x5xf32> to vector<5xf32>
    %27 = vector.shape_cast %26 : vector<5xf32> to vector<5x1xf32>
    %28 = vector.broadcast %27 : vector<5x1xf32> to vector<5x5xf32>
    %29 = arith.subf %25, %28 : vector<5x5xf32>
    %30 = math.exp %29 : vector<5x5xf32>
    %cst_9 = arith.constant dense<0.000000e+00> : vector<5xf32>
    %31 = vector.multi_reduction <add>, %30, %cst_9 [1] : vector<5x5xf32> to vector<5xf32>
    %32 = vector.shape_cast %31 : vector<5xf32> to vector<5x1xf32>
    %33 = tpu.reciprocal %32 {approx = true} : vector<5x1xf32> -> vector<5x1xf32>
    %34 = vector.broadcast %33 : vector<5x1xf32> to vector<5x5xf32>
    %35 = arith.mulf %30, %34 : vector<5x5xf32>
    %36 = arith.truncf %35 : vector<5x5xf32> to vector<5x5xbf16>
    %cst_10 = arith.constant dense<0.000000e+00> : vector<5x64xf32>
    %37 = tpu.matmul %36, %22, %cst_10 {dimension_numbers = #tpu.dot_dimension_numbers<[1], [0], [0], [1], [0, 0, 1, 1], [], []>} : vector<5x5xbf16>, vector<5x64xbf16>, vector<5x64xf32> -> vector<5x64xf32>
    %38 = tpu.concatenate %19, %37 in 1 : vector<5x64xf32>, vector<5x64xf32> -> vector<5x128xf32>
    %39 = arith.truncf %38 : vector<5x128xf32> to vector<5x128xbf16>
    %c0_11 = arith.constant 0 : index
    %c0_12 = arith.constant 0 : index
    %c0_13 = arith.constant 0 : index
    %40 = vector.load %arg2[%c0_11, %c0_12, %c0_13] : memref<1x5x128xbf16, #tpu.memory_space<vmem>>, vector<1x5x128xbf16>
    %41 = vector.shape_cast %40 : vector<1x5x128xbf16> to vector<5x128xbf16>
    %42 = vector.shape_cast %39 : vector<5x128xbf16> to vector<1x5x128xbf16>
    tpu.vector_store %arg2[%c0_11, %c0_12, %c0_13], %42 {strides = array<i32>} : memref<1x5x128xbf16, #tpu.memory_space<vmem>>, vector<1x5x128xbf16>,
    return
  }
  func.func @transform_0(%arg0: i32) -> (i32, i32, i32) {
    %c0_i32 = arith.constant 0 : i32
    %c0_i32_0 = arith.constant 0 : i32
    %c0_i32_1 = arith.constant 0 : i32
    return %arg0, %c0_i32, %c0_i32_0 : i32, i32, i32
  }
  func.func @transform_1(%arg0: i32) -> (i32, i32, i32) {
    %c0_i32 = arith.constant 0 : i32
    %c0_i32_0 = arith.constant 0 : i32
    %c0_i32_1 = arith.constant 0 : i32
    return %arg0, %c0_i32, %c0_i32_0 : i32, i32, i32
  }
}

module attributes {stable_mosaic.version = 11 : i64} {
  func.func @_linear_kernel(%arg0: i32, %arg1: i32, %arg2: i32, %arg3: memref<10x128xbf16, #tpu.memory_space<vmem>>, %arg4: memref<128x128xbf16, #tpu.memory_space<vmem>>, %arg5: memref<1x128xbf16, #tpu.memory_space<vmem>>, %arg6: memref<10x128xbf16, #tpu.memory_space<vmem>>, %arg7: memref<10x128xbf16, #tpu.memory_space<vmem>>, %arg8: memref<10x128xf32, #tpu.memory_space<vmem>>) attributes {dimension_semantics = [#tpu.dimension_semantics<parallel>, #tpu.dimension_semantics<parallel>, #tpu.dimension_semantics<arbitrary>], iteration_bounds = array<i64: 1, 1, 1>, scalar_prefetch = 0 : i64, scratch_operands = 1 : i64, tpu.core_type = #tpu.core_type<tc>, window_params = [{transform_indices = @transform_0, window_bounds = array<i64: 10, 128>}, {transform_indices = @transform_1, window_bounds = array<i64: 128, 128>}, {transform_indices = @transform_2, window_bounds = array<i64: 1, 128>}, {transform_indices = @transform_3, window_bounds = array<i64: 10, 128>}, {transform_indices = @transform_4, window_bounds = array<i64: 10, 128>}]} {
    %c0_i32 = arith.constant 0 : i32
    %0 = arith.cmpi eq, %arg2, %c0_i32 : i32
    %1 = arith.extui %0 : i1 to i32
    %c0_i32_0 = arith.constant 0 : i32
    %2 = arith.cmpi ne, %1, %c0_i32_0 : i32
    scf.if %2 {
      %cst_10 = arith.constant 0.000000e+00 : f32
      %12 = vector.broadcast %cst_10 : f32 to vector<10x128xf32>
      %c0_11 = arith.constant 0 : index
      %c0_12 = arith.constant 0 : index
      %13 = vector.load %arg8[%c0_11, %c0_12] : memref<10x128xf32, #tpu.memory_space<vmem>>, vector<10x128xf32>
      tpu.vector_store %arg8[%c0_11, %c0_12], %12 {strides = array<i32>} : memref<10x128xf32, #tpu.memory_space<vmem>>, vector<10x128xf32>,
    } else {
    }
    %c0 = arith.constant 0 : index
    %c0_1 = arith.constant 0 : index
    %3 = vector.load %arg8[%c0, %c0_1] : memref<10x128xf32, #tpu.memory_space<vmem>>, vector<10x128xf32>
    %c0_2 = arith.constant 0 : index
    %c0_3 = arith.constant 0 : index
    %4 = vector.load %arg3[%c0_2, %c0_3] : memref<10x128xbf16, #tpu.memory_space<vmem>>, vector<10x128xbf16>
    %c0_4 = arith.constant 0 : index
    %c0_5 = arith.constant 0 : index
    %5 = vector.load %arg4[%c0_4, %c0_5] : memref<128x128xbf16, #tpu.memory_space<vmem>>, vector<128x128xbf16>
    %cst = arith.constant dense<0.000000e+00> : vector<10x128xf32>
    %6 = tpu.matmul %4, %5, %cst {dimension_numbers = #tpu.dot_dimension_numbers<[1], [0], [0], [1], [0, 0, 1, 1], [], []>} : vector<10x128xbf16>, vector<128x128xbf16>, vector<10x128xf32> -> vector<10x128xf32>
    %7 = arith.addf %3, %6 : vector<10x128xf32>
    %c0_6 = arith.constant 0 : index
    %c0_7 = arith.constant 0 : index
    %8 = vector.load %arg8[%c0_6, %c0_7] : memref<10x128xf32, #tpu.memory_space<vmem>>, vector<10x128xf32>
    tpu.vector_store %arg8[%c0_6, %c0_7], %7 {strides = array<i32>} : memref<10x128xf32, #tpu.memory_space<vmem>>, vector<10x128xf32>,
    %c0_i32_8 = arith.constant 0 : i32
    %9 = arith.cmpi eq, %arg2, %c0_i32_8 : i32
    %10 = arith.extui %9 : i1 to i32
    %c0_i32_9 = arith.constant 0 : i32
    %11 = arith.cmpi ne, %10, %c0_i32_9 : i32
    scf.if %11 {
      %c0_10 = arith.constant 0 : index
      %c0_11 = arith.constant 0 : index
      %12 = vector.load %arg8[%c0_10, %c0_11] : memref<10x128xf32, #tpu.memory_space<vmem>>, vector<10x128xf32>
      %c0_12 = arith.constant 0 : index
      %c0_13 = arith.constant 0 : index
      %13 = vector.load %arg5[%c0_12, %c0_13] : memref<1x128xbf16, #tpu.memory_space<vmem>>, vector<1x128xbf16>
      %14 = arith.extf %13 : vector<1x128xbf16> to vector<1x128xf32>
      %15 = vector.broadcast %14 : vector<1x128xf32> to vector<10x128xf32>
      %16 = arith.addf %12, %15 : vector<10x128xf32>
      %c0_14 = arith.constant 0 : index
      %c0_15 = arith.constant 0 : index
      %17 = vector.load %arg6[%c0_14, %c0_15] : memref<10x128xbf16, #tpu.memory_space<vmem>>, vector<10x128xbf16>
      %18 = arith.extf %17 : vector<10x128xbf16> to vector<10x128xf32>
      %19 = arith.addf %16, %18 : vector<10x128xf32>
      %20 = arith.truncf %19 : vector<10x128xf32> to vector<10x128xbf16>
      %c0_16 = arith.constant 0 : index
      %c0_17 = arith.constant 0 : index
      %21 = vector.load %arg7[%c0_16, %c0_17] : memref<10x128xbf16, #tpu.memory_space<vmem>>, vector<10x128xbf16>
      tpu.vector_store %arg7[%c0_16, %c0_17], %20 {strides = array<i32>} : memref<10x128xbf16, #tpu.memory_space<vmem>>, vector<10x128xbf16>,
    } else {
    }
    return
  }
  func.func @transform_0(%arg0: i32, %arg1: i32, %arg2: i32) -> (i32, i32) {
    %c0_i32 = arith.constant 0 : i32
    return %arg0, %arg2 : i32, i32
  }
  func.func @transform_1(%arg0: i32, %arg1: i32, %arg2: i32) -> (i32, i32) {
    %c0_i32 = arith.constant 0 : i32
    return %arg2, %arg1 : i32, i32
  }
  func.func @transform_2(%arg0: i32, %arg1: i32, %arg2: i32) -> (i32, i32) {
    %c0_i32 = arith.constant 0 : i32
    %c0_i32_0 = arith.constant 0 : i32
    return %c0_i32, %arg1 : i32, i32
  }
  func.func @transform_3(%arg0: i32, %arg1: i32, %arg2: i32) -> (i32, i32) {
    %c0_i32 = arith.constant 0 : i32
    return %arg0, %arg1 : i32, i32
  }
  func.func @transform_4(%arg0: i32, %arg1: i32, %arg2: i32) -> (i32, i32) {
    %c0_i32 = arith.constant 0 : i32
    return %arg0, %arg1 : i32, i32
  }
}

module attributes {stable_mosaic.version = 11 : i64} {
  func.func @_linear_kernel(%arg0: i32, %arg1: i32, %arg2: i32, %arg3: memref<10x512xbf16, #tpu.memory_space<vmem>>, %arg4: memref<512x128xbf16, #tpu.memory_space<vmem>>, %arg5: memref<1x128xbf16, #tpu.memory_space<vmem>>, %arg6: memref<10x128xbf16, #tpu.memory_space<vmem>>, %arg7: memref<10x128xbf16, #tpu.memory_space<vmem>>, %arg8: memref<10x128xf32, #tpu.memory_space<vmem>>) attributes {dimension_semantics = [#tpu.dimension_semantics<parallel>, #tpu.dimension_semantics<parallel>, #tpu.dimension_semantics<arbitrary>], iteration_bounds = array<i64: 1, 1, 1>, scalar_prefetch = 0 : i64, scratch_operands = 1 : i64, tpu.core_type = #tpu.core_type<tc>, window_params = [{transform_indices = @transform_0, window_bounds = array<i64: 10, 512>}, {transform_indices = @transform_1, window_bounds = array<i64: 512, 128>}, {transform_indices = @transform_2, window_bounds = array<i64: 1, 128>}, {transform_indices = @transform_3, window_bounds = array<i64: 10, 128>}, {transform_indices = @transform_4, window_bounds = array<i64: 10, 128>}]} {
    %c0_i32 = arith.constant 0 : i32
    %0 = arith.cmpi eq, %arg2, %c0_i32 : i32
    %1 = arith.extui %0 : i1 to i32
    %c0_i32_0 = arith.constant 0 : i32
    %2 = arith.cmpi ne, %1, %c0_i32_0 : i32
    scf.if %2 {
      %cst_10 = arith.constant 0.000000e+00 : f32
      %12 = vector.broadcast %cst_10 : f32 to vector<10x128xf32>
      %c0_11 = arith.constant 0 : index
      %c0_12 = arith.constant 0 : index
      %13 = vector.load %arg8[%c0_11, %c0_12] : memref<10x128xf32, #tpu.memory_space<vmem>>, vector<10x128xf32>
      tpu.vector_store %arg8[%c0_11, %c0_12], %12 {strides = array<i32>} : memref<10x128xf32, #tpu.memory_space<vmem>>, vector<10x128xf32>,
    } else {
    }
    %c0 = arith.constant 0 : index
    %c0_1 = arith.constant 0 : index
    %3 = vector.load %arg8[%c0, %c0_1] : memref<10x128xf32, #tpu.memory_space<vmem>>, vector<10x128xf32>
    %c0_2 = arith.constant 0 : index
    %c0_3 = arith.constant 0 : index
    %4 = vector.load %arg3[%c0_2, %c0_3] : memref<10x512xbf16, #tpu.memory_space<vmem>>, vector<10x512xbf16>
    %c0_4 = arith.constant 0 : index
    %c0_5 = arith.constant 0 : index
    %5 = vector.load %arg4[%c0_4, %c0_5] : memref<512x128xbf16, #tpu.memory_space<vmem>>, vector<512x128xbf16>
    %cst = arith.constant dense<0.000000e+00> : vector<10x128xf32>
    %6 = tpu.matmul %4, %5, %cst {dimension_numbers = #tpu.dot_dimension_numbers<[1], [0], [0], [1], [0, 0, 1, 1], [], []>} : vector<10x512xbf16>, vector<512x128xbf16>, vector<10x128xf32> -> vector<10x128xf32>
    %7 = arith.addf %3, %6 : vector<10x128xf32>
    %c0_6 = arith.constant 0 : index
    %c0_7 = arith.constant 0 : index
    %8 = vector.load %arg8[%c0_6, %c0_7] : memref<10x128xf32, #tpu.memory_space<vmem>>, vector<10x128xf32>
    tpu.vector_store %arg8[%c0_6, %c0_7], %7 {strides = array<i32>} : memref<10x128xf32, #tpu.memory_space<vmem>>, vector<10x128xf32>,
    %c0_i32_8 = arith.constant 0 : i32
    %9 = arith.cmpi eq, %arg2, %c0_i32_8 : i32
    %10 = arith.extui %9 : i1 to i32
    %c0_i32_9 = arith.constant 0 : i32
    %11 = arith.cmpi ne, %10, %c0_i32_9 : i32
    scf.if %11 {
      %c0_10 = arith.constant 0 : index
      %c0_11 = arith.constant 0 : index
      %12 = vector.load %arg8[%c0_10, %c0_11] : memref<10x128xf32, #tpu.memory_space<vmem>>, vector<10x128xf32>
      %c0_12 = arith.constant 0 : index
      %c0_13 = arith.constant 0 : index
      %13 = vector.load %arg5[%c0_12, %c0_13] : memref<1x128xbf16, #tpu.memory_space<vmem>>, vector<1x128xbf16>
      %14 = arith.extf %13 : vector<1x128xbf16> to vector<1x128xf32>
      %15 = vector.broadcast %14 : vector<1x128xf32> to vector<10x128xf32>
      %16 = arith.addf %12, %15 : vector<10x128xf32>
      %c0_14 = arith.constant 0 : index
      %c0_15 = arith.constant 0 : index
      %17 = vector.load %arg6[%c0_14, %c0_15] : memref<10x128xbf16, #tpu.memory_space<vmem>>, vector<10x128xbf16>
      %18 = arith.extf %17 : vector<10x128xbf16> to vector<10x128xf32>
      %19 = arith.addf %16, %18 : vector<10x128xf32>
      %20 = arith.truncf %19 : vector<10x128xf32> to vector<10x128xbf16>
      %c0_16 = arith.constant 0 : index
      %c0_17 = arith.constant 0 : index
      %21 = vector.load %arg7[%c0_16, %c0_17] : memref<10x128xbf16, #tpu.memory_space<vmem>>, vector<10x128xbf16>
      tpu.vector_store %arg7[%c0_16, %c0_17], %20 {strides = array<i32>} : memref<10x128xbf16, #tpu.memory_space<vmem>>, vector<10x128xbf16>,
    } else {
    }
    return
  }
  func.func @transform_0(%arg0: i32, %arg1: i32, %arg2: i32) -> (i32, i32) {
    %c0_i32 = arith.constant 0 : i32
    return %arg0, %arg2 : i32, i32
  }
  func.func @transform_1(%arg0: i32, %arg1: i32, %arg2: i32) -> (i32, i32) {
    %c0_i32 = arith.constant 0 : i32
    return %arg2, %arg1 : i32, i32
  }
  func.func @transform_2(%arg0: i32, %arg1: i32, %arg2: i32) -> (i32, i32) {
    %c0_i32 = arith.constant 0 : i32
    %c0_i32_0 = arith.constant 0 : i32
    return %c0_i32, %arg1 : i32, i32
  }
  func.func @transform_3(%arg0: i32, %arg1: i32, %arg2: i32) -> (i32, i32) {
    %c0_i32 = arith.constant 0 : i32
    return %arg0, %arg1 : i32, i32
  }
  func.func @transform_4(%arg0: i32, %arg1: i32, %arg2: i32) -> (i32, i32) {
    %c0_i32 = arith.constant 0 : i32
    return %arg0, %arg1 : i32, i32
  }
}

module attributes {stable_mosaic.version = 11 : i64} {
  func.func @_linear_kernel(%arg0: i32, %arg1: i32, %arg2: i32, %arg3: memref<10x128xbf16, #tpu.memory_space<vmem>>, %arg4: memref<128x256xbf16, #tpu.memory_space<vmem>>, %arg5: memref<1x256xbf16, #tpu.memory_space<vmem>>, %arg6: memref<10x256xbf16, #tpu.memory_space<vmem>>, %arg7: memref<10x256xf32, #tpu.memory_space<vmem>>) attributes {dimension_semantics = [#tpu.dimension_semantics<parallel>, #tpu.dimension_semantics<parallel>, #tpu.dimension_semantics<arbitrary>], iteration_bounds = array<i64: 1, 2, 1>, scalar_prefetch = 0 : i64, scratch_operands = 1 : i64, tpu.core_type = #tpu.core_type<tc>, window_params = [{transform_indices = @transform_0, window_bounds = array<i64: 10, 128>}, {transform_indices = @transform_1, window_bounds = array<i64: 128, 256>}, {transform_indices = @transform_2, window_bounds = array<i64: 1, 256>}, {transform_indices = @transform_3, window_bounds = array<i64: 10, 256>}]} {
    %c0_i32 = arith.constant 0 : i32
    %0 = arith.cmpi eq, %arg2, %c0_i32 : i32
    %1 = arith.extui %0 : i1 to i32
    %c0_i32_0 = arith.constant 0 : i32
    %2 = arith.cmpi ne, %1, %c0_i32_0 : i32
    scf.if %2 {
      %cst_10 = arith.constant 0.000000e+00 : f32
      %12 = vector.broadcast %cst_10 : f32 to vector<10x256xf32>
      %c0_11 = arith.constant 0 : index
      %c0_12 = arith.constant 0 : index
      %13 = vector.load %arg7[%c0_11, %c0_12] : memref<10x256xf32, #tpu.memory_space<vmem>>, vector<10x256xf32>
      tpu.vector_store %arg7[%c0_11, %c0_12], %12 {strides = array<i32>} : memref<10x256xf32, #tpu.memory_space<vmem>>, vector<10x256xf32>,
    } else {
    }
    %c0 = arith.constant 0 : index
    %c0_1 = arith.constant 0 : index
    %3 = vector.load %arg7[%c0, %c0_1] : memref<10x256xf32, #tpu.memory_space<vmem>>, vector<10x256xf32>
    %c0_2 = arith.constant 0 : index
    %c0_3 = arith.constant 0 : index
    %4 = vector.load %arg3[%c0_2, %c0_3] : memref<10x128xbf16, #tpu.memory_space<vmem>>, vector<10x128xbf16>
    %c0_4 = arith.constant 0 : index
    %c0_5 = arith.constant 0 : index
    %5 = vector.load %arg4[%c0_4, %c0_5] : memref<128x256xbf16, #tpu.memory_space<vmem>>, vector<128x256xbf16>
    %cst = arith.constant dense<0.000000e+00> : vector<10x256xf32>
    %6 = tpu.matmul %4, %5, %cst {dimension_numbers = #tpu.dot_dimension_numbers<[1], [0], [0], [1], [0, 0, 1, 1], [], []>} : vector<10x128xbf16>, vector<128x256xbf16>, vector<10x256xf32> -> vector<10x256xf32>
    %7 = arith.addf %3, %6 : vector<10x256xf32>
    %c0_6 = arith.constant 0 : index
    %c0_7 = arith.constant 0 : index
    %8 = vector.load %arg7[%c0_6, %c0_7] : memref<10x256xf32, #tpu.memory_space<vmem>>, vector<10x256xf32>
    tpu.vector_store %arg7[%c0_6, %c0_7], %7 {strides = array<i32>} : memref<10x256xf32, #tpu.memory_space<vmem>>, vector<10x256xf32>,
    %c0_i32_8 = arith.constant 0 : i32
    %9 = arith.cmpi eq, %arg2, %c0_i32_8 : i32
    %10 = arith.extui %9 : i1 to i32
    %c0_i32_9 = arith.constant 0 : i32
    %11 = arith.cmpi ne, %10, %c0_i32_9 : i32
    scf.if %11 {
      %c0_10 = arith.constant 0 : index
      %c0_11 = arith.constant 0 : index
      %12 = vector.load %arg7[%c0_10, %c0_11] : memref<10x256xf32, #tpu.memory_space<vmem>>, vector<10x256xf32>
      %c0_12 = arith.constant 0 : index
      %c0_13 = arith.constant 0 : index
      %13 = vector.load %arg5[%c0_12, %c0_13] : memref<1x256xbf16, #tpu.memory_space<vmem>>, vector<1x256xbf16>
      %14 = arith.extf %13 : vector<1x256xbf16> to vector<1x256xf32>
      %15 = vector.broadcast %14 : vector<1x256xf32> to vector<10x256xf32>
      %16 = arith.addf %12, %15 : vector<10x256xf32>
      %cst_14 = arith.constant 1.702000e+00 : f32
      %17 = vector.broadcast %cst_14 : f32 to vector<10x256xf32>
      %18 = arith.mulf %17, %16 : vector<10x256xf32>
      %19 = arith.negf %18 : vector<10x256xf32>
      %20 = math.exp %19 : vector<10x256xf32>
      %cst_15 = arith.constant 1.000000e+00 : f32
      %21 = vector.broadcast %cst_15 : f32 to vector<10x256xf32>
      %22 = arith.addf %21, %20 : vector<10x256xf32>
      %23 = arith.divf %21, %22 : vector<10x256xf32>
      %24 = arith.mulf %16, %23 : vector<10x256xf32>
      %25 = arith.truncf %24 : vector<10x256xf32> to vector<10x256xbf16>
      %c0_16 = arith.constant 0 : index
      %c0_17 = arith.constant 0 : index
      %26 = vector.load %arg6[%c0_16, %c0_17] : memref<10x256xbf16, #tpu.memory_space<vmem>>, vector<10x256xbf16>
      tpu.vector_store %arg6[%c0_16, %c0_17], %25 {strides = array<i32>} : memref<10x256xbf16, #tpu.memory_space<vmem>>, vector<10x256xbf16>,
    } else {
    }
    return
  }
  func.func @transform_0(%arg0: i32, %arg1: i32, %arg2: i32) -> (i32, i32) {
    %c0_i32 = arith.constant 0 : i32
    return %arg0, %arg2 : i32, i32
  }
  func.func @transform_1(%arg0: i32, %arg1: i32, %arg2: i32) -> (i32, i32) {
    %c0_i32 = arith.constant 0 : i32
    return %arg2, %arg1 : i32, i32
  }
  func.func @transform_2(%arg0: i32, %arg1: i32, %arg2: i32) -> (i32, i32) {
    %c0_i32 = arith.constant 0 : i32
    %c0_i32_0 = arith.constant 0 : i32
    return %c0_i32, %arg1 : i32, i32
  }
  func.func @transform_3(%arg0: i32, %arg1: i32, %arg2: i32) -> (i32, i32) {
    %c0_i32 = arith.constant 0 : i32
    return %arg0, %arg1 : i32, i32
  }
}

module attributes {stable_mosaic.version = 11 : i64} {
  func.func @_layernorm_kernel(%arg0: i32, %arg1: memref<2x128xbf16, #tpu.memory_space<vmem>>, %arg2: memref<1x128xf32, #tpu.memory_space<vmem>>, %arg3: memref<1x128xf32, #tpu.memory_space<vmem>>, %arg4: memref<2x128xbf16, #tpu.memory_space<vmem>>) attributes {dimension_semantics = [#tpu.dimension_semantics<parallel>], iteration_bounds = array<i64: 1>, scalar_prefetch = 0 : i64, scratch_operands = 0 : i64, tpu.core_type = #tpu.core_type<tc>, window_params = [{transform_indices = @transform_0, window_bounds = array<i64: 2, 128>}, {pipeline_mode = #tpu.pipeline_mode<synchronous>, transform_indices = @transform_1, window_bounds = array<i64: 1, 128>}, {pipeline_mode = #tpu.pipeline_mode<synchronous>, transform_indices = @transform_2, window_bounds = array<i64: 1, 128>}, {transform_indices = @transform_3, window_bounds = array<i64: 2, 128>}]} {
    %c0 = arith.constant 0 : index
    %c0_0 = arith.constant 0 : index
    %0 = vector.load %arg1[%c0, %c0_0] : memref<2x128xbf16, #tpu.memory_space<vmem>>, vector<2x128xbf16>
    %1 = arith.extf %0 : vector<2x128xbf16> to vector<2x128xf32>
    %cst = arith.constant dense<0.000000e+00> : vector<2xf32>
    %2 = vector.multi_reduction <add>, %1, %cst [1] : vector<2x128xf32> to vector<2xf32>
    %3 = vector.shape_cast %2 : vector<2xf32> to vector<2x1xf32>
    %cst_1 = arith.constant 1.280000e+02 : f32
    %4 = vector.broadcast %cst_1 : f32 to vector<2x1xf32>
    %5 = arith.divf %3, %4 : vector<2x1xf32>
    %6 = vector.broadcast %5 : vector<2x1xf32> to vector<2x128xf32>
    %7 = arith.subf %1, %6 : vector<2x128xf32>
    %8 = arith.mulf %7, %7 : vector<2x128xf32>
    %cst_2 = arith.constant dense<0.000000e+00> : vector<2xf32>
    %9 = vector.multi_reduction <add>, %8, %cst_2 [1] : vector<2x128xf32> to vector<2xf32>
    %10 = vector.shape_cast %9 : vector<2xf32> to vector<2x1xf32>
    %cst_3 = arith.constant 1.280000e+02 : f32
    %11 = vector.broadcast %cst_3 : f32 to vector<2x1xf32>
    %12 = arith.divf %10, %11 : vector<2x1xf32>
    %cst_4 = arith.constant 9.99999974E-6 : f32
    %13 = vector.broadcast %cst_4 : f32 to vector<2x1xf32>
    %14 = arith.addf %12, %13 : vector<2x1xf32>
    %15 = math.rsqrt %14 : vector<2x1xf32>
    %16 = vector.broadcast %15 : vector<2x1xf32> to vector<2x128xf32>
    %17 = arith.mulf %7, %16 : vector<2x128xf32>
    %c0_5 = arith.constant 0 : index
    %c0_6 = arith.constant 0 : index
    %18 = vector.load %arg2[%c0_5, %c0_6] : memref<1x128xf32, #tpu.memory_space<vmem>>, vector<1x128xf32>
    %19 = vector.broadcast %18 : vector<1x128xf32> to vector<2x128xf32>
    %20 = arith.mulf %17, %19 : vector<2x128xf32>
    %c0_7 = arith.constant 0 : index
    %c0_8 = arith.constant 0 : index
    %21 = vector.load %arg3[%c0_7, %c0_8] : memref<1x128xf32, #tpu.memory_space<vmem>>, vector<1x128xf32>
    %22 = vector.broadcast %21 : vector<1x128xf32> to vector<2x128xf32>
    %23 = arith.addf %20, %22 : vector<2x128xf32>
    %24 = arith.truncf %23 : vector<2x128xf32> to vector<2x128xbf16>
    %c0_9 = arith.constant 0 : index
    %c0_10 = arith.constant 0 : index
    %25 = vector.load %arg4[%c0_9, %c0_10] : memref<2x128xbf16, #tpu.memory_space<vmem>>, vector<2x128xbf16>
    tpu.vector_store %arg4[%c0_9, %c0_10], %24 {strides = array<i32>} : memref<2x128xbf16, #tpu.memory_space<vmem>>, vector<2x128xbf16>,
    return
  }
  func.func @transform_0(%arg0: i32) -> (i32, i32) {
    %c0_i32 = arith.constant 0 : i32
    %c0_i32_0 = arith.constant 0 : i32
    return %arg0, %c0_i32 : i32, i32
  }
  func.func @transform_1(%arg0: i32) -> (i32, i32) {
    %c0_i32 = arith.constant 0 : i32
    %c0_i32_0 = arith.constant 0 : i32
    %c0_i32_1 = arith.constant 0 : i32
    return %c0_i32, %c0_i32_0 : i32, i32
  }
  func.func @transform_2(%arg0: i32) -> (i32, i32) {
    %c0_i32 = arith.constant 0 : i32
    %c0_i32_0 = arith.constant 0 : i32
    %c0_i32_1 = arith.constant 0 : i32
    return %c0_i32, %c0_i32_0 : i32, i32
  }
  func.func @transform_3(%arg0: i32) -> (i32, i32) {
    %c0_i32 = arith.constant 0 : i32
    %c0_i32_0 = arith.constant 0 : i32
    return %arg0, %c0_i32 : i32, i32
  }
}

module attributes {stable_mosaic.version = 11 : i64} {
  func.func @_linear_kernel(%arg0: i32, %arg1: i32, %arg2: i32, %arg3: memref<2x128xbf16, #tpu.memory_space<vmem>>, %arg4: memref<128x32xbf16, #tpu.memory_space<vmem>>, %arg5: memref<2x32xbf16, #tpu.memory_space<vmem>>, %arg6: memref<2x32xf32, #tpu.memory_space<vmem>>) attributes {dimension_semantics = [#tpu.dimension_semantics<parallel>, #tpu.dimension_semantics<parallel>, #tpu.dimension_semantics<arbitrary>], iteration_bounds = array<i64: 1, 1, 1>, scalar_prefetch = 0 : i64, scratch_operands = 1 : i64, tpu.core_type = #tpu.core_type<tc>, window_params = [{transform_indices = @transform_0, window_bounds = array<i64: 2, 128>}, {transform_indices = @transform_1, window_bounds = array<i64: 128, 32>}, {transform_indices = @transform_2, window_bounds = array<i64: 2, 32>}]} {
    %c0_i32 = arith.constant 0 : i32
    %0 = arith.cmpi eq, %arg2, %c0_i32 : i32
    %1 = arith.extui %0 : i1 to i32
    %c0_i32_0 = arith.constant 0 : i32
    %2 = arith.cmpi ne, %1, %c0_i32_0 : i32
    scf.if %2 {
      %cst_10 = arith.constant 0.000000e+00 : f32
      %12 = vector.broadcast %cst_10 : f32 to vector<2x32xf32>
      %c0_11 = arith.constant 0 : index
      %c0_12 = arith.constant 0 : index
      %13 = vector.load %arg6[%c0_11, %c0_12] : memref<2x32xf32, #tpu.memory_space<vmem>>, vector<2x32xf32>
      tpu.vector_store %arg6[%c0_11, %c0_12], %12 {strides = array<i32>} : memref<2x32xf32, #tpu.memory_space<vmem>>, vector<2x32xf32>,
    } else {
    }
    %c0 = arith.constant 0 : index
    %c0_1 = arith.constant 0 : index
    %3 = vector.load %arg6[%c0, %c0_1] : memref<2x32xf32, #tpu.memory_space<vmem>>, vector<2x32xf32>
    %c0_2 = arith.constant 0 : index
    %c0_3 = arith.constant 0 : index
    %4 = vector.load %arg3[%c0_2, %c0_3] : memref<2x128xbf16, #tpu.memory_space<vmem>>, vector<2x128xbf16>
    %c0_4 = arith.constant 0 : index
    %c0_5 = arith.constant 0 : index
    %5 = vector.load %arg4[%c0_4, %c0_5] : memref<128x32xbf16, #tpu.memory_space<vmem>>, vector<128x32xbf16>
    %cst = arith.constant dense<0.000000e+00> : vector<2x32xf32>
    %6 = tpu.matmul %4, %5, %cst {dimension_numbers = #tpu.dot_dimension_numbers<[1], [0], [0], [1], [0, 0, 1, 1], [], []>} : vector<2x128xbf16>, vector<128x32xbf16>, vector<2x32xf32> -> vector<2x32xf32>
    %7 = arith.addf %3, %6 : vector<2x32xf32>
    %c0_6 = arith.constant 0 : index
    %c0_7 = arith.constant 0 : index
    %8 = vector.load %arg6[%c0_6, %c0_7] : memref<2x32xf32, #tpu.memory_space<vmem>>, vector<2x32xf32>
    tpu.vector_store %arg6[%c0_6, %c0_7], %7 {strides = array<i32>} : memref<2x32xf32, #tpu.memory_space<vmem>>, vector<2x32xf32>,
    %c0_i32_8 = arith.constant 0 : i32
    %9 = arith.cmpi eq, %arg2, %c0_i32_8 : i32
    %10 = arith.extui %9 : i1 to i32
    %c0_i32_9 = arith.constant 0 : i32
    %11 = arith.cmpi ne, %10, %c0_i32_9 : i32
    scf.if %11 {
      %c0_10 = arith.constant 0 : index
      %c0_11 = arith.constant 0 : index
      %12 = vector.load %arg6[%c0_10, %c0_11] : memref<2x32xf32, #tpu.memory_space<vmem>>, vector<2x32xf32>
      %13 = arith.truncf %12 : vector<2x32xf32> to vector<2x32xbf16>
      %c0_12 = arith.constant 0 : index
      %c0_13 = arith.constant 0 : index
      %14 = vector.load %arg5[%c0_12, %c0_13] : memref<2x32xbf16, #tpu.memory_space<vmem>>, vector<2x32xbf16>
      tpu.vector_store %arg5[%c0_12, %c0_13], %13 {strides = array<i32>} : memref<2x32xbf16, #tpu.memory_space<vmem>>, vector<2x32xbf16>,
    } else {
    }
    return
  }
  func.func @transform_0(%arg0: i32, %arg1: i32, %arg2: i32) -> (i32, i32) {
    %c0_i32 = arith.constant 0 : i32
    return %arg0, %arg2 : i32, i32
  }
  func.func @transform_1(%arg0: i32, %arg1: i32, %arg2: i32) -> (i32, i32) {
    %c0_i32 = arith.constant 0 : i32
    return %arg2, %arg1 : i32, i32
  }
  func.func @transform_2(%arg0: i32, %arg1: i32, %arg2: i32) -> (i32, i32) {
    %c0_i32 = arith.constant 0 : i32
    return %arg0, %arg1 : i32, i32
  }
}

module attributes {stable_mosaic.version = 11 : i64} {
  func.func @_layernorm_kernel(%arg0: i32, %arg1: memref<16x64xbf16, #tpu.memory_space<vmem>>, %arg2: memref<1x64xf32, #tpu.memory_space<vmem>>, %arg3: memref<1x64xf32, #tpu.memory_space<vmem>>, %arg4: memref<16x64xbf16, #tpu.memory_space<vmem>>) attributes {dimension_semantics = [#tpu.dimension_semantics<parallel>], iteration_bounds = array<i64: 1>, scalar_prefetch = 0 : i64, scratch_operands = 0 : i64, tpu.core_type = #tpu.core_type<tc>, window_params = [{transform_indices = @transform_0, window_bounds = array<i64: 16, 64>}, {pipeline_mode = #tpu.pipeline_mode<synchronous>, transform_indices = @transform_1, window_bounds = array<i64: 1, 64>}, {pipeline_mode = #tpu.pipeline_mode<synchronous>, transform_indices = @transform_2, window_bounds = array<i64: 1, 64>}, {transform_indices = @transform_3, window_bounds = array<i64: 16, 64>}]} {
    %c0 = arith.constant 0 : index
    %c0_0 = arith.constant 0 : index
    %0 = vector.load %arg1[%c0, %c0_0] : memref<16x64xbf16, #tpu.memory_space<vmem>>, vector<16x64xbf16>
    %1 = arith.extf %0 : vector<16x64xbf16> to vector<16x64xf32>
    %cst = arith.constant dense<0.000000e+00> : vector<16xf32>
    %2 = vector.multi_reduction <add>, %1, %cst [1] : vector<16x64xf32> to vector<16xf32>
    %3 = vector.shape_cast %2 : vector<16xf32> to vector<16x1xf32>
    %cst_1 = arith.constant 6.400000e+01 : f32
    %4 = vector.broadcast %cst_1 : f32 to vector<16x1xf32>
    %5 = arith.divf %3, %4 : vector<16x1xf32>
    %6 = vector.broadcast %5 : vector<16x1xf32> to vector<16x64xf32>
    %7 = arith.subf %1, %6 : vector<16x64xf32>
    %8 = arith.mulf %7, %7 : vector<16x64xf32>
    %cst_2 = arith.constant dense<0.000000e+00> : vector<16xf32>
    %9 = vector.multi_reduction <add>, %8, %cst_2 [1] : vector<16x64xf32> to vector<16xf32>
    %10 = vector.shape_cast %9 : vector<16xf32> to vector<16x1xf32>
    %cst_3 = arith.constant 6.400000e+01 : f32
    %11 = vector.broadcast %cst_3 : f32 to vector<16x1xf32>
    %12 = arith.divf %10, %11 : vector<16x1xf32>
    %cst_4 = arith.constant 9.99999974E-6 : f32
    %13 = vector.broadcast %cst_4 : f32 to vector<16x1xf32>
    %14 = arith.addf %12, %13 : vector<16x1xf32>
    %15 = math.rsqrt %14 : vector<16x1xf32>
    %16 = vector.broadcast %15 : vector<16x1xf32> to vector<16x64xf32>
    %17 = arith.mulf %7, %16 : vector<16x64xf32>
    %c0_5 = arith.constant 0 : index
    %c0_6 = arith.constant 0 : index
    %18 = vector.load %arg2[%c0_5, %c0_6] : memref<1x64xf32, #tpu.memory_space<vmem>>, vector<1x64xf32>
    %19 = vector.broadcast %18 : vector<1x64xf32> to vector<16x64xf32>
    %20 = arith.mulf %17, %19 : vector<16x64xf32>
    %c0_7 = arith.constant 0 : index
    %c0_8 = arith.constant 0 : index
    %21 = vector.load %arg3[%c0_7, %c0_8] : memref<1x64xf32, #tpu.memory_space<vmem>>, vector<1x64xf32>
    %22 = vector.broadcast %21 : vector<1x64xf32> to vector<16x64xf32>
    %23 = arith.addf %20, %22 : vector<16x64xf32>
    %24 = arith.truncf %23 : vector<16x64xf32> to vector<16x64xbf16>
    %c0_9 = arith.constant 0 : index
    %c0_10 = arith.constant 0 : index
    %25 = vector.load %arg4[%c0_9, %c0_10] : memref<16x64xbf16, #tpu.memory_space<vmem>>, vector<16x64xbf16>
    tpu.vector_store %arg4[%c0_9, %c0_10], %24 {strides = array<i32>} : memref<16x64xbf16, #tpu.memory_space<vmem>>, vector<16x64xbf16>,
    return
  }
  func.func @transform_0(%arg0: i32) -> (i32, i32) {
    %c0_i32 = arith.constant 0 : i32
    %c0_i32_0 = arith.constant 0 : i32
    return %arg0, %c0_i32 : i32, i32
  }
  func.func @transform_1(%arg0: i32) -> (i32, i32) {
    %c0_i32 = arith.constant 0 : i32
    %c0_i32_0 = arith.constant 0 : i32
    %c0_i32_1 = arith.constant 0 : i32
    return %c0_i32, %c0_i32_0 : i32, i32
  }
  func.func @transform_2(%arg0: i32) -> (i32, i32) {
    %c0_i32 = arith.constant 0 : i32
    %c0_i32_0 = arith.constant 0 : i32
    %c0_i32_1 = arith.constant 0 : i32
    return %c0_i32, %c0_i32_0 : i32, i32
  }
  func.func @transform_3(%arg0: i32) -> (i32, i32) {
    %c0_i32 = arith.constant 0 : i32
    %c0_i32_0 = arith.constant 0 : i32
    return %arg0, %c0_i32 : i32, i32
  }
}

module attributes {stable_mosaic.version = 11 : i64} {
  func.func @_linear_kernel(%arg0: i32, %arg1: i32, %arg2: i32, %arg3: memref<16x64xbf16, #tpu.memory_space<vmem>>, %arg4: memref<64x192xbf16, #tpu.memory_space<vmem>>, %arg5: memref<1x192xbf16, #tpu.memory_space<vmem>>, %arg6: memref<16x192xbf16, #tpu.memory_space<vmem>>, %arg7: memref<16x192xf32, #tpu.memory_space<vmem>>) attributes {dimension_semantics = [#tpu.dimension_semantics<parallel>, #tpu.dimension_semantics<parallel>, #tpu.dimension_semantics<arbitrary>], iteration_bounds = array<i64: 1, 1, 1>, scalar_prefetch = 0 : i64, scratch_operands = 1 : i64, tpu.core_type = #tpu.core_type<tc>, window_params = [{transform_indices = @transform_0, window_bounds = array<i64: 16, 64>}, {transform_indices = @transform_1, window_bounds = array<i64: 64, 192>}, {transform_indices = @transform_2, window_bounds = array<i64: 1, 192>}, {transform_indices = @transform_3, window_bounds = array<i64: 16, 192>}]} {
    %c0_i32 = arith.constant 0 : i32
    %0 = arith.cmpi eq, %arg2, %c0_i32 : i32
    %1 = arith.extui %0 : i1 to i32
    %c0_i32_0 = arith.constant 0 : i32
    %2 = arith.cmpi ne, %1, %c0_i32_0 : i32
    scf.if %2 {
      %cst_10 = arith.constant 0.000000e+00 : f32
      %12 = vector.broadcast %cst_10 : f32 to vector<16x192xf32>
      %c0_11 = arith.constant 0 : index
      %c0_12 = arith.constant 0 : index
      %13 = vector.load %arg7[%c0_11, %c0_12] : memref<16x192xf32, #tpu.memory_space<vmem>>, vector<16x192xf32>
      tpu.vector_store %arg7[%c0_11, %c0_12], %12 {strides = array<i32>} : memref<16x192xf32, #tpu.memory_space<vmem>>, vector<16x192xf32>,
    } else {
    }
    %c0 = arith.constant 0 : index
    %c0_1 = arith.constant 0 : index
    %3 = vector.load %arg7[%c0, %c0_1] : memref<16x192xf32, #tpu.memory_space<vmem>>, vector<16x192xf32>
    %c0_2 = arith.constant 0 : index
    %c0_3 = arith.constant 0 : index
    %4 = vector.load %arg3[%c0_2, %c0_3] : memref<16x64xbf16, #tpu.memory_space<vmem>>, vector<16x64xbf16>
    %c0_4 = arith.constant 0 : index
    %c0_5 = arith.constant 0 : index
    %5 = vector.load %arg4[%c0_4, %c0_5] : memref<64x192xbf16, #tpu.memory_space<vmem>>, vector<64x192xbf16>
    %cst = arith.constant dense<0.000000e+00> : vector<16x192xf32>
    %6 = tpu.matmul %4, %5, %cst {dimension_numbers = #tpu.dot_dimension_numbers<[1], [0], [0], [1], [0, 0, 1, 1], [], []>} : vector<16x64xbf16>, vector<64x192xbf16>, vector<16x192xf32> -> vector<16x192xf32>
    %7 = arith.addf %3, %6 : vector<16x192xf32>
    %c0_6 = arith.constant 0 : index
    %c0_7 = arith.constant 0 : index
    %8 = vector.load %arg7[%c0_6, %c0_7] : memref<16x192xf32, #tpu.memory_space<vmem>>, vector<16x192xf32>
    tpu.vector_store %arg7[%c0_6, %c0_7], %7 {strides = array<i32>} : memref<16x192xf32, #tpu.memory_space<vmem>>, vector<16x192xf32>,
    %c0_i32_8 = arith.constant 0 : i32
    %9 = arith.cmpi eq, %arg2, %c0_i32_8 : i32
    %10 = arith.extui %9 : i1 to i32
    %c0_i32_9 = arith.constant 0 : i32
    %11 = arith.cmpi ne, %10, %c0_i32_9 : i32
    scf.if %11 {
      %c0_10 = arith.constant 0 : index
      %c0_11 = arith.constant 0 : index
      %12 = vector.load %arg7[%c0_10, %c0_11] : memref<16x192xf32, #tpu.memory_space<vmem>>, vector<16x192xf32>
      %c0_12 = arith.constant 0 : index
      %c0_13 = arith.constant 0 : index
      %13 = vector.load %arg5[%c0_12, %c0_13] : memref<1x192xbf16, #tpu.memory_space<vmem>>, vector<1x192xbf16>
      %14 = arith.extf %13 : vector<1x192xbf16> to vector<1x192xf32>
      %15 = vector.broadcast %14 : vector<1x192xf32> to vector<16x192xf32>
      %16 = arith.addf %12, %15 : vector<16x192xf32>
      %17 = arith.truncf %16 : vector<16x192xf32> to vector<16x192xbf16>
      %c0_14 = arith.constant 0 : index
      %c0_15 = arith.constant 0 : index
      %18 = vector.load %arg6[%c0_14, %c0_15] : memref<16x192xbf16, #tpu.memory_space<vmem>>, vector<16x192xbf16>
      tpu.vector_store %arg6[%c0_14, %c0_15], %17 {strides = array<i32>} : memref<16x192xbf16, #tpu.memory_space<vmem>>, vector<16x192xbf16>,
    } else {
    }
    return
  }
  func.func @transform_0(%arg0: i32, %arg1: i32, %arg2: i32) -> (i32, i32) {
    %c0_i32 = arith.constant 0 : i32
    return %arg0, %arg2 : i32, i32
  }
  func.func @transform_1(%arg0: i32, %arg1: i32, %arg2: i32) -> (i32, i32) {
    %c0_i32 = arith.constant 0 : i32
    return %arg2, %arg1 : i32, i32
  }
  func.func @transform_2(%arg0: i32, %arg1: i32, %arg2: i32) -> (i32, i32) {
    %c0_i32 = arith.constant 0 : i32
    %c0_i32_0 = arith.constant 0 : i32
    return %c0_i32, %arg1 : i32, i32
  }
  func.func @transform_3(%arg0: i32, %arg1: i32, %arg2: i32) -> (i32, i32) {
    %c0_i32 = arith.constant 0 : i32
    return %arg0, %arg1 : i32, i32
  }
}

module attributes {stable_mosaic.version = 11 : i64} {
  func.func @_mha_kernel(%arg0: i32, %arg1: memref<1x8x192xbf16, #tpu.memory_space<vmem>>, %arg2: memref<1x8x64xbf16, #tpu.memory_space<vmem>>) attributes {dimension_semantics = [#tpu.dimension_semantics<parallel>], iteration_bounds = array<i64: 2>, scalar_prefetch = 0 : i64, scratch_operands = 0 : i64, tpu.core_type = #tpu.core_type<tc>, window_params = [{transform_indices = @transform_0, window_bounds = array<i64: 1, 8, 192>}, {transform_indices = @transform_1, window_bounds = array<i64: 1, 8, 64>}]} {
    %c0 = arith.constant 0 : index
    %c0_0 = arith.constant 0 : index
    %c0_1 = arith.constant 0 : index
    %0 = vector.load %arg1[%c0, %c0_0, %c0_1] : memref<1x8x192xbf16, #tpu.memory_space<vmem>>, vector<1x8x192xbf16>
    %1 = vector.shape_cast %0 : vector<1x8x192xbf16> to vector<8x192xbf16>
    %2 = tpu.iota {dimensions = array<i32: 0>} : vector<8x8xi32>
    %3 = tpu.iota {dimensions = array<i32: 1>} : vector<8x8xi32>
    %4 = arith.cmpi sgt, %3, %2 : vector<8x8xi32>
    %cst = arith.constant 0xFF800000 : f32
    %cst_2 = arith.constant 0.000000e+00 : f32
    %5 = vector.broadcast %cst : f32 to vector<8x8xf32>
    %6 = vector.broadcast %cst_2 : f32 to vector<8x8xf32>
    %7 = arith.select %4, %5, %6 : vector<8x8xi1>, vector<8x8xf32>
    %8 = vector.extract_strided_slice %1 {offsets = [0, 0], sizes = [8, 32], strides = [1, 1]} : vector<8x192xbf16> to vector<8x32xbf16>
    %9 = vector.extract_strided_slice %1 {offsets = [0, 64], sizes = [8, 32], strides = [1, 1]} : vector<8x192xbf16> to vector<8x32xbf16>
    %10 = vector.extract_strided_slice %1 {offsets = [0, 128], sizes = [8, 32], strides = [1, 1]} : vector<8x192xbf16> to vector<8x32xbf16>
    %cst_3 = arith.constant dense<0.000000e+00> : vector<8x8xf32>
    %11 = tpu.matmul %8, %9, %cst_3 {dimension_numbers = #tpu.dot_dimension_numbers<[1], [1], [0], [0], [0, 0, 1, 0], [], []>} : vector<8x32xbf16>, vector<8x32xbf16>, vector<8x8xf32> -> vector<8x8xf32>
    %cst_4 = arith.constant 0.176776692 : f32
    %12 = vector.broadcast %cst_4 : f32 to vector<8x8xf32>
    %13 = arith.mulf %11, %12 : vector<8x8xf32>
    %14 = arith.addf %13, %7 : vector<8x8xf32>
    %cst_5 = arith.constant dense<0xFF800000> : vector<8xf32>
    %15 = vector.multi_reduction <maximumf>, %14, %cst_5 [1] : vector<8x8xf32> to vector<8xf32>
    %16 = vector.shape_cast %15 : vector<8xf32> to vector<8x1xf32>
    %17 = vector.broadcast %16 : vector<8x1xf32> to vector<8x8xf32>
    %18 = arith.subf %14, %17 : vector<8x8xf32>
    %19 = math.exp %18 : vector<8x8xf32>
    %cst_6 = arith.constant dense<0.000000e+00> : vector<8xf32>
    %20 = vector.multi_reduction <add>, %19, %cst_6 [1] : vector<8x8xf32> to vector<8xf32>
    %21 = vector.shape_cast %20 : vector<8xf32> to vector<8x1xf32>
    %22 = tpu.reciprocal %21 {approx = true} : vector<8x1xf32> -> vector<8x1xf32>
    %23 = vector.broadcast %22 : vector<8x1xf32> to vector<8x8xf32>
    %24 = arith.mulf %19, %23 : vector<8x8xf32>
    %25 = arith.truncf %24 : vector<8x8xf32> to vector<8x8xbf16>
    %cst_7 = arith.constant dense<0.000000e+00> : vector<8x32xf32>
    %26 = tpu.matmul %25, %10, %cst_7 {dimension_numbers = #tpu.dot_dimension_numbers<[1], [0], [0], [1], [0, 0, 1, 1], [], []>} : vector<8x8xbf16>, vector<8x32xbf16>, vector<8x32xf32> -> vector<8x32xf32>
    %27 = vector.extract_strided_slice %1 {offsets = [0, 32], sizes = [8, 32], strides = [1, 1]} : vector<8x192xbf16> to vector<8x32xbf16>
    %28 = vector.extract_strided_slice %1 {offsets = [0, 96], sizes = [8, 32], strides = [1, 1]} : vector<8x192xbf16> to vector<8x32xbf16>
    %29 = vector.extract_strided_slice %1 {offsets = [0, 160], sizes = [8, 32], strides = [1, 1]} : vector<8x192xbf16> to vector<8x32xbf16>
    %cst_8 = arith.constant dense<0.000000e+00> : vector<8x8xf32>
    %30 = tpu.matmul %27, %28, %cst_8 {dimension_numbers = #tpu.dot_dimension_numbers<[1], [1], [0], [0], [0, 0, 1, 0], [], []>} : vector<8x32xbf16>, vector<8x32xbf16>, vector<8x8xf32> -> vector<8x8xf32>
    %cst_9 = arith.constant 0.176776692 : f32
    %31 = vector.broadcast %cst_9 : f32 to vector<8x8xf32>
    %32 = arith.mulf %30, %31 : vector<8x8xf32>
    %33 = arith.addf %32, %7 : vector<8x8xf32>
    %cst_10 = arith.constant dense<0xFF800000> : vector<8xf32>
    %34 = vector.multi_reduction <maximumf>, %33, %cst_10 [1] : vector<8x8xf32> to vector<8xf32>
    %35 = vector.shape_cast %34 : vector<8xf32> to vector<8x1xf32>
    %36 = vector.broadcast %35 : vector<8x1xf32> to vector<8x8xf32>
    %37 = arith.subf %33, %36 : vector<8x8xf32>
    %38 = math.exp %37 : vector<8x8xf32>
    %cst_11 = arith.constant dense<0.000000e+00> : vector<8xf32>
    %39 = vector.multi_reduction <add>, %38, %cst_11 [1] : vector<8x8xf32> to vector<8xf32>
    %40 = vector.shape_cast %39 : vector<8xf32> to vector<8x1xf32>
    %41 = tpu.reciprocal %40 {approx = true} : vector<8x1xf32> -> vector<8x1xf32>
    %42 = vector.broadcast %41 : vector<8x1xf32> to vector<8x8xf32>
    %43 = arith.mulf %38, %42 : vector<8x8xf32>
    %44 = arith.truncf %43 : vector<8x8xf32> to vector<8x8xbf16>
    %cst_12 = arith.constant dense<0.000000e+00> : vector<8x32xf32>
    %45 = tpu.matmul %44, %29, %cst_12 {dimension_numbers = #tpu.dot_dimension_numbers<[1], [0], [0], [1], [0, 0, 1, 1], [], []>} : vector<8x8xbf16>, vector<8x32xbf16>, vector<8x32xf32> -> vector<8x32xf32>
    %46 = tpu.concatenate %26, %45 in 1 : vector<8x32xf32>, vector<8x32xf32> -> vector<8x64xf32>
    %47 = arith.truncf %46 : vector<8x64xf32> to vector<8x64xbf16>
    %c0_13 = arith.constant 0 : index
    %c0_14 = arith.constant 0 : index
    %c0_15 = arith.constant 0 : index
    %48 = vector.load %arg2[%c0_13, %c0_14, %c0_15] : memref<1x8x64xbf16, #tpu.memory_space<vmem>>, vector<1x8x64xbf16>
    %49 = vector.shape_cast %48 : vector<1x8x64xbf16> to vector<8x64xbf16>
    %50 = vector.shape_cast %47 : vector<8x64xbf16> to vector<1x8x64xbf16>
    tpu.vector_store %arg2[%c0_13, %c0_14, %c0_15], %50 {strides = array<i32>} : memref<1x8x64xbf16, #tpu.memory_space<vmem>>, vector<1x8x64xbf16>,
    return
  }
  func.func @transform_0(%arg0: i32) -> (i32, i32, i32) {
    %c0_i32 = arith.constant 0 : i32
    %c0_i32_0 = arith.constant 0 : i32
    %c0_i32_1 = arith.constant 0 : i32
    return %arg0, %c0_i32, %c0_i32_0 : i32, i32, i32
  }
  func.func @transform_1(%arg0: i32) -> (i32, i32, i32) {
    %c0_i32 = arith.constant 0 : i32
    %c0_i32_0 = arith.constant 0 : i32
    %c0_i32_1 = arith.constant 0 : i32
    return %arg0, %c0_i32, %c0_i32_0 : i32, i32, i32
  }
}

module attributes {stable_mosaic.version = 11 : i64} {
  func.func @_linear_kernel(%arg0: i32, %arg1: i32, %arg2: i32, %arg3: memref<16x64xbf16, #tpu.memory_space<vmem>>, %arg4: memref<64x64xbf16, #tpu.memory_space<vmem>>, %arg5: memref<1x64xbf16, #tpu.memory_space<vmem>>, %arg6: memref<16x64xbf16, #tpu.memory_space<vmem>>, %arg7: memref<16x64xbf16, #tpu.memory_space<vmem>>, %arg8: memref<16x64xf32, #tpu.memory_space<vmem>>) attributes {dimension_semantics = [#tpu.dimension_semantics<parallel>, #tpu.dimension_semantics<parallel>, #tpu.dimension_semantics<arbitrary>], iteration_bounds = array<i64: 1, 1, 1>, scalar_prefetch = 0 : i64, scratch_operands = 1 : i64, tpu.core_type = #tpu.core_type<tc>, window_params = [{transform_indices = @transform_0, window_bounds = array<i64: 16, 64>}, {transform_indices = @transform_1, window_bounds = array<i64: 64, 64>}, {transform_indices = @transform_2, window_bounds = array<i64: 1, 64>}, {transform_indices = @transform_3, window_bounds = array<i64: 16, 64>}, {transform_indices = @transform_4, window_bounds = array<i64: 16, 64>}]} {
    %c0_i32 = arith.constant 0 : i32
    %0 = arith.cmpi eq, %arg2, %c0_i32 : i32
    %1 = arith.extui %0 : i1 to i32
    %c0_i32_0 = arith.constant 0 : i32
    %2 = arith.cmpi ne, %1, %c0_i32_0 : i32
    scf.if %2 {
      %cst_10 = arith.constant 0.000000e+00 : f32
      %12 = vector.broadcast %cst_10 : f32 to vector<16x64xf32>
      %c0_11 = arith.constant 0 : index
      %c0_12 = arith.constant 0 : index
      %13 = vector.load %arg8[%c0_11, %c0_12] : memref<16x64xf32, #tpu.memory_space<vmem>>, vector<16x64xf32>
      tpu.vector_store %arg8[%c0_11, %c0_12], %12 {strides = array<i32>} : memref<16x64xf32, #tpu.memory_space<vmem>>, vector<16x64xf32>,
    } else {
    }
    %c0 = arith.constant 0 : index
    %c0_1 = arith.constant 0 : index
    %3 = vector.load %arg8[%c0, %c0_1] : memref<16x64xf32, #tpu.memory_space<vmem>>, vector<16x64xf32>
    %c0_2 = arith.constant 0 : index
    %c0_3 = arith.constant 0 : index
    %4 = vector.load %arg3[%c0_2, %c0_3] : memref<16x64xbf16, #tpu.memory_space<vmem>>, vector<16x64xbf16>
    %c0_4 = arith.constant 0 : index
    %c0_5 = arith.constant 0 : index
    %5 = vector.load %arg4[%c0_4, %c0_5] : memref<64x64xbf16, #tpu.memory_space<vmem>>, vector<64x64xbf16>
    %cst = arith.constant dense<0.000000e+00> : vector<16x64xf32>
    %6 = tpu.matmul %4, %5, %cst {dimension_numbers = #tpu.dot_dimension_numbers<[1], [0], [0], [1], [0, 0, 1, 1], [], []>} : vector<16x64xbf16>, vector<64x64xbf16>, vector<16x64xf32> -> vector<16x64xf32>
    %7 = arith.addf %3, %6 : vector<16x64xf32>
    %c0_6 = arith.constant 0 : index
    %c0_7 = arith.constant 0 : index
    %8 = vector.load %arg8[%c0_6, %c0_7] : memref<16x64xf32, #tpu.memory_space<vmem>>, vector<16x64xf32>
    tpu.vector_store %arg8[%c0_6, %c0_7], %7 {strides = array<i32>} : memref<16x64xf32, #tpu.memory_space<vmem>>, vector<16x64xf32>,
    %c0_i32_8 = arith.constant 0 : i32
    %9 = arith.cmpi eq, %arg2, %c0_i32_8 : i32
    %10 = arith.extui %9 : i1 to i32
    %c0_i32_9 = arith.constant 0 : i32
    %11 = arith.cmpi ne, %10, %c0_i32_9 : i32
    scf.if %11 {
      %c0_10 = arith.constant 0 : index
      %c0_11 = arith.constant 0 : index
      %12 = vector.load %arg8[%c0_10, %c0_11] : memref<16x64xf32, #tpu.memory_space<vmem>>, vector<16x64xf32>
      %c0_12 = arith.constant 0 : index
      %c0_13 = arith.constant 0 : index
      %13 = vector.load %arg5[%c0_12, %c0_13] : memref<1x64xbf16, #tpu.memory_space<vmem>>, vector<1x64xbf16>
      %14 = arith.extf %13 : vector<1x64xbf16> to vector<1x64xf32>
      %15 = vector.broadcast %14 : vector<1x64xf32> to vector<16x64xf32>
      %16 = arith.addf %12, %15 : vector<16x64xf32>
      %c0_14 = arith.constant 0 : index
      %c0_15 = arith.constant 0 : index
      %17 = vector.load %arg6[%c0_14, %c0_15] : memref<16x64xbf16, #tpu.memory_space<vmem>>, vector<16x64xbf16>
      %18 = arith.extf %17 : vector<16x64xbf16> to vector<16x64xf32>
      %19 = arith.addf %16, %18 : vector<16x64xf32>
      %20 = arith.truncf %19 : vector<16x64xf32> to vector<16x64xbf16>
      %c0_16 = arith.constant 0 : index
      %c0_17 = arith.constant 0 : index
      %21 = vector.load %arg7[%c0_16, %c0_17] : memref<16x64xbf16, #tpu.memory_space<vmem>>, vector<16x64xbf16>
      tpu.vector_store %arg7[%c0_16, %c0_17], %20 {strides = array<i32>} : memref<16x64xbf16, #tpu.memory_space<vmem>>, vector<16x64xbf16>,
    } else {
    }
    return
  }
  func.func @transform_0(%arg0: i32, %arg1: i32, %arg2: i32) -> (i32, i32) {
    %c0_i32 = arith.constant 0 : i32
    return %arg0, %arg2 : i32, i32
  }
  func.func @transform_1(%arg0: i32, %arg1: i32, %arg2: i32) -> (i32, i32) {
    %c0_i32 = arith.constant 0 : i32
    return %arg2, %arg1 : i32, i32
  }
  func.func @transform_2(%arg0: i32, %arg1: i32, %arg2: i32) -> (i32, i32) {
    %c0_i32 = arith.constant 0 : i32
    %c0_i32_0 = arith.constant 0 : i32
    return %c0_i32, %arg1 : i32, i32
  }
  func.func @transform_3(%arg0: i32, %arg1: i32, %arg2: i32) -> (i32, i32) {
    %c0_i32 = arith.constant 0 : i32
    return %arg0, %arg1 : i32, i32
  }
  func.func @transform_4(%arg0: i32, %arg1: i32, %arg2: i32) -> (i32, i32) {
    %c0_i32 = arith.constant 0 : i32
    return %arg0, %arg1 : i32, i32
  }
}

module attributes {stable_mosaic.version = 11 : i64} {
  func.func @_linear_kernel(%arg0: i32, %arg1: i32, %arg2: i32, %arg3: memref<16x64xbf16, #tpu.memory_space<vmem>>, %arg4: memref<64x256xbf16, #tpu.memory_space<vmem>>, %arg5: memref<1x256xbf16, #tpu.memory_space<vmem>>, %arg6: memref<16x256xbf16, #tpu.memory_space<vmem>>, %arg7: memref<16x256xf32, #tpu.memory_space<vmem>>) attributes {dimension_semantics = [#tpu.dimension_semantics<parallel>, #tpu.dimension_semantics<parallel>, #tpu.dimension_semantics<arbitrary>], iteration_bounds = array<i64: 1, 1, 1>, scalar_prefetch = 0 : i64, scratch_operands = 1 : i64, tpu.core_type = #tpu.core_type<tc>, window_params = [{transform_indices = @transform_0, window_bounds = array<i64: 16, 64>}, {transform_indices = @transform_1, window_bounds = array<i64: 64, 256>}, {transform_indices = @transform_2, window_bounds = array<i64: 1, 256>}, {transform_indices = @transform_3, window_bounds = array<i64: 16, 256>}]} {
    %c0_i32 = arith.constant 0 : i32
    %0 = arith.cmpi eq, %arg2, %c0_i32 : i32
    %1 = arith.extui %0 : i1 to i32
    %c0_i32_0 = arith.constant 0 : i32
    %2 = arith.cmpi ne, %1, %c0_i32_0 : i32
    scf.if %2 {
      %cst_10 = arith.constant 0.000000e+00 : f32
      %12 = vector.broadcast %cst_10 : f32 to vector<16x256xf32>
      %c0_11 = arith.constant 0 : index
      %c0_12 = arith.constant 0 : index
      %13 = vector.load %arg7[%c0_11, %c0_12] : memref<16x256xf32, #tpu.memory_space<vmem>>, vector<16x256xf32>
      tpu.vector_store %arg7[%c0_11, %c0_12], %12 {strides = array<i32>} : memref<16x256xf32, #tpu.memory_space<vmem>>, vector<16x256xf32>,
    } else {
    }
    %c0 = arith.constant 0 : index
    %c0_1 = arith.constant 0 : index
    %3 = vector.load %arg7[%c0, %c0_1] : memref<16x256xf32, #tpu.memory_space<vmem>>, vector<16x256xf32>
    %c0_2 = arith.constant 0 : index
    %c0_3 = arith.constant 0 : index
    %4 = vector.load %arg3[%c0_2, %c0_3] : memref<16x64xbf16, #tpu.memory_space<vmem>>, vector<16x64xbf16>
    %c0_4 = arith.constant 0 : index
    %c0_5 = arith.constant 0 : index
    %5 = vector.load %arg4[%c0_4, %c0_5] : memref<64x256xbf16, #tpu.memory_space<vmem>>, vector<64x256xbf16>
    %cst = arith.constant dense<0.000000e+00> : vector<16x256xf32>
    %6 = tpu.matmul %4, %5, %cst {dimension_numbers = #tpu.dot_dimension_numbers<[1], [0], [0], [1], [0, 0, 1, 1], [], []>} : vector<16x64xbf16>, vector<64x256xbf16>, vector<16x256xf32> -> vector<16x256xf32>
    %7 = arith.addf %3, %6 : vector<16x256xf32>
    %c0_6 = arith.constant 0 : index
    %c0_7 = arith.constant 0 : index
    %8 = vector.load %arg7[%c0_6, %c0_7] : memref<16x256xf32, #tpu.memory_space<vmem>>, vector<16x256xf32>
    tpu.vector_store %arg7[%c0_6, %c0_7], %7 {strides = array<i32>} : memref<16x256xf32, #tpu.memory_space<vmem>>, vector<16x256xf32>,
    %c0_i32_8 = arith.constant 0 : i32
    %9 = arith.cmpi eq, %arg2, %c0_i32_8 : i32
    %10 = arith.extui %9 : i1 to i32
    %c0_i32_9 = arith.constant 0 : i32
    %11 = arith.cmpi ne, %10, %c0_i32_9 : i32
    scf.if %11 {
      %c0_10 = arith.constant 0 : index
      %c0_11 = arith.constant 0 : index
      %12 = vector.load %arg7[%c0_10, %c0_11] : memref<16x256xf32, #tpu.memory_space<vmem>>, vector<16x256xf32>
      %c0_12 = arith.constant 0 : index
      %c0_13 = arith.constant 0 : index
      %13 = vector.load %arg5[%c0_12, %c0_13] : memref<1x256xbf16, #tpu.memory_space<vmem>>, vector<1x256xbf16>
      %14 = arith.extf %13 : vector<1x256xbf16> to vector<1x256xf32>
      %15 = vector.broadcast %14 : vector<1x256xf32> to vector<16x256xf32>
      %16 = arith.addf %12, %15 : vector<16x256xf32>
      %cst_14 = arith.constant 1.702000e+00 : f32
      %17 = vector.broadcast %cst_14 : f32 to vector<16x256xf32>
      %18 = arith.mulf %17, %16 : vector<16x256xf32>
      %19 = arith.negf %18 : vector<16x256xf32>
      %20 = math.exp %19 : vector<16x256xf32>
      %cst_15 = arith.constant 1.000000e+00 : f32
      %21 = vector.broadcast %cst_15 : f32 to vector<16x256xf32>
      %22 = arith.addf %21, %20 : vector<16x256xf32>
      %23 = arith.divf %21, %22 : vector<16x256xf32>
      %24 = arith.mulf %16, %23 : vector<16x256xf32>
      %25 = arith.truncf %24 : vector<16x256xf32> to vector<16x256xbf16>
      %c0_16 = arith.constant 0 : index
      %c0_17 = arith.constant 0 : index
      %26 = vector.load %arg6[%c0_16, %c0_17] : memref<16x256xbf16, #tpu.memory_space<vmem>>, vector<16x256xbf16>
      tpu.vector_store %arg6[%c0_16, %c0_17], %25 {strides = array<i32>} : memref<16x256xbf16, #tpu.memory_space<vmem>>, vector<16x256xbf16>,
    } else {
    }
    return
  }
  func.func @transform_0(%arg0: i32, %arg1: i32, %arg2: i32) -> (i32, i32) {
    %c0_i32 = arith.constant 0 : i32
    return %arg0, %arg2 : i32, i32
  }
  func.func @transform_1(%arg0: i32, %arg1: i32, %arg2: i32) -> (i32, i32) {
    %c0_i32 = arith.constant 0 : i32
    return %arg2, %arg1 : i32, i32
  }
  func.func @transform_2(%arg0: i32, %arg1: i32, %arg2: i32) -> (i32, i32) {
    %c0_i32 = arith.constant 0 : i32
    %c0_i32_0 = arith.constant 0 : i32
    return %c0_i32, %arg1 : i32, i32
  }
  func.func @transform_3(%arg0: i32, %arg1: i32, %arg2: i32) -> (i32, i32) {
    %c0_i32 = arith.constant 0 : i32
    return %arg0, %arg1 : i32, i32
  }
}

module attributes {stable_mosaic.version = 11 : i64} {
  func.func @_linear_kernel(%arg0: i32, %arg1: i32, %arg2: i32, %arg3: memref<16x256xbf16, #tpu.memory_space<vmem>>, %arg4: memref<256x64xbf16, #tpu.memory_space<vmem>>, %arg5: memref<1x64xbf16, #tpu.memory_space<vmem>>, %arg6: memref<16x64xbf16, #tpu.memory_space<vmem>>, %arg7: memref<16x64xbf16, #tpu.memory_space<vmem>>, %arg8: memref<16x64xf32, #tpu.memory_space<vmem>>) attributes {dimension_semantics = [#tpu.dimension_semantics<parallel>, #tpu.dimension_semantics<parallel>, #tpu.dimension_semantics<arbitrary>], iteration_bounds = array<i64: 1, 1, 1>, scalar_prefetch = 0 : i64, scratch_operands = 1 : i64, tpu.core_type = #tpu.core_type<tc>, window_params = [{transform_indices = @transform_0, window_bounds = array<i64: 16, 256>}, {transform_indices = @transform_1, window_bounds = array<i64: 256, 64>}, {transform_indices = @transform_2, window_bounds = array<i64: 1, 64>}, {transform_indices = @transform_3, window_bounds = array<i64: 16, 64>}, {transform_indices = @transform_4, window_bounds = array<i64: 16, 64>}]} {
    %c0_i32 = arith.constant 0 : i32
    %0 = arith.cmpi eq, %arg2, %c0_i32 : i32
    %1 = arith.extui %0 : i1 to i32
    %c0_i32_0 = arith.constant 0 : i32
    %2 = arith.cmpi ne, %1, %c0_i32_0 : i32
    scf.if %2 {
      %cst_10 = arith.constant 0.000000e+00 : f32
      %12 = vector.broadcast %cst_10 : f32 to vector<16x64xf32>
      %c0_11 = arith.constant 0 : index
      %c0_12 = arith.constant 0 : index
      %13 = vector.load %arg8[%c0_11, %c0_12] : memref<16x64xf32, #tpu.memory_space<vmem>>, vector<16x64xf32>
      tpu.vector_store %arg8[%c0_11, %c0_12], %12 {strides = array<i32>} : memref<16x64xf32, #tpu.memory_space<vmem>>, vector<16x64xf32>,
    } else {
    }
    %c0 = arith.constant 0 : index
    %c0_1 = arith.constant 0 : index
    %3 = vector.load %arg8[%c0, %c0_1] : memref<16x64xf32, #tpu.memory_space<vmem>>, vector<16x64xf32>
    %c0_2 = arith.constant 0 : index
    %c0_3 = arith.constant 0 : index
    %4 = vector.load %arg3[%c0_2, %c0_3] : memref<16x256xbf16, #tpu.memory_space<vmem>>, vector<16x256xbf16>
    %c0_4 = arith.constant 0 : index
    %c0_5 = arith.constant 0 : index
    %5 = vector.load %arg4[%c0_4, %c0_5] : memref<256x64xbf16, #tpu.memory_space<vmem>>, vector<256x64xbf16>
    %cst = arith.constant dense<0.000000e+00> : vector<16x64xf32>
    %6 = tpu.matmul %4, %5, %cst {dimension_numbers = #tpu.dot_dimension_numbers<[1], [0], [0], [1], [0, 0, 1, 1], [], []>} : vector<16x256xbf16>, vector<256x64xbf16>, vector<16x64xf32> -> vector<16x64xf32>
    %7 = arith.addf %3, %6 : vector<16x64xf32>
    %c0_6 = arith.constant 0 : index
    %c0_7 = arith.constant 0 : index
    %8 = vector.load %arg8[%c0_6, %c0_7] : memref<16x64xf32, #tpu.memory_space<vmem>>, vector<16x64xf32>
    tpu.vector_store %arg8[%c0_6, %c0_7], %7 {strides = array<i32>} : memref<16x64xf32, #tpu.memory_space<vmem>>, vector<16x64xf32>,
    %c0_i32_8 = arith.constant 0 : i32
    %9 = arith.cmpi eq, %arg2, %c0_i32_8 : i32
    %10 = arith.extui %9 : i1 to i32
    %c0_i32_9 = arith.constant 0 : i32
    %11 = arith.cmpi ne, %10, %c0_i32_9 : i32
    scf.if %11 {
      %c0_10 = arith.constant 0 : index
      %c0_11 = arith.constant 0 : index
      %12 = vector.load %arg8[%c0_10, %c0_11] : memref<16x64xf32, #tpu.memory_space<vmem>>, vector<16x64xf32>
      %c0_12 = arith.constant 0 : index
      %c0_13 = arith.constant 0 : index
      %13 = vector.load %arg5[%c0_12, %c0_13] : memref<1x64xbf16, #tpu.memory_space<vmem>>, vector<1x64xbf16>
      %14 = arith.extf %13 : vector<1x64xbf16> to vector<1x64xf32>
      %15 = vector.broadcast %14 : vector<1x64xf32> to vector<16x64xf32>
      %16 = arith.addf %12, %15 : vector<16x64xf32>
      %c0_14 = arith.constant 0 : index
      %c0_15 = arith.constant 0 : index
      %17 = vector.load %arg6[%c0_14, %c0_15] : memref<16x64xbf16, #tpu.memory_space<vmem>>, vector<16x64xbf16>
      %18 = arith.extf %17 : vector<16x64xbf16> to vector<16x64xf32>
      %19 = arith.addf %16, %18 : vector<16x64xf32>
      %20 = arith.truncf %19 : vector<16x64xf32> to vector<16x64xbf16>
      %c0_16 = arith.constant 0 : index
      %c0_17 = arith.constant 0 : index
      %21 = vector.load %arg7[%c0_16, %c0_17] : memref<16x64xbf16, #tpu.memory_space<vmem>>, vector<16x64xbf16>
      tpu.vector_store %arg7[%c0_16, %c0_17], %20 {strides = array<i32>} : memref<16x64xbf16, #tpu.memory_space<vmem>>, vector<16x64xbf16>,
    } else {
    }
    return
  }
  func.func @transform_0(%arg0: i32, %arg1: i32, %arg2: i32) -> (i32, i32) {
    %c0_i32 = arith.constant 0 : i32
    return %arg0, %arg2 : i32, i32
  }
  func.func @transform_1(%arg0: i32, %arg1: i32, %arg2: i32) -> (i32, i32) {
    %c0_i32 = arith.constant 0 : i32
    return %arg2, %arg1 : i32, i32
  }
  func.func @transform_2(%arg0: i32, %arg1: i32, %arg2: i32) -> (i32, i32) {
    %c0_i32 = arith.constant 0 : i32
    %c0_i32_0 = arith.constant 0 : i32
    return %c0_i32, %arg1 : i32, i32
  }
  func.func @transform_3(%arg0: i32, %arg1: i32, %arg2: i32) -> (i32, i32) {
    %c0_i32 = arith.constant 0 : i32
    return %arg0, %arg1 : i32, i32
  }
  func.func @transform_4(%arg0: i32, %arg1: i32, %arg2: i32) -> (i32, i32) {
    %c0_i32 = arith.constant 0 : i32
    return %arg0, %arg1 : i32, i32
  }
}

module attributes {stable_mosaic.version = 11 : i64} {
  func.func @_logits_kernel(%arg0: i32, %arg1: memref<2x32xbf16, #tpu.memory_space<vmem>>, %arg2: memref<2x32xbf16, #tpu.memory_space<vmem>>, %arg3: memref<1x1xf32, #tpu.memory_space<vmem>>, %arg4: memref<2x2xf32, #tpu.memory_space<vmem>>, %arg5: memref<2x2xf32, #tpu.memory_space<vmem>>) attributes {dimension_semantics = [#tpu.dimension_semantics<arbitrary>], iteration_bounds = array<i64: 1>, scalar_prefetch = 0 : i64, scratch_operands = 0 : i64, tpu.core_type = #tpu.core_type<tc>, window_params = [{pipeline_mode = #tpu.pipeline_mode<synchronous>, transform_indices = @transform_0, window_bounds = array<i64: 2, 32>}, {pipeline_mode = #tpu.pipeline_mode<synchronous>, transform_indices = @transform_1, window_bounds = array<i64: 2, 32>}, {pipeline_mode = #tpu.pipeline_mode<synchronous>, transform_indices = @transform_2, window_bounds = array<i64: 1, 1>}, {pipeline_mode = #tpu.pipeline_mode<synchronous>, transform_indices = @transform_3, window_bounds = array<i64: 2, 2>}, {pipeline_mode = #tpu.pipeline_mode<synchronous>, transform_indices = @transform_4, window_bounds = array<i64: 2, 2>}]} {
    %c0 = arith.constant 0 : index
    %c0_0 = arith.constant 0 : index
    %0 = vector.load %arg1[%c0, %c0_0] : memref<2x32xbf16, #tpu.memory_space<vmem>>, vector<2x32xbf16>
    %1 = arith.extf %0 : vector<2x32xbf16> to vector<2x32xf32>
    %c0_1 = arith.constant 0 : index
    %c0_2 = arith.constant 0 : index
    %2 = vector.load %arg2[%c0_1, %c0_2] : memref<2x32xbf16, #tpu.memory_space<vmem>>, vector<2x32xbf16>
    %3 = arith.extf %2 : vector<2x32xbf16> to vector<2x32xf32>
    %4 = arith.mulf %1, %1 : vector<2x32xf32>
    %cst = arith.constant dense<0.000000e+00> : vector<2xf32>
    %5 = vector.multi_reduction <add>, %4, %cst [1] : vector<2x32xf32> to vector<2xf32>
    %6 = vector.shape_cast %5 : vector<2xf32> to vector<2x1xf32>
    %7 = math.rsqrt %6 : vector<2x1xf32>
    %8 = vector.broadcast %7 : vector<2x1xf32> to vector<2x32xf32>
    %9 = arith.mulf %1, %8 : vector<2x32xf32>
    %10 = arith.mulf %3, %3 : vector<2x32xf32>
    %cst_3 = arith.constant dense<0.000000e+00> : vector<2xf32>
    %11 = vector.multi_reduction <add>, %10, %cst_3 [1] : vector<2x32xf32> to vector<2xf32>
    %12 = vector.shape_cast %11 : vector<2xf32> to vector<2x1xf32>
    %13 = math.rsqrt %12 : vector<2x1xf32>
    %14 = vector.broadcast %13 : vector<2x1xf32> to vector<2x32xf32>
    %15 = arith.mulf %3, %14 : vector<2x32xf32>
    %c0_4 = arith.constant 0 : index
    %c0_5 = arith.constant 0 : index
    %16 = vector.load %arg3[%c0_4, %c0_5] : memref<1x1xf32, #tpu.memory_space<vmem>>, vector<1x1xf32>
    %17 = vector.extract %16[0, 0] : f32 from vector<1x1xf32>
    %18 = math.exp %17 : f32
    %cst_6 = arith.constant dense<0.000000e+00> : vector<2x2xf32>
    %19 = tpu.matmul %9, %15, %cst_6 {dimension_numbers = #tpu.dot_dimension_numbers<[1], [1], [0], [0], [0, 0, 1, 0], [], []>} : vector<2x32xf32>, vector<2x32xf32>, vector<2x2xf32> -> vector<2x2xf32>
    %20 = vector.broadcast %18 : f32 to vector<2x2xf32>
    %21 = arith.mulf %20, %19 : vector<2x2xf32>
    %c0_7 = arith.constant 0 : index
    %c0_8 = arith.constant 0 : index
    %22 = vector.load %arg4[%c0_7, %c0_8] : memref<2x2xf32, #tpu.memory_space<vmem>>, vector<2x2xf32>
    tpu.vector_store %arg4[%c0_7, %c0_8], %21 {strides = array<i32>} : memref<2x2xf32, #tpu.memory_space<vmem>>, vector<2x2xf32>,
    %cst_9 = arith.constant dense<0.000000e+00> : vector<2x2xf32>
    %23 = tpu.matmul %15, %9, %cst_9 {dimension_numbers = #tpu.dot_dimension_numbers<[1], [1], [0], [0], [0, 0, 1, 0], [], []>} : vector<2x32xf32>, vector<2x32xf32>, vector<2x2xf32> -> vector<2x2xf32>
    %24 = vector.broadcast %18 : f32 to vector<2x2xf32>
    %25 = arith.mulf %24, %23 : vector<2x2xf32>
    %c0_10 = arith.constant 0 : index
    %c0_11 = arith.constant 0 : index
    %26 = vector.load %arg5[%c0_10, %c0_11] : memref<2x2xf32, #tpu.memory_space<vmem>>, vector<2x2xf32>
    tpu.vector_store %arg5[%c0_10, %c0_11], %25 {strides = array<i32>} : memref<2x2xf32, #tpu.memory_space<vmem>>, vector<2x2xf32>,
    return
  }
  func.func @transform_0(%arg0: i32) -> (i32, i32) {
    %c0_i32 = arith.constant 0 : i32
    %c0_i32_0 = arith.constant 0 : i32
    %c0_i32_1 = arith.constant 0 : i32
    return %c0_i32, %c0_i32_0 : i32, i32
  }
  func.func @transform_1(%arg0: i32) -> (i32, i32) {
    %c0_i32 = arith.constant 0 : i32
    %c0_i32_0 = arith.constant 0 : i32
    %c0_i32_1 = arith.constant 0 : i32
    return %c0_i32, %c0_i32_0 : i32, i32
  }
  func.func @transform_2(%arg0: i32) -> (i32, i32) {
    %c0_i32 = arith.constant 0 : i32
    %c0_i32_0 = arith.constant 0 : i32
    %c0_i32_1 = arith.constant 0 : i32
    return %c0_i32, %c0_i32_0 : i32, i32
  }
  func.func @transform_3(%arg0: i32) -> (i32, i32) {
    %c0_i32 = arith.constant 0 : i32
    %c0_i32_0 = arith.constant 0 : i32
    %c0_i32_1 = arith.constant 0 : i32
    return %c0_i32, %c0_i32_0 : i32, i32
  }
  func.func @transform_4(%arg0: i32) -> (i32, i32) {
    %c0_i32 = arith.constant 0 : i32
    %c0_i32_0 = arith.constant 0 : i32
    %c0_i32_1 = arith.constant 0 : i32
    return %c0_i32, %c0_i32_0 : i32, i32
  }
}

module attributes {stable_mosaic.version = 11 : i64} {
  func.func @_linear_kernel(%arg0: i32, %arg1: i32, %arg2: i32, %arg3: memref<2x64xbf16, #tpu.memory_space<vmem>>, %arg4: memref<64x32xbf16, #tpu.memory_space<vmem>>, %arg5: memref<2x32xbf16, #tpu.memory_space<vmem>>, %arg6: memref<2x32xf32, #tpu.memory_space<vmem>>) attributes {dimension_semantics = [#tpu.dimension_semantics<parallel>, #tpu.dimension_semantics<parallel>, #tpu.dimension_semantics<arbitrary>], iteration_bounds = array<i64: 1, 1, 1>, scalar_prefetch = 0 : i64, scratch_operands = 1 : i64, tpu.core_type = #tpu.core_type<tc>, window_params = [{transform_indices = @transform_0, window_bounds = array<i64: 2, 64>}, {transform_indices = @transform_1, window_bounds = array<i64: 64, 32>}, {transform_indices = @transform_2, window_bounds = array<i64: 2, 32>}]} {
    %c0_i32 = arith.constant 0 : i32
    %0 = arith.cmpi eq, %arg2, %c0_i32 : i32
    %1 = arith.extui %0 : i1 to i32
    %c0_i32_0 = arith.constant 0 : i32
    %2 = arith.cmpi ne, %1, %c0_i32_0 : i32
    scf.if %2 {
      %cst_10 = arith.constant 0.000000e+00 : f32
      %12 = vector.broadcast %cst_10 : f32 to vector<2x32xf32>
      %c0_11 = arith.constant 0 : index
      %c0_12 = arith.constant 0 : index
      %13 = vector.load %arg6[%c0_11, %c0_12] : memref<2x32xf32, #tpu.memory_space<vmem>>, vector<2x32xf32>
      tpu.vector_store %arg6[%c0_11, %c0_12], %12 {strides = array<i32>} : memref<2x32xf32, #tpu.memory_space<vmem>>, vector<2x32xf32>,
    } else {
    }
    %c0 = arith.constant 0 : index
    %c0_1 = arith.constant 0 : index
    %3 = vector.load %arg6[%c0, %c0_1] : memref<2x32xf32, #tpu.memory_space<vmem>>, vector<2x32xf32>
    %c0_2 = arith.constant 0 : index
    %c0_3 = arith.constant 0 : index
    %4 = vector.load %arg3[%c0_2, %c0_3] : memref<2x64xbf16, #tpu.memory_space<vmem>>, vector<2x64xbf16>
    %c0_4 = arith.constant 0 : index
    %c0_5 = arith.constant 0 : index
    %5 = vector.load %arg4[%c0_4, %c0_5] : memref<64x32xbf16, #tpu.memory_space<vmem>>, vector<64x32xbf16>
    %cst = arith.constant dense<0.000000e+00> : vector<2x32xf32>
    %6 = tpu.matmul %4, %5, %cst {dimension_numbers = #tpu.dot_dimension_numbers<[1], [0], [0], [1], [0, 0, 1, 1], [], []>} : vector<2x64xbf16>, vector<64x32xbf16>, vector<2x32xf32> -> vector<2x32xf32>
    %7 = arith.addf %3, %6 : vector<2x32xf32>
    %c0_6 = arith.constant 0 : index
    %c0_7 = arith.constant 0 : index
    %8 = vector.load %arg6[%c0_6, %c0_7] : memref<2x32xf32, #tpu.memory_space<vmem>>, vector<2x32xf32>
    tpu.vector_store %arg6[%c0_6, %c0_7], %7 {strides = array<i32>} : memref<2x32xf32, #tpu.memory_space<vmem>>, vector<2x32xf32>,
    %c0_i32_8 = arith.constant 0 : i32
    %9 = arith.cmpi eq, %arg2, %c0_i32_8 : i32
    %10 = arith.extui %9 : i1 to i32
    %c0_i32_9 = arith.constant 0 : i32
    %11 = arith.cmpi ne, %10, %c0_i32_9 : i32
    scf.if %11 {
      %c0_10 = arith.constant 0 : index
      %c0_11 = arith.constant 0 : index
      %12 = vector.load %arg6[%c0_10, %c0_11] : memref<2x32xf32, #tpu.memory_space<vmem>>, vector<2x32xf32>
      %13 = arith.truncf %12 : vector<2x32xf32> to vector<2x32xbf16>
      %c0_12 = arith.constant 0 : index
      %c0_13 = arith.constant 0 : index
      %14 = vector.load %arg5[%c0_12, %c0_13] : memref<2x32xbf16, #tpu.memory_space<vmem>>, vector<2x32xbf16>
      tpu.vector_store %arg5[%c0_12, %c0_13], %13 {strides = array<i32>} : memref<2x32xbf16, #tpu.memory_space<vmem>>, vector<2x32xbf16>,
    } else {
    }
    return
  }
  func.func @transform_0(%arg0: i32, %arg1: i32, %arg2: i32) -> (i32, i32) {
    %c0_i32 = arith.constant 0 : i32
    return %arg0, %arg2 : i32, i32
  }
  func.func @transform_1(%arg0: i32, %arg1: i32, %arg2: i32) -> (i32, i32) {
    %c0_i32 = arith.constant 0 : i32
    return %arg2, %arg1 : i32, i32
  }
  func.func @transform_2(%arg0: i32, %arg1: i32, %arg2: i32) -> (i32, i32) {
    %c0_i32 = arith.constant 0 : i32
    return %arg0, %arg1 : i32, i32
  }
}

</mosaic_0001>

<llo_original>
// kernel: clip_forward.36
$region0: #{clip_forward.36}
  #allocation0 [shape = 'u32[]', space=smem, size = 0x4, offset = 0x4, fixed_abs, tag = 'smem constant byte address 0x4 - core index']
  #allocation1 [shape = 'u32[144,128]{1,0:T(1,128)}', space=vmem, size = 0x12000, scoped, tag = 'internal scratch']
  %s0 = inlined_call_operand.vmem [shape: bf16[10,128], index: 0, kind: input, shape index: {}]
  %s1 = inlined_call_operand.vmem [shape: f32[1,128], index: 1, kind: input, shape index: {}]
  %s2 = inlined_call_operand.vmem [shape: f32[1,128], index: 2, kind: input, shape index: {}]
  %s3 = inlined_call_operand.vmem [shape: bf16[10,128], index: 3, kind: output, shape index: {}]
  %s4 = sld [smem:[#allocation0]]
  $region22: #{clip_forward.36} parent=0
    _
  %s6 = ssub.s32 1, %s4
  %s7 = scalar_select 0, %s6, %s4
  // Predicated region
  $region2: #{clip_forward.36} parent=0 // pred_check
    _
  $region3: #{clip_forward.36} parent=0 // pred_check_branch
    %9 = sbr.rel (0) target = $region5
  $region4: #{clip_forward.36} parent=0 // pred_region
    _
  $region5: #{clip_forward.36} parent=0 // pred_fallthru
    _
  // Predicated region
  $region6: #{clip_forward.36} parent=0 // pred_check
    _
  $region7: #{clip_forward.36} parent=0 // pred_check_branch
    %11 = sbr.rel (0) target = $region9
  $region8: #{clip_forward.36} parent=0 // pred_region
    _
  $region9: #{clip_forward.36} parent=0 // pred_fallthru
    _
  // Predicated region
  $region10: #{clip_forward.36} parent=0 // pred_check
    _
  $region11: #{clip_forward.36} parent=0 // pred_check_branch
    %13 = sbr.rel (0) target = $region13
  $region12: #{clip_forward.36} parent=0 // pred_region
    _
  $region13: #{clip_forward.36} parent=0 // pred_fallthru
    _
  %v14 = vld [vmem:[%s0] sm:$0xf]
  %v15 = vld [vmem:[%s0 + $0x4] sm:$0x1]
  %v16 = vunpack.c.l.bf16 %v14
  %v17 = vunpack.c.l.bf16 %v15
  %18 = vadd.xlane.f32.xlu0 %v16
  %v19 = vpop.xlane.xlu0 %18
  %vm20 = vcmask 1041408
  %v21 = vsel %vm20, %v17, 0.0
  %22 = vadd.xlane.f32.xlu0 %v21
  %v23 = vpop.xlane.xlu0 %22
  %v24 = vrcp.pop 128.0
  %v25 = vmul.f32 %v19, %v24
  %v26 = vmul.f32 %v23, %v24
  %v27 = vsub.f32 %v16, %v25
  %v28 = vsub.f32 %v17, %v26
  %v29 = vmul.f32 %v27, %v27
  %v30 = vmul.f32 %v28, %v28
  %31 = vadd.xlane.f32.xlu0 %v29
  %v32 = vpop.xlane.xlu0 %31
  %v33 = vsel %vm20, %v30, 0.0
  %34 = vadd.xlane.f32.xlu0 %v33
  %v35 = vpop.xlane.xlu0 %34
  %v36 = vmul.f32 %v32, %v24
  %v37 = vmul.f32 %v35, %v24
  %v38 = vadd.f32 %v36, 1e-05
  %v39 = vadd.f32 %v37, 1e-05
  %v40 = vrsqrt.pop %v38
  %v41 = vrsqrt.pop %v39
  %v42 = vmul.f32 %v27, %v40
  %v43 = vmul.f32 %v28, %v41
  %v44 = vld [vmem:[%s1] sm:$0x1]
  %v46 = vlaneseq
  %v47 = vshrl.u32 %v46, 7
  %v48 = vsub.s32 0, %v47
  %v49 = vrot.slane %v44, %v48
  %v51 = vmul.f32 %v42, %v49
  %v52 = vmul.f32 %v43, %v49
  %v53 = vld [vmem:[%s2] sm:$0x1]
  %v55 = vlaneseq
  %v56 = vshrl.u32 %v55, 7
  %v57 = vsub.s32 0, %v56
  %v58 = vrot.slane %v53, %v57
  %v60 = vadd.f32 %v51, %v58
  %v61 = vadd.f32 %v52, %v58
  %v62 = vpack.c.bf16 %v61, %v60
  %v64 = vunpack.c.l.b16 %v62
  %v65 = vunpack.c.h.b16 %v62
  %v66 = vpack.c.b16 %v64, %v64
  %v67 = vpack.c.b16 %v65, %v65
  %70 = vst [vmem:[%s3] sm:$0xf] %v66
  %71 = vst [vmem:[%s3 + $0x4] sm:$0x1] %v67
  // Predicated region
  $region14: #{clip_forward.36} parent=0 // pred_check
    _
  $region15: #{clip_forward.36} parent=0 // pred_check_branch
    %73 = sbr.rel (0) target = $region17
  $region16: #{clip_forward.36} parent=0 // pred_region
    _
  $region17: #{clip_forward.36} parent=0 // pred_fallthru
    _
  // Predicated region
  $region18: #{clip_forward.36} parent=0 // pred_check
    _
  $region19: #{clip_forward.36} parent=0 // pred_check_branch
    %75 = sbr.rel (0) target = $region21
  $region20: #{clip_forward.36} parent=0 // pred_region
    _
  $region21: #{clip_forward.36} parent=0 // pred_fallthru
    _

// kernel: clip_forward.35
$region0: #{clip_forward.35}
  #allocation0 [shape = 'u32[]', space=smem, size = 0x4, offset = 0x4, fixed_abs, tag = 'smem constant byte address 0x4 - core index']
  #allocation1 [shape = 'u32[144,128]{1,0:T(1,128)}', space=vmem, size = 0x12000, scoped, tag = 'internal scratch']
  #allocation2 [shape = 'f32[8,128]{1,0:T(8,128)}', space=vmem, size = 0x1000, scoped, tag = 'scratch operand']
  %s0 = inlined_call_operand.vmem [shape: bf16[8,192], index: 0, kind: input, shape index: {}]
  %s1 = inlined_call_operand.vmem [shape: bf16[192,128], index: 1, kind: input, shape index: {}]
  %s2 = inlined_call_operand.vmem [shape: bf16[8,128], index: 2, kind: output, shape index: {}]
  %s3 = sld [smem:[#allocation0]]
  $region26: #{clip_forward.35} parent=0
    _
  %s5 = ssub.s32 1, %s3
  %s6 = scalar_select 0, %s5, %s3
  // Predicated region
  $region2: #{clip_forward.35} parent=0 // pred_check
    _
  $region3: #{clip_forward.35} parent=0 // pred_check_branch
    %8 = sbr.rel (0) target = $region5
  $region4: #{clip_forward.35} parent=0 // pred_region
    _
  $region5: #{clip_forward.35} parent=0 // pred_fallthru
    _
  // Predicated region
  $region6: #{clip_forward.35} parent=0 // pred_check
    _
  $region7: #{clip_forward.35} parent=0 // pred_check_branch
    %10 = sbr.rel (0) target = $region9
  $region8: #{clip_forward.35} parent=0 // pred_region
    _
  $region9: #{clip_forward.35} parent=0 // pred_fallthru
    _
  %p12 = scmp.eq.s32.totalorder 0, 0
  // Predicated region
  $region10: #{clip_forward.35} parent=0 // pred_check
    %p13 = pneg %p12
  $region11: #{clip_forward.35} parent=0 // pred_check_branch
    %15 = sbr.rel (%p13) target = $region13
  $region12: #{clip_forward.35} parent=0 // pred_region
    %16 = vst [vmem:[#allocation2] sm:$0xff] 0.0
  $region13: #{clip_forward.35} parent=0 // pred_fallthru
    _
  %v17 = vld [vmem:[#allocation2] sm:$0xff]
  %v18 = vld [vmem:[%s0] sm:$0xff]
  %v19 = vld [vmem:[%s1] sm:$0xf]
  %v20 = vld [vmem:[%s1 + $0x4] sm:$0xf]
  %v21 = vld [vmem:[%s1 + $0x8] sm:$0xf]
  %v22 = vld [vmem:[%s1 + $0xc] sm:$0xf]
  %v23 = vld [vmem:[%s1 + $0x10] sm:$0xf]
  %v24 = vld [vmem:[%s1 + $0x14] sm:$0xf]
  %v25 = vld [vmem:[%s1 + $0x18] sm:$0xf]
  %v26 = vld [vmem:[%s1 + $0x1c] sm:$0xf]
  %v27 = vld [vmem:[%s1 + $0x20] sm:$0xf]
  %v28 = vld [vmem:[%s1 + $0x24] sm:$0xf]
  %v29 = vld [vmem:[%s1 + $0x28] sm:$0xf]
  %v30 = vld [vmem:[%s1 + $0x2c] sm:$0xf]
  %v31 = vld [vmem:[%s1 + $0x30] sm:$0xf]
  %v32 = vld [vmem:[%s1 + $0x34] sm:$0xf]
  %v33 = vld [vmem:[%s1 + $0x38] sm:$0xf]
  %v34 = vld [vmem:[%s1 + $0x3c] sm:$0xf]
  %v35 = vld [vmem:[%s1 + $0x40] sm:$0xf]
  %v36 = vld [vmem:[%s1 + $0x44] sm:$0xf]
  %v37 = vld [vmem:[%s1 + $0x48] sm:$0xf]
  %v38 = vld [vmem:[%s1 + $0x4c] sm:$0xf]
  %v39 = vld [vmem:[%s1 + $0x50] sm:$0xf]
  %v40 = vld [vmem:[%s1 + $0x54] sm:$0xf]
  %v41 = vld [vmem:[%s1 + $0x58] sm:$0xf]
  %v42 = vld [vmem:[%s1 + $0x5c] sm:$0xf]
  %v44 = vunpack.c.l.b16 %v18
  %v45 = vunpack.c.h.b16 %v18
  %v46 = vpack.c.b16 %v44, %v44
  %v47 = vpack.c.b16 %v45, %v45
  %v73 = vunpack.c.l.b16 %v19
  %v74 = vunpack.c.l.b16 %v20
  %v75 = vunpack.c.l.b16 %v21
  %v76 = vunpack.c.l.b16 %v22
  %v77 = vunpack.c.l.b16 %v23
  %v78 = vunpack.c.l.b16 %v24
  %v79 = vunpack.c.l.b16 %v25
  %v80 = vunpack.c.l.b16 %v26
  %v81 = vunpack.c.l.b16 %v27
  %v82 = vunpack.c.l.b16 %v28
  %v83 = vunpack.c.l.b16 %v29
  %v84 = vunpack.c.l.b16 %v30
  %v85 = vunpack.c.l.b16 %v31
  %v86 = vunpack.c.l.b16 %v32
  %v87 = vunpack.c.l.b16 %v33
  %v88 = vunpack.c.l.b16 %v34
  %v89 = vunpack.c.l.b16 %v35
  %v90 = vunpack.c.l.b16 %v36
  %v91 = vunpack.c.l.b16 %v37
  %v92 = vunpack.c.l.b16 %v38
  %v93 = vunpack.c.l.b16 %v39
  %v94 = vunpack.c.l.b16 %v40
  %v95 = vunpack.c.l.b16 %v41
  %v96 = vunpack.c.l.b16 %v42
  %v97 = vpack.c.b16 %v74, %v73
  %v98 = vpack.c.b16 %v76, %v75
  %v99 = vpack.c.b16 %v78, %v77
  %v100 = vpack.c.b16 %v80, %v79
  %v101 = vpack.c.b16 %v82, %v81
  %v102 = vpack.c.b16 %v84, %v83
  %v103 = vpack.c.b16 %v86, %v85
  %v104 = vpack.c.b16 %v88, %v87
  %v105 = vpack.c.b16 %v90, %v89
  %v106 = vpack.c.b16 %v92, %v91
  %v107 = vpack.c.b16 %v94, %v93
  %v108 = vpack.c.b16 %v96, %v95
  %vm121 = vcmask 523264
  %v123 = vsel %vm121, %v47, 0
  %125 = vmatprep.subr.bf16.mxu0 0
  %126 = vmatpush1.bf16.msra.mxu0 %v104
  %127 = vmatprep.subr.bf16.mxu0 0
  %128 = vmatpush1.bf16.msra.mxu0 %v103
  %129 = vmatprep.subr.bf16.mxu0 0
  %130 = vmatpush1.bf16.msra.mxu0 %v102
  %131 = vmatprep.subr.bf16.mxu0 0
  %132 = vmatpush1.bf16.msra.mxu0 %v101
  %133 = vmatprep.subr.bf16.mxu0 0
  %134 = vmatpush1.bf16.msra.mxu0 %v100
  %135 = vmatprep.subr.bf16.mxu0 0
  %136 = vmatpush1.bf16.msra.mxu0 %v99
  %137 = vmatprep.subr.bf16.mxu0 0
  %138 = vmatpush1.bf16.msra.mxu0 %v98
  %139 = vmatprep.subr.bf16.mxu0 0
  %140 = vmatpush1.bf16.msra.mxu0 %v97
  %141 = vmatprep.subr.bf16.mxu0 0
  %142 = vmatpush2.bf16.msra.mxu0 0
  %143 = vmatprep.subr.bf16.mxu0 0
  %144 = vmatpush2.bf16.msra.mxu0 0
  %145 = vmatprep.subr.bf16.mxu0 0
  %146 = vmatpush2.bf16.msra.mxu0 0
  %147 = vmatprep.subr.bf16.mxu0 0
  %148 = vmatpush2.bf16.msra.mxu0 0
  %149 = vmatprep.subr.bf16.mxu0 0
  %150 = vmatpush2.bf16.msra.mxu0 %v108
  %151 = vmatprep.subr.bf16.mxu0 0
  %152 = vmatpush2.bf16.msra.mxu0 %v107
  %153 = vmatprep.subr.bf16.mxu0 0
  %154 = vmatpush2.bf16.msra.mxu0 %v106
  %155 = vmatprep.subr.bf16.mxu0 0
  %156 = vmatpush2.bf16.msra.mxu0 %v105
  %157 = vmatprep.mubr.bf16.mxu0 %v123
  %158 = vmatmul.mubr.bf16.gmra.mxu0 %v46
  %v159 = vpop.f32.mrf.mxu0
  %v160 = vadd.f32 0.0, %v159
  %v161 = vpop.f32.mrf.mxu0
  %v162 = vpop.f32.mrf.mxu0
  %v163 = vpop.f32.mrf.mxu0
  %164 = vdwg.mxu0
  %v165 = vadd.f32 %v17, %v160
  %166 = vst [vmem:[#allocation2] sm:$0xff] %v165
  // Predicated region
  $region14: #{clip_forward.35} parent=0 // pred_check
    %p167 = pneg %p12
  $region15: #{clip_forward.35} parent=0 // pred_check_branch
    %169 = sbr.rel (%p167) target = $region17
  $region16: #{clip_forward.35} parent=0 // pred_region
    %v170 = vld [vmem:[#allocation2] sm:$0xff]
    %v171 = vpack.c.bf16 %v170, %v170
    %172 = vst [vmem:[%s2] sm:$0xf] %v171
  $region17: #{clip_forward.35} parent=0 // pred_fallthru
    _
  // Predicated region
  $region18: #{clip_forward.35} parent=0 // pred_check
    _
  $region19: #{clip_forward.35} parent=0 // pred_check_branch
    %174 = sbr.rel (0) target = $region21
  $region20: #{clip_forward.35} parent=0 // pred_region
    _
  $region21: #{clip_forward.35} parent=0 // pred_fallthru
    _
  // Predicated region
  $region22: #{clip_forward.35} parent=0 // pred_check
    _
  $region23: #{clip_forward.35} parent=0 // pred_check_branch
    %176 = sbr.rel (0) target = $region25
  $region24: #{clip_forward.35} parent=0 // pred_region
    _
  $region25: #{clip_forward.35} parent=0 // pred_fallthru
    _

// kernel: clip_forward.38
$region0: #{clip_forward.38}
  #allocation0 [shape = 'u32[]', space=smem, size = 0x4, offset = 0x4, fixed_abs, tag = 'smem constant byte address 0x4 - core index']
  #allocation1 [shape = 'u32[144,128]{1,0:T(1,128)}', space=vmem, size = 0x12000, scoped, tag = 'internal scratch']
  #allocation2 [shape = 'f32[10,128]{1,0:T(8,128)}', space=vmem, size = 0x2000, scoped, tag = 'scratch operand']
  %s0 = inlined_call_operand.vmem [shape: bf16[10,128], index: 0, kind: input, shape index: {}]
  %s1 = inlined_call_operand.vmem [shape: bf16[128,384], index: 1, kind: input, shape index: {}]
  %s2 = inlined_call_operand.vmem [shape: bf16[1,384], index: 2, kind: input, shape index: {}]
  %s3 = inlined_call_operand.vmem [shape: bf16[10,384], index: 3, kind: output, shape index: {}]
  %s4 = sld [smem:[#allocation0]]
  $region131: #{clip_forward.38} parent=0
    _
  %s6 = ssub.s32 1, %s4
  %s7 = scalar_select 0, %s6, %s4
  $region1: #{clip_forward.38} parent=0
    #allocation3 [shape = 'u8[65536]{0}', space=vmem, size = 0x10000, scoped, tag = 'input window, operand 1']
    #allocation4 [shape = 'u8[8192]{0}', space=vmem, size = 0x2000, scoped, tag = 'output window, operand 0']
    loop: start=0, step=1, limit=5
    $region2: #{clip_forward.38} parent=1 // loop_pre_header
      _
    $region3: #{clip_forward.38} parent=1 // loop_header
      %s9 = sphi 0, %s13
      %p10 = scmp.ge.s32.totalorder %s9, 5
      %s16 = sphi 0, %s35
      %s17 = sphi 0, %s31
      %s18 = sphi 0, %s27
      %s19 = sphi 0, %s16
      %s20 = sphi 0, %s17
      %s21 = sphi 0, %s18
      %s22 = sphi 0, %s19
      %s23 = sphi 0, %s20
      %s24 = sphi 0, %s21
      %s40 = sphi 0, %s42
      %s43 = sphi 0, %s40
      %s44 = sphi 0, %s43
      %s60 = sphi 0, %s44
      %s68 = sphi 0, %s70
      %s71 = sphi 0, %s68
      %s72 = sphi 0, %s71
      %s88 = sphi 0, %s72
      %s94 = sphi 0, %s96
      %s97 = sphi 0, %s94
      %s98 = sphi 0, %s97
      %s114 = sphi 0, %s98
      %s122 = sphi 0, %s124
      %s125 = sphi 0, %s122
      %s126 = sphi 0, %s125
      %s142 = sphi 0, %s126
    $region4: #{clip_forward.38} parent=1 // loop_header_branch
      %12 = sbr.rel (%p10) target = $region8
    $region5: #{clip_forward.38} parent=1 // loop_body
      %s14 = ssub.s32 %s9, 1
      %s15 = ssub.s32 %s9, 2
      %s25 = sadd.s32 1, %s18
      %p26 = scmp.ge.s32.totalorder %s25, 1
      %s27 = scalar_select %p26, 0, %s25
      %s28 = sadd.s32 1, %s17
      %s29 = scalar_select %p26, %s28, %s17
      %p30 = scmp.ge.s32.totalorder %s29, 3
      %s31 = scalar_select %p30, 0, %s29
      %s32 = sadd.s32 1, %s16
      %s33 = scalar_select %p30, %s32, %s16
      %p34 = scmp.ge.s32.totalorder %s33, 1
      %s35 = scalar_select %p34, 0, %s33
      %s36 = ssub.s32 %s16, %s35
      %s37 = ssub.s32 %s18, %s27
      %s38 = sor.u32 %s36, %s37
      %p39 = scmp.eq.s32.totalorder %s38, 0
      %s41 = sadd.s32 %s40, 1
      %s42 = scalar_select %p39, %s40, %s41
      %p45 = pneg %p39
      %p46 = scmp.eq.s32.totalorder %s9, 2
      %p47 = por %p45, %p46
      %p48 = scmp.ne.s32.totalorder %s40, %s43
      %p49 = scmp.eq.s32.totalorder %s9, 0
      %p50 = por %p48, %p49
      %p51 = scmp.ne.s32.totalorder %s40, %s43
      %p52 = scmp.eq.s32.totalorder %s14, 2
      %p53 = por %p51, %p52
      %p54 = scmp.ne.s32.totalorder %s43, %s44
      %p55 = scmp.eq.s32.totalorder %s14, 0
      %p56 = por %p54, %p55
      %p57 = scmp.ne.s32.totalorder %s43, %s44
      %p58 = scmp.eq.s32.totalorder %s15, 2
      %p59 = por %p57, %p58
      %p61 = scmp.ne.s32.totalorder %s44, %s60
      %p62 = scmp.eq.s32.totalorder %s15, 0
      %p63 = por %p61, %p62
      %s64 = ssub.s32 %s18, %s27
      %s65 = ssub.s32 %s17, %s31
      %s66 = sor.u32 %s64, %s65
      %p67 = scmp.eq.s32.totalorder %s66, 0
      %s69 = sadd.s32 %s68, 1
      %s70 = scalar_select %p67, %s68, %s69
      %p73 = pneg %p67
      %p74 = scmp.eq.s32.totalorder %s9, 2
      %p75 = por %p73, %p74
      %p76 = scmp.ne.s32.totalorder %s68, %s71
      %p77 = scmp.eq.s32.totalorder %s9, 0
      %p78 = por %p76, %p77
      %p79 = scmp.ne.s32.totalorder %s68, %s71
      %p80 = scmp.eq.s32.totalorder %s14, 2
      %p81 = por %p79, %p80
      %p82 = scmp.ne.s32.totalorder %s71, %s72
      %p83 = scmp.eq.s32.totalorder %s14, 0
      %p84 = por %p82, %p83
      %p85 = scmp.ne.s32.totalorder %s71, %s72
      %p86 = scmp.eq.s32.totalorder %s15, 2
      %p87 = por %p85, %p86
      %p89 = scmp.ne.s32.totalorder %s72, %s88
      %p90 = scmp.eq.s32.totalorder %s15, 0
      %p91 = por %p89, %p90
      %s92 = ssub.s32 %s17, %s31
      %p93 = scmp.eq.s32.totalorder %s92, 0
      %s95 = sadd.s32 %s94, 1
      %s96 = scalar_select %p93, %s94, %s95
      %p99 = pneg %p93
      %p100 = scmp.eq.s32.totalorder %s9, 2
      %p101 = por %p99, %p100
      %p102 = scmp.ne.s32.totalorder %s94, %s97
      %p103 = scmp.eq.s32.totalorder %s9, 0
      %p104 = por %p102, %p103
      %p105 = scmp.ne.s32.totalorder %s94, %s97
      %p106 = scmp.eq.s32.totalorder %s14, 2
      %p107 = por %p105, %p106
      %p108 = scmp.ne.s32.totalorder %s97, %s98
      %p109 = scmp.eq.s32.totalorder %s14, 0
      %p110 = por %p108, %p109
      %p111 = scmp.ne.s32.totalorder %s97, %s98
      %p112 = scmp.eq.s32.totalorder %s15, 2
      %p113 = por %p111, %p112
      %p115 = scmp.ne.s32.totalorder %s98, %s114
      %p116 = scmp.eq.s32.totalorder %s15, 0
      %p117 = por %p115, %p116
      %s118 = ssub.s32 %s16, %s35
      %s119 = ssub.s32 %s17, %s31
      %s120 = sor.u32 %s118, %s119
      %p121 = scmp.eq.s32.totalorder %s120, 0
      %s123 = sadd.s32 %s122, 1
      %s124 = scalar_select %p121, %s122, %s123
      %p127 = pneg %p121
      %p128 = scmp.eq.s32.totalorder %s9, 2
      %p129 = por %p127, %p128
      %p130 = scmp.ne.s32.totalorder %s122, %s125
      %p131 = scmp.eq.s32.totalorder %s9, 0
      %p132 = por %p130, %p131
      %p133 = scmp.ne.s32.totalorder %s122, %s125
      %p134 = scmp.eq.s32.totalorder %s14, 2
      %p135 = por %p133, %p134
      %p136 = scmp.ne.s32.totalorder %s125, %s126
      %p137 = scmp.eq.s32.totalorder %s14, 0
      %p138 = por %p136, %p137
      %p139 = scmp.ne.s32.totalorder %s125, %s126
      %p140 = scmp.eq.s32.totalorder %s15, 2
      %p141 = por %p139, %p140
      %p143 = scmp.ne.s32.totalorder %s126, %s142
      %p144 = scmp.eq.s32.totalorder %s15, 0
      %p145 = por %p143, %p144
      %p146 = scmp.le.s32.totalorder 1, %s9
      %p147 = scmp.lt.s32.totalorder %s9, 4
      %p148 = pnand %p146, %p147
      %p149 = pneg %p148
      // Predicated region
      $region9: #{clip_forward.38} parent=5 // pred_check
        _
      $region10: #{clip_forward.38} parent=5 // pred_check_branch
        %151 = sbr.rel (%p148) target = $region12
      $region11: #{clip_forward.38} parent=5 // pred_region
        %s152 = ssub.s32 %s9, 1
        // Predicated region
        $region13: #{clip_forward.38} parent=11 // pred_check
          %p153 = pneg %p56
        $region14: #{clip_forward.38} parent=11 // pred_check_branch
          %155 = sbr.rel (%p153) target = $region16
        $region15: #{clip_forward.38} parent=11 // pred_region
          %s156 = smul.u32 2, %s19
          %p157 = scmp.lt.s32.totalorder %s156, 1
          %s158 = scalar_select %p157, %s156, 1
          %p159 = scmp.lt.s32.totalorder %s21, 0
          %s160 = scalar_select %p159, %s21, 0
          %s161 = sadd.s32 %s160, %s158
          %s162 = smul.addr %s161, 4
          %s163 = scalar_lea.vmem %s0, %s162
          %s164 = smul.u32 2, %s19
        $region16: #{clip_forward.38} parent=11 // pred_fallthru
          _
      $region12: #{clip_forward.38} parent=5 // pred_fallthru
        _
      %p165 = scmp.lt.s32.totalorder %s9, 3
      // Predicated region
      $region17: #{clip_forward.38} parent=5 // pred_check
        %p166 = pneg %p165
      $region18: #{clip_forward.38} parent=5 // pred_check_branch
        %168 = sbr.rel (%p166) target = $region20
      $region19: #{clip_forward.38} parent=5 // pred_region
        // Predicated region
        $region21: #{clip_forward.38} parent=19 // pred_check
          %p169 = pneg %p78
        $region22: #{clip_forward.38} parent=19 // pred_check_branch
          %171 = sbr.rel (%p169) target = $region24
        $region23: #{clip_forward.38} parent=19 // pred_region
          %s172 = sand.u32 %s68, 1
          %s173 = sand.u32 %s68, 1
          %s174 = smul.addr %s173, 64
          %s175 = scalar_lea.vmem [#allocation3], %s174
          %s176 = smul.u32 16, %s18
          %s177 = smul.addr %s176, 3
          %s178 = sadd.s32 %s17, %s177
          %s179 = smul.addr %s178, 4
          %s180 = scalar_lea.vmem %s1, %s179
          // Predicated region
          $region25: #{clip_forward.38} parent=23 // pred_check
            _
          $region26: #{clip_forward.38} parent=23 // pred_check_branch
            %182 = sbr.rel (0) target = $region28
          $region27: #{clip_forward.38} parent=23 // pred_region
            // Predicated region
            $region29: #{clip_forward.38} parent=27 // pred_check
              _
            $region30: #{clip_forward.38} parent=27 // pred_check_branch
              %184 = sbr.rel target = $region32
            $region31: #{clip_forward.38} parent=27 // pred_region
              // Predicated region
              $region44: #{clip_forward.38} parent=31 // pred_check
                _
              $region45: #{clip_forward.38} parent=31 // pred_check_branch
                %230 = sbr.rel (0) target = $region47
              $region46: #{clip_forward.38} parent=31 // pred_region
                loop: start=0, step=1, limit=1
                $region48: #{clip_forward.38} parent=46 // loop_pre_header
                  _
                $region49: #{clip_forward.38} parent=46 // loop_header
                  %s232 = sphi 0, %s236
                  %p233 = scmp.ge.s32.totalorder %s232, 1
                  %s237 = sphi %s180, %s180
                  %s238 = sphi %s175, %s175
                $region50: #{clip_forward.38} parent=46 // loop_header_branch
                  %235 = sbr.rel (%p233) target = $region54
                $region51: #{clip_forward.38} parent=46 // loop_body
                  _
                $region52: #{clip_forward.38} parent=46 // loop_footer
                  %s236 = sadd.s32 1, %s232
                $region53: #{clip_forward.38} parent=46 // loop_footer_branch
                  %231 = sbr.rel target = $region49
                $region54: #{clip_forward.38} parent=46 // loop_exit
                  _
                %s240 = ssub.s32 16, 1
                loop: start=0, step=1, limit=1
                $region55: #{clip_forward.38} parent=46 // loop_pre_header
                  _
                $region56: #{clip_forward.38} parent=46 // loop_header
                  %s242 = sphi 0, %s246
                  %p243 = scmp.ge.s32.totalorder %s242, 1
                  %s247 = sphi %s180, %s180
                  %s248 = sphi %s175, %s175
                $region57: #{clip_forward.38} parent=46 // loop_header_branch
                  %245 = sbr.rel (%p243) target = $region61
                $region58: #{clip_forward.38} parent=46 // loop_body
                  %v249 = vld [vmem:[%s247] sm:%s240]
                  %250 = vst [vmem:[%s248] sm:%s240] %v249
                  %v251 = vld [vmem:[%s247 + $0xc] sm:%s240]
                  %252 = vst [vmem:[%s248 + $0x4] sm:%s240] %v251
                  %v253 = vld [vmem:[%s247 + $0x18] sm:%s240]
                  %254 = vst [vmem:[%s248 + $0x8] sm:%s240] %v253
                  %v255 = vld [vmem:[%s247 + $0x24] sm:%s240]
                  %256 = vst [vmem:[%s248 + $0xc] sm:%s240] %v255
                  %v257 = vld [vmem:[%s247 + $0x30] sm:%s240]
                  %258 = vst [vmem:[%s248 + $0x10] sm:%s240] %v257
                  %v259 = vld [vmem:[%s247 + $0x3c] sm:%s240]
                  %260 = vst [vmem:[%s248 + $0x14] sm:%s240] %v259
                  %v261 = vld [vmem:[%s247 + $0x48] sm:%s240]
                  %262 = vst [vmem:[%s248 + $0x18] sm:%s240] %v261
                  %v263 = vld [vmem:[%s247 + $0x54] sm:%s240]
                  %264 = vst [vmem:[%s248 + $0x1c] sm:%s240] %v263
                  %v265 = vld [vmem:[%s247 + $0x60] sm:%s240]
                  %266 = vst [vmem:[%s248 + $0x20] sm:%s240] %v265
                  %v267 = vld [vmem:[%s247 + $0x6c] sm:%s240]
                  %268 = vst [vmem:[%s248 + $0x24] sm:%s240] %v267
                  %v269 = vld [vmem:[%s247 + $0x78] sm:%s240]
                  %270 = vst [vmem:[%s248 + $0x28] sm:%s240] %v269
                  %v271 = vld [vmem:[%s247 + $0x84] sm:%s240]
                  %272 = vst [vmem:[%s248 + $0x2c] sm:%s240] %v271
                  %v273 = vld [vmem:[%s247 + $0x90] sm:%s240]
                  %274 = vst [vmem:[%s248 + $0x30] sm:%s240] %v273
                  %v275 = vld [vmem:[%s247 + $0x9c] sm:%s240]
                  %276 = vst [vmem:[%s248 + $0x34] sm:%s240] %v275
                  %v277 = vld [vmem:[%s247 + $0xa8] sm:%s240]
                  %278 = vst [vmem:[%s248 + $0x38] sm:%s240] %v277
                  %v279 = vld [vmem:[%s247 + $0xb4] sm:%s240]
                  %280 = vst [vmem:[%s248 + $0x3c] sm:%s240] %v279
                $region59: #{clip_forward.38} parent=46 // loop_footer
                  %s246 = sadd.s32 1, %s242
                $region60: #{clip_forward.38} parent=46 // loop_footer_branch
                  %241 = sbr.rel target = $region56
                $region61: #{clip_forward.38} parent=46 // loop_exit
                  _
              $region47: #{clip_forward.38} parent=31 // pred_fallthru
                _
            $region32: #{clip_forward.38} parent=27 // pred_fallthru
              _
            // Predicated region
            $region33: #{clip_forward.38} parent=27 // pred_check
              _
            $region34: #{clip_forward.38} parent=27 // pred_check_branch
              %186 = sbr.rel (0) target = $region36
            $region35: #{clip_forward.38} parent=27 // pred_region
              %s188 = ssub.s32 16, 1
              loop: start=0, step=1, limit=1
              $region37: #{clip_forward.38} parent=35 // loop_pre_header
                _
              $region38: #{clip_forward.38} parent=35 // loop_header
                %s190 = sphi 0, %s194
                %p191 = scmp.ge.s32.totalorder %s190, 1
                %s195 = sphi %s180, %s180
                %s196 = sphi %s175, %s175
              $region39: #{clip_forward.38} parent=35 // loop_header_branch
                %193 = sbr.rel (%p191) target = $region43
              $region40: #{clip_forward.38} parent=35 // loop_body
                %v197 = vld [vmem:[%s195] sm:%s188]
                %198 = vst [vmem:[%s196] sm:%s188] %v197
                %v199 = vld [vmem:[%s195 + $0xc] sm:%s188]
                %200 = vst [vmem:[%s196 + $0x4] sm:%s188] %v199
                %v201 = vld [vmem:[%s195 + $0x18] sm:%s188]
                %202 = vst [vmem:[%s196 + $0x8] sm:%s188] %v201
                %v203 = vld [vmem:[%s195 + $0x24] sm:%s188]
                %204 = vst [vmem:[%s196 + $0xc] sm:%s188] %v203
                %v205 = vld [vmem:[%s195 + $0x30] sm:%s188]
                %206 = vst [vmem:[%s196 + $0x10] sm:%s188] %v205
                %v207 = vld [vmem:[%s195 + $0x3c] sm:%s188]
                %208 = vst [vmem:[%s196 + $0x14] sm:%s188] %v207
                %v209 = vld [vmem:[%s195 + $0x48] sm:%s188]
                %210 = vst [vmem:[%s196 + $0x18] sm:%s188] %v209
                %v211 = vld [vmem:[%s195 + $0x54] sm:%s188]
                %212 = vst [vmem:[%s196 + $0x1c] sm:%s188] %v211
                %v213 = vld [vmem:[%s195 + $0x60] sm:%s188]
                %214 = vst [vmem:[%s196 + $0x20] sm:%s188] %v213
                %v215 = vld [vmem:[%s195 + $0x6c] sm:%s188]
                %216 = vst [vmem:[%s196 + $0x24] sm:%s188] %v215
                %v217 = vld [vmem:[%s195 + $0x78] sm:%s188]
                %218 = vst [vmem:[%s196 + $0x28] sm:%s188] %v217
                %v219 = vld [vmem:[%s195 + $0x84] sm:%s188]
                %220 = vst [vmem:[%s196 + $0x2c] sm:%s188] %v219
                %v221 = vld [vmem:[%s195 + $0x90] sm:%s188]
                %222 = vst [vmem:[%s196 + $0x30] sm:%s188] %v221
                %v223 = vld [vmem:[%s195 + $0x9c] sm:%s188]
                %224 = vst [vmem:[%s196 + $0x34] sm:%s188] %v223
                %v225 = vld [vmem:[%s195 + $0xa8] sm:%s188]
                %226 = vst [vmem:[%s196 + $0x38] sm:%s188] %v225
                %v227 = vld [vmem:[%s195 + $0xb4] sm:%s188]
                %228 = vst [vmem:[%s196 + $0x3c] sm:%s188] %v227
              $region41: #{clip_forward.38} parent=35 // loop_footer
                %s194 = sadd.s32 1, %s190
              $region42: #{clip_forward.38} parent=35 // loop_footer_branch
                %189 = sbr.rel target = $region38
              $region43: #{clip_forward.38} parent=35 // loop_exit
                _
            $region36: #{clip_forward.38} parent=27 // pred_fallthru
              _
          $region28: #{clip_forward.38} parent=23 // pred_fallthru
            _
          %281 = vnop
        $region24: #{clip_forward.38} parent=19 // pred_fallthru
          _
        // Predicated region
        $region62: #{clip_forward.38} parent=19 // pred_check
          %p282 = pneg %p104
        $region63: #{clip_forward.38} parent=19 // pred_check_branch
          %284 = sbr.rel (%p282) target = $region65
        $region64: #{clip_forward.38} parent=19 // pred_region
          %p285 = scmp.lt.s32.totalorder %s17, 2
          %s286 = scalar_select %p285, %s17, 2
          %s287 = scalar_lea.vmem %s2, %s286
        $region65: #{clip_forward.38} parent=19 // pred_fallthru
          _
      $region20: #{clip_forward.38} parent=5 // pred_fallthru
        _
      %p288 = scmp.le.s32.totalorder 1, %s9
      %p289 = scmp.lt.s32.totalorder %s9, 4
      %p290 = pnand %p288, %p289
      %p291 = pneg %p290
      // Predicated region
      $region66: #{clip_forward.38} parent=5 // pred_check
        _
      $region67: #{clip_forward.38} parent=5 // pred_check_branch
        %293 = sbr.rel (%p290) target = $region69
      $region68: #{clip_forward.38} parent=5 // pred_region
        %s294 = ssub.s32 %s9, 1
        %s295 = sand.u32 %s71, 1
        %s296 = sand.u32 %s71, 1
        %s297 = smul.addr %s296, 64
        %s298 = scalar_lea.vmem [#allocation3], %s297
        // Predicated region
        $region70: #{clip_forward.38} parent=68 // pred_check
          %p299 = pneg %p84
        $region71: #{clip_forward.38} parent=68 // pred_check_branch
          %301 = sbr.rel (%p299) target = $region73
        $region72: #{clip_forward.38} parent=68 // pred_region
          _
        $region73: #{clip_forward.38} parent=68 // pred_fallthru
          _
        %s302 = smul.u32 2, %s19
        %p303 = scmp.lt.s32.totalorder %s302, 1
        %s304 = scalar_select %p303, %s302, 1
        %p305 = scmp.lt.s32.totalorder %s21, 0
        %s306 = scalar_select %p305, %s21, 0
        %s307 = sadd.s32 %s306, %s304
        %s308 = smul.addr %s307, 4
        %s309 = scalar_lea.vmem %s0, %s308
        %p310 = pneg %p56
        %p311 = pneg %p53
        %s312 = sand.u32 %s71, 1
        %s313 = sand.u32 %s71, 1
        %s314 = smul.addr %s313, 64
        %s315 = scalar_lea.vmem [#allocation3], %s314
        %p316 = pneg %p84
        %p317 = pneg %p81
        %p318 = scmp.lt.s32.totalorder %s20, 2
        %s319 = scalar_select %p318, %s20, 2
        %s320 = scalar_lea.vmem %s2, %s319
        %p321 = pneg %p110
        %p322 = pneg %p107
        %p323 = pneg %p138
        %p324 = pneg %p135
        %s325 = sand.u32 %s125, 1
        %s326 = sand.u32 %s125, 1
        %s327 = smul.addr %s326, 8
        %s328 = scalar_lea.vmem [#allocation4], %s327
        %s329 = smul.u32 2, %s19
        %p330 = scmp.lt.s32.totalorder %s329, 1
        %s331 = scalar_select %p330, %s329, 1
        %p332 = scmp.lt.s32.totalorder %s21, 0
        %s333 = scalar_select %p332, %s21, 0
        %s334 = sadd.s32 %s333, %s331
        %s335 = smul.addr %s334, 4
        %s336 = scalar_lea.vmem %s0, %s335
        %s337 = smul.u32 2, %s19
        %s338 = smul.u32 16, %s21
        %p339 = scmp.lt.s32.totalorder %s20, 2
        %s340 = scalar_select %p339, %s20, 2
        %s341 = scalar_lea.vmem %s2, %s340
        %s342 = smul.u32 2, %s19
        %p344 = scmp.eq.s32.totalorder %s21, 0
        // Predicated region
        $region74: #{clip_forward.38} parent=68 // pred_check
          %p345 = pneg %p344
        $region75: #{clip_forward.38} parent=68 // pred_check_branch
          %347 = sbr.rel (%p345) target = $region77
        $region76: #{clip_forward.38} parent=68 // pred_region
          %348 = vst [vmem:[#allocation2] sm:$0xff] 0.0
          %349 = vst [vmem:[#allocation2 + $0x8] sm:$0x3] 0.0
        $region77: #{clip_forward.38} parent=68 // pred_fallthru
          _
        %v350 = vld [vmem:[#allocation2] sm:$0xff]
        %v351 = vld [vmem:[#allocation2 + $0x8] sm:$0x3]
        %v352 = vld [vmem:[%s336] sm:$0xf]
        %v353 = vld [vmem:[%s336 + $0x4] sm:$0x1]
        %v354 = vld [vmem:[%s298] sm:$0xf]
        %v355 = vld [vmem:[%s298 + $0x4] sm:$0xf]
        %v356 = vld [vmem:[%s298 + $0x8] sm:$0xf]
        %v357 = vld [vmem:[%s298 + $0xc] sm:$0xf]
        %v358 = vld [vmem:[%s298 + $0x10] sm:$0xf]
        %v359 = vld [vmem:[%s298 + $0x14] sm:$0xf]
        %v360 = vld [vmem:[%s298 + $0x18] sm:$0xf]
        %v361 = vld [vmem:[%s298 + $0x1c] sm:$0xf]
        %v362 = vld [vmem:[%s298 + $0x20] sm:$0xf]
        %v363 = vld [vmem:[%s298 + $0x24] sm:$0xf]
        %v364 = vld [vmem:[%s298 + $0x28] sm:$0xf]
        %v365 = vld [vmem:[%s298 + $0x2c] sm:$0xf]
        %v366 = vld [vmem:[%s298 + $0x30] sm:$0xf]
        %v367 = vld [vmem:[%s298 + $0x34] sm:$0xf]
        %v368 = vld [vmem:[%s298 + $0x38] sm:$0xf]
        %v369 = vld [vmem:[%s298 + $0x3c] sm:$0xf]
        %v372 = vunpack.c.l.b16 %v352
        %v373 = vunpack.c.l.b16 %v353
        %v374 = vpack.c.b16 %v373, %v372
        %v392 = vunpack.c.l.b16 %v354
        %v393 = vunpack.c.l.b16 %v355
        %v394 = vunpack.c.l.b16 %v356
        %v395 = vunpack.c.l.b16 %v357
        %v396 = vunpack.c.l.b16 %v358
        %v397 = vunpack.c.l.b16 %v359
        %v398 = vunpack.c.l.b16 %v360
        %v399 = vunpack.c.l.b16 %v361
        %v400 = vunpack.c.l.b16 %v362
        %v401 = vunpack.c.l.b16 %v363
        %v402 = vunpack.c.l.b16 %v364
        %v403 = vunpack.c.l.b16 %v365
        %v404 = vunpack.c.l.b16 %v366
        %v405 = vunpack.c.l.b16 %v367
        %v406 = vunpack.c.l.b16 %v368
        %v407 = vunpack.c.l.b16 %v369
        %v408 = vpack.c.b16 %v393, %v392
        %v409 = vpack.c.b16 %v395, %v394
        %v410 = vpack.c.b16 %v397, %v396
        %v411 = vpack.c.b16 %v399, %v398
        %v412 = vpack.c.b16 %v401, %v400
        %v413 = vpack.c.b16 %v403, %v402
        %v414 = vpack.c.b16 %v405, %v404
        %v415 = vpack.c.b16 %v407, %v406
        %424 = vmatprep.subr.bf16.mxu0 0
        %425 = vmatpush1.bf16.msra.mxu0 %v415
        %426 = vmatprep.subr.bf16.mxu0 0
        %427 = vmatpush1.bf16.msra.mxu0 %v414
        %428 = vmatprep.subr.bf16.mxu0 0
        %429 = vmatpush1.bf16.msra.mxu0 %v413
        %430 = vmatprep.subr.bf16.mxu0 0
        %431 = vmatpush1.bf16.msra.mxu0 %v412
        %432 = vmatprep.subr.bf16.mxu0 0
        %433 = vmatpush1.bf16.msra.mxu0 %v411
        %434 = vmatprep.subr.bf16.mxu0 0
        %435 = vmatpush1.bf16.msra.mxu0 %v410
        %436 = vmatprep.subr.bf16.mxu0 0
        %437 = vmatpush1.bf16.msra.mxu0 %v409
        %438 = vmatprep.subr.bf16.mxu0 0
        %439 = vmatpush1.bf16.msra.mxu0 %v408
        %440 = vmatprep.subr.bf16.mxu0 0
        %441 = vmatpush2.bf16.msra.mxu0 0
        %442 = vmatprep.subr.bf16.mxu0 0
        %443 = vmatpush2.bf16.msra.mxu0 0
        %444 = vmatprep.subr.bf16.mxu0 0
        %445 = vmatpush2.bf16.msra.mxu0 0
        %446 = vmatprep.subr.bf16.mxu0 0
        %447 = vmatpush2.bf16.msra.mxu0 0
        %448 = vmatprep.subr.bf16.mxu0 0
        %449 = vmatpush2.bf16.msra.mxu0 0
        %450 = vmatprep.subr.bf16.mxu0 0
        %451 = vmatpush2.bf16.msra.mxu0 0
        %452 = vmatprep.subr.bf16.mxu0 0
        %453 = vmatpush2.bf16.msra.mxu0 0
        %454 = vmatprep.subr.bf16.mxu0 0
        %455 = vmatpush2.bf16.msra.mxu0 0
        %456 = vmatprep.mubr.bf16.mxu0 0
        %457 = vmatmul.mubr.bf16.gmra.mxu0 %v374
        %v458 = vpop.f32.mrf.mxu0
        %v459 = vadd.f32 0.0, %v458
        %v460 = vpop.f32.mrf.mxu0
        %v461 = vpop.f32.mrf.mxu0
        %v462 = vadd.f32 0.0, %v461
        %v463 = vpop.f32.mrf.mxu0
        %464 = vdwg.mxu0
        %v465 = vadd.f32 %v350, %v459
        %v466 = vadd.f32 %v351, %v462
        %467 = vst [vmem:[#allocation2] sm:$0xff] %v465
        %468 = vst [vmem:[#allocation2 + $0x8] sm:$0x3] %v466
        // Predicated region
        $region78: #{clip_forward.38} parent=68 // pred_check
          %p469 = pneg %p344
        $region79: #{clip_forward.38} parent=68 // pred_check_branch
          %471 = sbr.rel (%p469) target = $region81
        $region80: #{clip_forward.38} parent=68 // pred_region
          %v472 = vld [vmem:[#allocation2] sm:$0xff]
          %v473 = vld [vmem:[#allocation2 + $0x8] sm:$0x3]
          %v474 = vld [vmem:[%s341] sm:$0x1]
          %v475 = vunpack.c.l.bf16 %v474
          %v476 = vlaneseq
          %v477 = vshrl.u32 %v476, 7
          %v478 = vsub.s32 0, %v477
          %v479 = vrot.slane %v475, %v478
          %v480 = vadd.f32 %v472, %v479
          %v481 = vadd.f32 %v473, %v479
          %v482 = vpack.c.bf16 %v481, %v480
          %v484 = vunpack.c.l.b16 %v482
          %v485 = vunpack.c.h.b16 %v482
          %v486 = vpack.c.b16 %v484, %v484
          %v487 = vpack.c.b16 %v485, %v485
          %490 = vst [vmem:[%s328] sm:$0xf] %v486
          %491 = vst [vmem:[%s328 + $0x4] sm:$0x1] %v487
        $region81: #{clip_forward.38} parent=68 // pred_fallthru
          _
        %s492 = sand.u32 %s125, 1
        %s493 = sand.u32 %s125, 1
        %s494 = smul.addr %s493, 8
        %s495 = scalar_lea.vmem [#allocation4], %s494
        // Predicated region
        $region82: #{clip_forward.38} parent=68 // pred_check
          %p496 = pneg %p135
        $region83: #{clip_forward.38} parent=68 // pred_check_branch
          %498 = sbr.rel (%p496) target = $region85
        $region84: #{clip_forward.38} parent=68 // pred_region
          %s499 = smul.u32 2, %s19
          %s500 = smul.addr %s499, 3
          %s501 = sadd.s32 %s20, %s500
          %s502 = smul.addr %s501, 4
          %s503 = scalar_lea.vmem %s3, %s502
          // Predicated region
          $region86: #{clip_forward.38} parent=84 // pred_check
            _
          $region87: #{clip_forward.38} parent=84 // pred_check_branch
            %505 = sbr.rel (0) target = $region89
          $region88: #{clip_forward.38} parent=84 // pred_region
            // Predicated region
            $region90: #{clip_forward.38} parent=88 // pred_check
              _
            $region91: #{clip_forward.38} parent=88 // pred_check_branch
              %507 = sbr.rel target = $region93
            $region92: #{clip_forward.38} parent=88 // pred_region
              // Predicated region
              $region105: #{clip_forward.38} parent=92 // pred_check
                _
              $region106: #{clip_forward.38} parent=92 // pred_check_branch
                %525 = sbr.rel (0) target = $region108
              $region107: #{clip_forward.38} parent=92 // pred_region
                loop: start=0, step=1, limit=1
                $region109: #{clip_forward.38} parent=107 // loop_pre_header
                  _
                $region110: #{clip_forward.38} parent=107 // loop_header
                  %s527 = sphi 0, %s531
                  %p528 = scmp.ge.s32.totalorder %s527, 1
                  %s532 = sphi %s495, %s495
                  %s533 = sphi %s503, %s503
                $region111: #{clip_forward.38} parent=107 // loop_header_branch
                  %530 = sbr.rel (%p528) target = $region115
                $region112: #{clip_forward.38} parent=107 // loop_body
                  _
                $region113: #{clip_forward.38} parent=107 // loop_footer
                  %s531 = sadd.s32 1, %s527
                $region114: #{clip_forward.38} parent=107 // loop_footer_branch
                  %526 = sbr.rel target = $region110
                $region115: #{clip_forward.38} parent=107 // loop_exit
                  _
                %s535 = ssub.s32 16, 1
                loop: start=0, step=1, limit=1
                $region116: #{clip_forward.38} parent=107 // loop_pre_header
                  _
                $region117: #{clip_forward.38} parent=107 // loop_header
                  %s537 = sphi 0, %s541
                  %p538 = scmp.ge.s32.totalorder %s537, 1
                  %s542 = sphi %s495, %s495
                  %s543 = sphi %s503, %s503
                $region118: #{clip_forward.38} parent=107 // loop_header_branch
                  %540 = sbr.rel (%p538) target = $region122
                $region119: #{clip_forward.38} parent=107 // loop_body
                  %v544 = vld [vmem:[%s542] sm:%s535]
                  %545 = vst [vmem:[%s543] sm:%s535] %v544
                  %v546 = vld [vmem:[%s542 + $0x4] sm:%s535]
                  %547 = vst [vmem:[%s543 + $0xc] sm:%s535] %v546
                $region120: #{clip_forward.38} parent=107 // loop_footer
                  %s541 = sadd.s32 1, %s537
                $region121: #{clip_forward.38} parent=107 // loop_footer_branch
                  %536 = sbr.rel target = $region117
                $region122: #{clip_forward.38} parent=107 // loop_exit
                  _
              $region108: #{clip_forward.38} parent=92 // pred_fallthru
                _
            $region93: #{clip_forward.38} parent=88 // pred_fallthru
              _
            // Predicated region
            $region94: #{clip_forward.38} parent=88 // pred_check
              _
            $region95: #{clip_forward.38} parent=88 // pred_check_branch
              %509 = sbr.rel (0) target = $region97
            $region96: #{clip_forward.38} parent=88 // pred_region
              %s511 = ssub.s32 16, 1
              loop: start=0, step=1, limit=1
              $region98: #{clip_forward.38} parent=96 // loop_pre_header
                _
              $region99: #{clip_forward.38} parent=96 // loop_header
                %s513 = sphi 0, %s517
                %p514 = scmp.ge.s32.totalorder %s513, 1
                %s518 = sphi %s495, %s495
                %s519 = sphi %s503, %s503
              $region100: #{clip_forward.38} parent=96 // loop_header_branch
                %516 = sbr.rel (%p514) target = $region104
              $region101: #{clip_forward.38} parent=96 // loop_body
                %v520 = vld [vmem:[%s518] sm:%s511]
                %521 = vst [vmem:[%s519] sm:%s511] %v520
                %v522 = vld [vmem:[%s518 + $0x4] sm:%s511]
                %523 = vst [vmem:[%s519 + $0xc] sm:%s511] %v522
              $region102: #{clip_forward.38} parent=96 // loop_footer
                %s517 = sadd.s32 1, %s513
              $region103: #{clip_forward.38} parent=96 // loop_footer_branch
                %512 = sbr.rel target = $region99
              $region104: #{clip_forward.38} parent=96 // loop_exit
                _
            $region97: #{clip_forward.38} parent=88 // pred_fallthru
              _
          $region89: #{clip_forward.38} parent=84 // pred_fallthru
            _
          %548 = vnop
        $region85: #{clip_forward.38} parent=68 // pred_fallthru
          _
      $region69: #{clip_forward.38} parent=5 // pred_fallthru
        _
      %p549 = scmp.le.s32.totalorder 2, %s9
      // Predicated region
      $region123: #{clip_forward.38} parent=5 // pred_check
        %p550 = pneg %p549
      $region124: #{clip_forward.38} parent=5 // pred_check_branch
        %552 = sbr.rel (%p550) target = $region126
      $region125: #{clip_forward.38} parent=5 // pred_region
        %s553 = ssub.s32 %s9, 2
        // Predicated region
        $region127: #{clip_forward.38} parent=125 // pred_check
          %p554 = pneg %p141
        $region128: #{clip_forward.38} parent=125 // pred_check_branch
          %556 = sbr.rel (%p554) target = $region130
        $region129: #{clip_forward.38} parent=125 // pred_region
          %s557 = sand.u32 %s126, 1
          %s558 = sand.u32 %s126, 1
          %s559 = smul.addr %s558, 8
          %s560 = scalar_lea.vmem [#allocation4], %s559
        $region130: #{clip_forward.38} parent=125 // pred_fallthru
          _
      $region126: #{clip_forward.38} parent=5 // pred_fallthru
        _
    $region6: #{clip_forward.38} parent=1 // loop_footer
      %s13 = sadd.s32 1, %s9
    $region7: #{clip_forward.38} parent=1 // loop_footer_branch
      %8 = sbr.rel target = $region3
    $region8: #{clip_forward.38} parent=1 // loop_exit
      _

// kernel: clip_forward.39
$region0: #{clip_forward.39}
  #allocation0 [shape = 'u32[]', space=smem, size = 0x4, offset = 0x4, fixed_abs, tag = 'smem constant byte address 0x4 - core index']
  #allocation1 [shape = 'u32[144,128]{1,0:T(1,128)}', space=vmem, size = 0x12000, scoped, tag = 'internal scratch']
  %s0 = inlined_call_operand.vmem [shape: bf16[2,5,384], index: 0, kind: input, shape index: {}]
  %s1 = inlined_call_operand.vmem [shape: bf16[2,5,128], index: 1, kind: output, shape index: {}]
  %s2 = sld [smem:[#allocation0]]
  $region37: #{clip_forward.39} parent=0
    _
  %s4 = ssub.s32 1, %s2
  %s5 = scalar_select 0, %s4, %s2
  loop: start=0, step=1, limit=4
  $region2: #{clip_forward.39} parent=0 // loop_pre_header
    _
  $region3: #{clip_forward.39} parent=0 // loop_header
    %s7 = sphi 0, %s11
    %p8 = scmp.ge.s32.totalorder %s7, 4
    %s17 = sphi 0, %s19
    %s20 = sphi 0, %s17
    %s21 = sphi 0, %s20
    %s37 = sphi 0, %s21
    %s43 = sphi 0, %s45
    %s46 = sphi 0, %s43
    %s47 = sphi 0, %s46
    %s63 = sphi 0, %s47
  $region4: #{clip_forward.39} parent=0 // loop_header_branch
    %10 = sbr.rel (%p8) target = $region8
  $region5: #{clip_forward.39} parent=0 // loop_body
    %s12 = ssub.s32 %s7, 1
    %s13 = ssub.s32 %s7, 2
    %s14 = sadd.s32 %s7, 1
    %s15 = ssub.s32 %s7, %s14
    %p16 = scmp.eq.s32.totalorder %s15, 0
    %s18 = sadd.s32 %s17, 1
    %s19 = scalar_select %p16, %s17, %s18
    %p22 = pneg %p16
    %p23 = scmp.eq.s32.totalorder %s7, 1
    %p24 = por %p22, %p23
    %p25 = scmp.ne.s32.totalorder %s17, %s20
    %p26 = scmp.eq.s32.totalorder %s7, 0
    %p27 = por %p25, %p26
    %p28 = scmp.ne.s32.totalorder %s17, %s20
    %p29 = scmp.eq.s32.totalorder %s12, 1
    %p30 = por %p28, %p29
    %p31 = scmp.ne.s32.totalorder %s20, %s21
    %p32 = scmp.eq.s32.totalorder %s12, 0
    %p33 = por %p31, %p32
    %p34 = scmp.ne.s32.totalorder %s20, %s21
    %p35 = scmp.eq.s32.totalorder %s13, 1
    %p36 = por %p34, %p35
    %p38 = scmp.ne.s32.totalorder %s21, %s37
    %p39 = scmp.eq.s32.totalorder %s13, 0
    %p40 = por %p38, %p39
    %s41 = ssub.s32 %s7, %s14
    %p42 = scmp.eq.s32.totalorder %s41, 0
    %s44 = sadd.s32 %s43, 1
    %s45 = scalar_select %p42, %s43, %s44
    %p48 = pneg %p42
    %p49 = scmp.eq.s32.totalorder %s7, 1
    %p50 = por %p48, %p49
    %p51 = scmp.ne.s32.totalorder %s43, %s46
    %p52 = scmp.eq.s32.totalorder %s7, 0
    %p53 = por %p51, %p52
    %p54 = scmp.ne.s32.totalorder %s43, %s46
    %p55 = scmp.eq.s32.totalorder %s12, 1
    %p56 = por %p54, %p55
    %p57 = scmp.ne.s32.totalorder %s46, %s47
    %p58 = scmp.eq.s32.totalorder %s12, 0
    %p59 = por %p57, %p58
    %p60 = scmp.ne.s32.totalorder %s46, %s47
    %p61 = scmp.eq.s32.totalorder %s13, 1
    %p62 = por %p60, %p61
    %p64 = scmp.ne.s32.totalorder %s47, %s63
    %p65 = scmp.eq.s32.totalorder %s13, 0
    %p66 = por %p64, %p65
    %p67 = scmp.le.s32.totalorder 1, %s7
    %p68 = scmp.lt.s32.totalorder %s7, 3
    %p69 = pnand %p67, %p68
    %p70 = pneg %p69
    // Predicated region
    $region9: #{clip_forward.39} parent=5 // pred_check
      _
    $region10: #{clip_forward.39} parent=5 // pred_check_branch
      %72 = sbr.rel (%p69) target = $region12
    $region11: #{clip_forward.39} parent=5 // pred_region
      %s73 = ssub.s32 %s7, 1
    $region12: #{clip_forward.39} parent=5 // pred_fallthru
      _
    %p74 = scmp.lt.s32.totalorder %s7, 2
    // Predicated region
    $region13: #{clip_forward.39} parent=5 // pred_check
      %p75 = pneg %p74
    $region14: #{clip_forward.39} parent=5 // pred_check_branch
      %77 = sbr.rel (%p75) target = $region16
    $region15: #{clip_forward.39} parent=5 // pred_region
      // Predicated region
      $region17: #{clip_forward.39} parent=15 // pred_check
        %p78 = pneg %p27
      $region18: #{clip_forward.39} parent=15 // pred_check_branch
        %80 = sbr.rel (%p78) target = $region20
      $region19: #{clip_forward.39} parent=15 // pred_region
        %p81 = scmp.lt.s32.totalorder %s7, 1
        %s82 = scalar_select %p81, %s7, 1
        %s83 = smul.addr %s82, 3
        %s84 = smul.addr %s83, 4
        %s85 = scalar_lea.vmem %s0, %s84
      $region20: #{clip_forward.39} parent=15 // pred_fallthru
        _
    $region16: #{clip_forward.39} parent=5 // pred_fallthru
      _
    %p86 = scmp.le.s32.totalorder 1, %s7
    %p87 = scmp.lt.s32.totalorder %s7, 3
    %p88 = pnand %p86, %p87
    %p89 = pneg %p88
    // Predicated region
    $region21: #{clip_forward.39} parent=5 // pred_check
      _
    $region22: #{clip_forward.39} parent=5 // pred_check_branch
      %91 = sbr.rel (%p88) target = $region24
    $region23: #{clip_forward.39} parent=5 // pred_region
      %s92 = ssub.s32 %s7, 1
      %p93 = scmp.lt.s32.totalorder %s12, 1
      %s94 = scalar_select %p93, %s12, 1
      %s95 = smul.addr %s94, 3
      %s96 = smul.addr %s95, 4
      %s97 = scalar_lea.vmem %s0, %s96
      %p98 = pneg %p33
      %p99 = pneg %p30
      %p100 = pneg %p59
      %p101 = pneg %p56
      %p102 = scmp.lt.s32.totalorder %s12, 1
      %s103 = scalar_select %p102, %s12, 1
      %s104 = smul.addr %s103, 4
      %s105 = scalar_lea.vmem %s1, %s104
      %p106 = scmp.lt.s32.totalorder %s12, 1
      %s107 = scalar_select %p106, %s12, 1
      %s108 = smul.addr %s107, 3
      %s109 = smul.addr %s108, 4
      %s110 = scalar_lea.vmem %s0, %s109
      %p111 = scmp.lt.s32.totalorder %s12, 1
      %s112 = scalar_select %p111, %s12, 1
      %s113 = smul.addr %s112, 4
      %s114 = scalar_lea.vmem %s1, %s113
      %v116 = vld [vmem:[%s110] sm:$0x77]
      %v117 = vld [vmem:[%s110 + $0x8] sm:$0x7]
      %v119 = vunpack.c.h.b16 %v116
      %v120 = vpack.c.b16 %v119, %v119
      %vm121 = vcmask 523264
      %v123 = vsel %vm121, %v116, 0
      %v126 = vsel %vm121, %v120, 0
      %128 = vmatprep.subr.bf16.mxu0 0
      %129 = vmatpush1.bf16.xpose.msra.mxu0 0
      %130 = vmatprep.subr.bf16.mxu0 0
      %131 = vmatpush1.bf16.xpose.msra.mxu0 0
      %132 = vmatprep.subr.bf16.mxu0 0
      %133 = vmatpush1.bf16.xpose.msra.mxu0 0
      %134 = vmatprep.subr.bf16.mxu0 0
      %135 = vmatpush1.bf16.xpose.msra.mxu0 0
      %136 = vmatprep.subr.bf16.mxu0 0
      %137 = vmatpush1.bf16.xpose.msra.mxu0 0
      %138 = vmatprep.subr.bf16.mxu0 0
      %139 = vmatpush1.bf16.xpose.msra.mxu0 0
      %140 = vmatprep.subr.bf16.mxu0 0
      %141 = vmatpush1.bf16.xpose.msra.mxu0 0
      %142 = vmatprep.subr.bf16.mxu0 0
      %143 = vmatpush1.bf16.xpose.msra.mxu0 %v126
      %144 = vmatprep.subr.bf16.mxu0 0
      %145 = vmatpush2.bf16.xpose.msra.mxu0 0
      %146 = vmatprep.subr.bf16.mxu0 0
      %147 = vmatpush2.bf16.xpose.msra.mxu0 0
      %148 = vmatprep.subr.bf16.mxu0 0
      %149 = vmatpush2.bf16.xpose.msra.mxu0 0
      %150 = vmatprep.subr.bf16.mxu0 0
      %151 = vmatpush2.bf16.xpose.msra.mxu0 0
      %152 = vmatprep.subr.bf16.mxu0 0
      %153 = vmatpush2.bf16.xpose.msra.mxu0 0
      %154 = vmatprep.subr.bf16.mxu0 0
      %155 = vmatpush2.bf16.xpose.msra.mxu0 0
      %156 = vmatprep.subr.bf16.mxu0 0
      %157 = vmatpush2.bf16.xpose.msra.mxu0 0
      %158 = vmatprep.subr.bf16.mxu0 0
      %159 = vmatpush2.bf16.xpose.msra.mxu0 0
      %160 = vmatprep.mubr.bf16.mxu0 0
      %161 = vmatmul.mubr.bf16.gmra.mxu0 %v123
      %v162 = vpop.f32.mrf.mxu0
      %v163 = vadd.f32 0.0, %v162
      %v164 = vpop.f32.mrf.mxu0
      %v165 = vpop.f32.mrf.mxu0
      %v166 = vpop.f32.mrf.mxu0
      %167 = vdwg.mxu0
      %v168 = vmul.f32 %v163, 0.125
      %vm169 = vcmask 36864
      %v170 = vsel %vm169, %v168, -inf
      %171 = vmax.xlane.f32.xlu0 %v170
      %v172 = vpop.xlane.xlu0 %171
      %v173 = vsub.f32 %v168, %v172
      %v174 = vmul.f32 %v173, 1.442695
      %v175 = vpow.pop %v174
      %v176 = vsel %vm169, %v175, 0.0
      %177 = vadd.xlane.f32.xlu0 %v176
      %v178 = vpop.xlane.xlu0 %177
      %v179 = vrcp.pop %v178
      %v180 = vmul.f32 %v175, %v179
      %v181 = vpack.c.bf16 %v180, %v180
      %vm182 = vcmask 39936
      %v184 = vsel %vm182, %v181, 0
      %vm186 = vcmask 1041408
      %vm187 = vcmask 1042432
      %v188 = vsel %vm186, 4294967295, 65535
      %v189 = vsel %vm187, %v188, 0
      %v191 = vand.u32 %v117, %v189
      %193 = vmatprep.subr.bf16.mxu0 0
      %194 = vmatpush1.bf16.msra.mxu0 0
      %195 = vmatprep.subr.bf16.mxu0 0
      %196 = vmatpush1.bf16.msra.mxu0 0
      %197 = vmatprep.subr.bf16.mxu0 0
      %198 = vmatpush1.bf16.msra.mxu0 0
      %199 = vmatprep.subr.bf16.mxu0 0
      %200 = vmatpush1.bf16.msra.mxu0 0
      %201 = vmatprep.subr.bf16.mxu0 0
      %202 = vmatpush1.bf16.msra.mxu0 0
      %203 = vmatprep.subr.bf16.mxu0 0
      %204 = vmatpush1.bf16.msra.mxu0 0
      %205 = vmatprep.subr.bf16.mxu0 0
      %206 = vmatpush1.bf16.msra.mxu0 0
      %207 = vmatprep.subr.bf16.mxu0 0
      %208 = vmatpush1.bf16.msra.mxu0 %v191
      %209 = vmatprep.subr.bf16.mxu0 0
      %210 = vmatpush2.bf16.msra.mxu0 0
      %211 = vmatprep.subr.bf16.mxu0 0
      %212 = vmatpush2.bf16.msra.mxu0 0
      %213 = vmatprep.subr.bf16.mxu0 0
      %214 = vmatpush2.bf16.msra.mxu0 0
      %215 = vmatprep.subr.bf16.mxu0 0
      %216 = vmatpush2.bf16.msra.mxu0 0
      %217 = vmatprep.subr.bf16.mxu0 0
      %218 = vmatpush2.bf16.msra.mxu0 0
      %219 = vmatprep.subr.bf16.mxu0 0
      %220 = vmatpush2.bf16.msra.mxu0 0
      %221 = vmatprep.subr.bf16.mxu0 0
      %222 = vmatpush2.bf16.msra.mxu0 0
      %223 = vmatprep.subr.bf16.mxu0 0
      %224 = vmatpush2.bf16.msra.mxu0 0
      %225 = vmatprep.mubr.bf16.mxu0 0
      %226 = vmatmul.mubr.bf16.gmra.mxu0 %v184
      %v227 = vpop.f32.mrf.mxu0
      %v228 = vadd.f32 0.0, %v227
      %v229 = vpop.f32.mrf.mxu0
      %v230 = vpop.f32.mrf.mxu0
      %v231 = vpop.f32.mrf.mxu0
      %232 = vdwg.mxu0
      %v233 = vunpack.c.l.b16 %v116
      %v234 = vpack.c.b16 %v233, %v233
      %235 = vrot.lane.b32.xlu0 %v234, 64
      %v236 = vpop.permute.xlu0 %235
      %237 = vrot.lane.b32.xlu0 %v120, 64
      %v238 = vpop.permute.xlu0 %237
      %v240 = vsel %vm121, %v236, 0
      %v243 = vsel %vm121, %v238, 0
      %245 = vmatprep.subr.bf16.mxu0 0
      %246 = vmatpush1.bf16.xpose.msra.mxu0 0
      %247 = vmatprep.subr.bf16.mxu0 0
      %248 = vmatpush1.bf16.xpose.msra.mxu0 0
      %249 = vmatprep.subr.bf16.mxu0 0
      %250 = vmatpush1.bf16.xpose.msra.mxu0 0
      %251 = vmatprep.subr.bf16.mxu0 0
      %252 = vmatpush1.bf16.xpose.msra.mxu0 0
      %253 = vmatprep.subr.bf16.mxu0 0
      %254 = vmatpush1.bf16.xpose.msra.mxu0 0
      %255 = vmatprep.subr.bf16.mxu0 0
      %256 = vmatpush1.bf16.xpose.msra.mxu0 0
      %257 = vmatprep.subr.bf16.mxu0 0
      %258 = vmatpush1.bf16.xpose.msra.mxu0 0
      %259 = vmatprep.subr.bf16.mxu0 0
      %260 = vmatpush1.bf16.xpose.msra.mxu0 %v243
      %261 = vmatprep.subr.bf16.mxu0 0
      %262 = vmatpush2.bf16.xpose.msra.mxu0 0
      %263 = vmatprep.subr.bf16.mxu0 0
      %264 = vmatpush2.bf16.xpose.msra.mxu0 0
      %265 = vmatprep.subr.bf16.mxu0 0
      %266 = vmatpush2.bf16.xpose.msra.mxu0 0
      %267 = vmatprep.subr.bf16.mxu0 0
      %268 = vmatpush2.bf16.xpose.msra.mxu0 0
      %269 = vmatprep.subr.bf16.mxu0 0
      %270 = vmatpush2.bf16.xpose.msra.mxu0 0
      %271 = vmatprep.subr.bf16.mxu0 0
      %272 = vmatpush2.bf16.xpose.msra.mxu0 0
      %273 = vmatprep.subr.bf16.mxu0 0
      %274 = vmatpush2.bf16.xpose.msra.mxu0 0
      %275 = vmatprep.subr.bf16.mxu0 0
      %276 = vmatpush2.bf16.xpose.msra.mxu0 0
      %277 = vmatprep.mubr.bf16.mxu0 0
      %278 = vmatmul.mubr.bf16.gmra.mxu0 %v240
      %v279 = vpop.f32.mrf.mxu0
      %v280 = vadd.f32 0.0, %v279
      %v281 = vpop.f32.mrf.mxu0
      %v282 = vpop.f32.mrf.mxu0
      %v283 = vpop.f32.mrf.mxu0
      %284 = vdwg.mxu0
      %v285 = vmul.f32 %v280, 0.125
      %v286 = vsel %vm169, %v285, -inf
      %287 = vmax.xlane.f32.xlu0 %v286
      %v288 = vpop.xlane.xlu0 %287
      %v289 = vsub.f32 %v285, %v288
      %v290 = vmul.f32 %v289, 1.442695
      %v291 = vpow.pop %v290
      %v292 = vsel %vm169, %v291, 0.0
      %293 = vadd.xlane.f32.xlu0 %v292
      %v294 = vpop.xlane.xlu0 %293
      %v295 = vrcp.pop %v294
      %v296 = vmul.f32 %v291, %v295
      %v297 = vpack.c.bf16 %v296, %v296
      %v299 = vunpack.c.l.b16 %v117
      %v300 = vpack.c.b16 %v299, %v299
      %301 = vrot.lane.b32.xlu0 %v300, 64
      %v302 = vpop.permute.xlu0 %301
      %v304 = vsel %vm182, %v297, 0
      %v307 = vand.u32 %v302, %v189
      %309 = vmatprep.subr.bf16.mxu0 0
      %310 = vmatpush1.bf16.msra.mxu0 0
      %311 = vmatprep.subr.bf16.mxu0 0
      %312 = vmatpush1.bf16.msra.mxu0 0
      %313 = vmatprep.subr.bf16.mxu0 0
      %314 = vmatpush1.bf16.msra.mxu0 0
      %315 = vmatprep.subr.bf16.mxu0 0
      %316 = vmatpush1.bf16.msra.mxu0 0
      %317 = vmatprep.subr.bf16.mxu0 0
      %318 = vmatpush1.bf16.msra.mxu0 0
      %319 = vmatprep.subr.bf16.mxu0 0
      %320 = vmatpush1.bf16.msra.mxu0 0
      %321 = vmatprep.subr.bf16.mxu0 0
      %322 = vmatpush1.bf16.msra.mxu0 0
      %323 = vmatprep.subr.bf16.mxu0 0
      %324 = vmatpush1.bf16.msra.mxu0 %v307
      %325 = vmatprep.subr.bf16.mxu0 0
      %326 = vmatpush2.bf16.msra.mxu0 0
      %327 = vmatprep.subr.bf16.mxu0 0
      %328 = vmatpush2.bf16.msra.mxu0 0
      %329 = vmatprep.subr.bf16.mxu0 0
      %330 = vmatpush2.bf16.msra.mxu0 0
      %331 = vmatprep.subr.bf16.mxu0 0
      %332 = vmatpush2.bf16.msra.mxu0 0
      %333 = vmatprep.subr.bf16.mxu0 0
      %334 = vmatpush2.bf16.msra.mxu0 0
      %335 = vmatprep.subr.bf16.mxu0 0
      %336 = vmatpush2.bf16.msra.mxu0 0
      %337 = vmatprep.subr.bf16.mxu0 0
      %338 = vmatpush2.bf16.msra.mxu0 0
      %339 = vmatprep.subr.bf16.mxu0 0
      %340 = vmatpush2.bf16.msra.mxu0 0
      %341 = vmatprep.mubr.bf16.mxu0 0
      %342 = vmatmul.mubr.bf16.gmra.mxu0 %v304
      %v343 = vpop.f32.mrf.mxu0
      %v344 = vadd.f32 0.0, %v343
      %v345 = vpop.f32.mrf.mxu0
      %v346 = vpop.f32.mrf.mxu0
      %v347 = vpop.f32.mrf.mxu0
      %348 = vdwg.mxu0
      %350 = vrot.lane.b32.xlu0 %v344, 64
      %v351 = vpop.permute.xlu0 %350
      %v353 = vsel %vm121, %v228, %v351
      %v354 = vpack.c.bf16 %v353, %v353
      %vm355 = vcmask 1042432
      %vm356 = vsmask.f32 2304
      %vm357 = vmand %vm355, %vm356
      %v358 = vld [vmem:[%s114] sm:$0x7]
      %v359 = vsel %vm357, %v354, %v358
      %360 = vst [vmem:[%s114] sm:$0x7] %v359
      %p361 = scmp.lt.s32.totalorder %s12, 1
      %s362 = scalar_select %p361, %s12, 1
      %s363 = smul.addr %s362, 4
      %s364 = scalar_lea.vmem %s1, %s363
      // Predicated region
      $region25: #{clip_forward.39} parent=23 // pred_check
        %p365 = pneg %p56
      $region26: #{clip_forward.39} parent=23 // pred_check_branch
        %367 = sbr.rel (%p365) target = $region28
      $region27: #{clip_forward.39} parent=23 // pred_region
        _
      $region28: #{clip_forward.39} parent=23 // pred_fallthru
        _
    $region24: #{clip_forward.39} parent=5 // pred_fallthru
      _
    %p368 = scmp.le.s32.totalorder 2, %s7
    // Predicated region
    $region29: #{clip_forward.39} parent=5 // pred_check
      %p369 = pneg %p368
    $region30: #{clip_forward.39} parent=5 // pred_check_branch
      %371 = sbr.rel (%p369) target = $region32
    $region31: #{clip_forward.39} parent=5 // pred_region
      %s372 = ssub.s32 %s7, 2
      // Predicated region
      $region33: #{clip_forward.39} parent=31 // pred_check
        %p373 = pneg %p62
      $region34: #{clip_forward.39} parent=31 // pred_check_branch
        %375 = sbr.rel (%p373) target = $region36
      $region35: #{clip_forward.39} parent=31 // pred_region
        %p376 = scmp.lt.s32.totalorder %s13, 1
        %s377 = scalar_select %p376, %s13, 1
        %s378 = smul.addr %s377, 4
        %s379 = scalar_lea.vmem %s1, %s378
      $region36: #{clip_forward.39} parent=31 // pred_fallthru
        _
    $region32: #{clip_forward.39} parent=5 // pred_fallthru
      _
  $region6: #{clip_forward.39} parent=0 // loop_footer
    %s11 = sadd.s32 1, %s7
  $region7: #{clip_forward.39} parent=0 // loop_footer_branch
    %6 = sbr.rel target = $region3
  $region8: #{clip_forward.39} parent=0 // loop_exit
    _

// kernel: clip_forward.40
$region0: #{clip_forward.40}
  #allocation0 [shape = 'u32[]', space=smem, size = 0x4, offset = 0x4, fixed_abs, tag = 'smem constant byte address 0x4 - core index']
  #allocation1 [shape = 'u32[144,128]{1,0:T(1,128)}', space=vmem, size = 0x12000, scoped, tag = 'internal scratch']
  #allocation2 [shape = 'f32[10,128]{1,0:T(8,128)}', space=vmem, size = 0x2000, scoped, tag = 'scratch operand']
  %s0 = inlined_call_operand.vmem [shape: bf16[10,128], index: 0, kind: input, shape index: {}]
  %s1 = inlined_call_operand.vmem [shape: bf16[128,128], index: 1, kind: input, shape index: {}]
  %s2 = inlined_call_operand.vmem [shape: bf16[1,128], index: 2, kind: input, shape index: {}]
  %s3 = inlined_call_operand.vmem [shape: bf16[10,128], index: 3, kind: input, shape index: {}]
  %s4 = inlined_call_operand.vmem [shape: bf16[10,128], index: 4, kind: output, shape index: {}]
  %s5 = sld [smem:[#allocation0]]
  $region34: #{clip_forward.40} parent=0
    _
  %s7 = ssub.s32 1, %s5
  %s8 = scalar_select 0, %s7, %s5
  // Predicated region
  $region2: #{clip_forward.40} parent=0 // pred_check
    _
  $region3: #{clip_forward.40} parent=0 // pred_check_branch
    %10 = sbr.rel (0) target = $region5
  $region4: #{clip_forward.40} parent=0 // pred_region
    _
  $region5: #{clip_forward.40} parent=0 // pred_fallthru
    _
  // Predicated region
  $region6: #{clip_forward.40} parent=0 // pred_check
    _
  $region7: #{clip_forward.40} parent=0 // pred_check_branch
    %12 = sbr.rel (0) target = $region9
  $region8: #{clip_forward.40} parent=0 // pred_region
    _
  $region9: #{clip_forward.40} parent=0 // pred_fallthru
    _
  // Predicated region
  $region10: #{clip_forward.40} parent=0 // pred_check
    _
  $region11: #{clip_forward.40} parent=0 // pred_check_branch
    %14 = sbr.rel (0) target = $region13
  $region12: #{clip_forward.40} parent=0 // pred_region
    _
  $region13: #{clip_forward.40} parent=0 // pred_fallthru
    _
  // Predicated region
  $region14: #{clip_forward.40} parent=0 // pred_check
    _
  $region15: #{clip_forward.40} parent=0 // pred_check_branch
    %16 = sbr.rel (0) target = $region17
  $region16: #{clip_forward.40} parent=0 // pred_region
    _
  $region17: #{clip_forward.40} parent=0 // pred_fallthru
    _
  %p18 = scmp.eq.s32.totalorder 0, 0
  // Predicated region
  $region18: #{clip_forward.40} parent=0 // pred_check
    %p19 = pneg %p18
  $region19: #{clip_forward.40} parent=0 // pred_check_branch
    %21 = sbr.rel (%p19) target = $region21
  $region20: #{clip_forward.40} parent=0 // pred_region
    %22 = vst [vmem:[#allocation2] sm:$0xff] 0.0
    %23 = vst [vmem:[#allocation2 + $0x8] sm:$0x3] 0.0
  $region21: #{clip_forward.40} parent=0 // pred_fallthru
    _
  %v24 = vld [vmem:[#allocation2] sm:$0xff]
  %v25 = vld [vmem:[#allocation2 + $0x8] sm:$0x3]
  %v26 = vld [vmem:[%s0] sm:$0xf]
  %v27 = vld [vmem:[%s0 + $0x4] sm:$0x1]
  %v28 = vld [vmem:[%s1] sm:$0xf]
  %v29 = vld [vmem:[%s1 + $0x4] sm:$0xf]
  %v30 = vld [vmem:[%s1 + $0x8] sm:$0xf]
  %v31 = vld [vmem:[%s1 + $0xc] sm:$0xf]
  %v32 = vld [vmem:[%s1 + $0x10] sm:$0xf]
  %v33 = vld [vmem:[%s1 + $0x14] sm:$0xf]
  %v34 = vld [vmem:[%s1 + $0x18] sm:$0xf]
  %v35 = vld [vmem:[%s1 + $0x1c] sm:$0xf]
  %v36 = vld [vmem:[%s1 + $0x20] sm:$0xf]
  %v37 = vld [vmem:[%s1 + $0x24] sm:$0xf]
  %v38 = vld [vmem:[%s1 + $0x28] sm:$0xf]
  %v39 = vld [vmem:[%s1 + $0x2c] sm:$0xf]
  %v40 = vld [vmem:[%s1 + $0x30] sm:$0xf]
  %v41 = vld [vmem:[%s1 + $0x34] sm:$0xf]
  %v42 = vld [vmem:[%s1 + $0x38] sm:$0xf]
  %v43 = vld [vmem:[%s1 + $0x3c] sm:$0xf]
  %v46 = vunpack.c.l.b16 %v26
  %v47 = vunpack.c.l.b16 %v27
  %v48 = vpack.c.b16 %v47, %v46
  %v66 = vunpack.c.l.b16 %v28
  %v67 = vunpack.c.l.b16 %v29
  %v68 = vunpack.c.l.b16 %v30
  %v69 = vunpack.c.l.b16 %v31
  %v70 = vunpack.c.l.b16 %v32
  %v71 = vunpack.c.l.b16 %v33
  %v72 = vunpack.c.l.b16 %v34
  %v73 = vunpack.c.l.b16 %v35
  %v74 = vunpack.c.l.b16 %v36
  %v75 = vunpack.c.l.b16 %v37
  %v76 = vunpack.c.l.b16 %v38
  %v77 = vunpack.c.l.b16 %v39
  %v78 = vunpack.c.l.b16 %v40
  %v79 = vunpack.c.l.b16 %v41
  %v80 = vunpack.c.l.b16 %v42
  %v81 = vunpack.c.l.b16 %v43
  %v82 = vpack.c.b16 %v67, %v66
  %v83 = vpack.c.b16 %v69, %v68
  %v84 = vpack.c.b16 %v71, %v70
  %v85 = vpack.c.b16 %v73, %v72
  %v86 = vpack.c.b16 %v75, %v74
  %v87 = vpack.c.b16 %v77, %v76
  %v88 = vpack.c.b16 %v79, %v78
  %v89 = vpack.c.b16 %v81, %v80
  %98 = vmatprep.subr.bf16.mxu0 0
  %99 = vmatpush1.bf16.msra.mxu0 %v89
  %100 = vmatprep.subr.bf16.mxu0 0
  %101 = vmatpush1.bf16.msra.mxu0 %v88
  %102 = vmatprep.subr.bf16.mxu0 0
  %103 = vmatpush1.bf16.msra.mxu0 %v87
  %104 = vmatprep.subr.bf16.mxu0 0
  %105 = vmatpush1.bf16.msra.mxu0 %v86
  %106 = vmatprep.subr.bf16.mxu0 0
  %107 = vmatpush1.bf16.msra.mxu0 %v85
  %108 = vmatprep.subr.bf16.mxu0 0
  %109 = vmatpush1.bf16.msra.mxu0 %v84
  %110 = vmatprep.subr.bf16.mxu0 0
  %111 = vmatpush1.bf16.msra.mxu0 %v83
  %112 = vmatprep.subr.bf16.mxu0 0
  %113 = vmatpush1.bf16.msra.mxu0 %v82
  %114 = vmatprep.subr.bf16.mxu0 0
  %115 = vmatpush2.bf16.msra.mxu0 0
  %116 = vmatprep.subr.bf16.mxu0 0
  %117 = vmatpush2.bf16.msra.mxu0 0
  %118 = vmatprep.subr.bf16.mxu0 0
  %119 = vmatpush2.bf16.msra.mxu0 0
  %120 = vmatprep.subr.bf16.mxu0 0
  %121 = vmatpush2.bf16.msra.mxu0 0
  %122 = vmatprep.subr.bf16.mxu0 0
  %123 = vmatpush2.bf16.msra.mxu0 0
  %124 = vmatprep.subr.bf16.mxu0 0
  %125 = vmatpush2.bf16.msra.mxu0 0
  %126 = vmatprep.subr.bf16.mxu0 0
  %127 = vmatpush2.bf16.msra.mxu0 0
  %128 = vmatprep.subr.bf16.mxu0 0
  %129 = vmatpush2.bf16.msra.mxu0 0
  %130 = vmatprep.mubr.bf16.mxu0 0
  %131 = vmatmul.mubr.bf16.gmra.mxu0 %v48
  %v132 = vpop.f32.mrf.mxu0
  %v133 = vadd.f32 0.0, %v132
  %v134 = vpop.f32.mrf.mxu0
  %v135 = vpop.f32.mrf.mxu0
  %v136 = vadd.f32 0.0, %v135
  %v137 = vpop.f32.mrf.mxu0
  %138 = vdwg.mxu0
  %v139 = vadd.f32 %v24, %v133
  %v140 = vadd.f32 %v25, %v136
  %141 = vst [vmem:[#allocation2] sm:$0xff] %v139
  %142 = vst [vmem:[#allocation2 + $0x8] sm:$0x3] %v140
  // Predicated region
  $region22: #{clip_forward.40} parent=0 // pred_check
    %p143 = pneg %p18
  $region23: #{clip_forward.40} parent=0 // pred_check_branch
    %145 = sbr.rel (%p143) target = $region25
  $region24: #{clip_forward.40} parent=0 // pred_region
    %v146 = vld [vmem:[#allocation2] sm:$0xff]
    %v147 = vld [vmem:[#allocation2 + $0x8] sm:$0x3]
    %v148 = vld [vmem:[%s2] sm:$0x1]
    %v149 = vunpack.c.l.bf16 %v148
    %v150 = vlaneseq
    %v151 = vshrl.u32 %v150, 7
    %v152 = vsub.s32 0, %v151
    %v153 = vrot.slane %v149, %v152
    %v154 = vadd.f32 %v146, %v153
    %v155 = vadd.f32 %v147, %v153
    %v156 = vld [vmem:[%s3] sm:$0xf]
    %v157 = vld [vmem:[%s3 + $0x4] sm:$0x1]
    %v158 = vunpack.c.l.bf16 %v156
    %v159 = vunpack.c.l.bf16 %v157
    %v160 = vadd.f32 %v154, %v158
    %v161 = vadd.f32 %v155, %v159
    %v162 = vpack.c.bf16 %v161, %v160
    %v164 = vunpack.c.l.b16 %v162
    %v165 = vunpack.c.h.b16 %v162
    %v166 = vpack.c.b16 %v164, %v164
    %v167 = vpack.c.b16 %v165, %v165
    %170 = vst [vmem:[%s4] sm:$0xf] %v166
    %171 = vst [vmem:[%s4 + $0x4] sm:$0x1] %v167
  $region25: #{clip_forward.40} parent=0 // pred_fallthru
    _
  // Predicated region
  $region26: #{clip_forward.40} parent=0 // pred_check
    _
  $region27: #{clip_forward.40} parent=0 // pred_check_branch
    %173 = sbr.rel (0) target = $region29
  $region28: #{clip_forward.40} parent=0 // pred_region
    _
  $region29: #{clip_forward.40} parent=0 // pred_fallthru
    _
  // Predicated region
  $region30: #{clip_forward.40} parent=0 // pred_check
    _
  $region31: #{clip_forward.40} parent=0 // pred_check_branch
    %175 = sbr.rel (0) target = $region33
  $region32: #{clip_forward.40} parent=0 // pred_region
    _
  $region33: #{clip_forward.40} parent=0 // pred_fallthru
    _

// kernel: clip_forward.51
$region0: #{clip_forward.51}
  #allocation0 [shape = 'u32[]', space=smem, size = 0x4, offset = 0x4, fixed_abs, tag = 'smem constant byte address 0x4 - core index']
  #allocation1 [shape = 'u32[144,128]{1,0:T(1,128)}', space=vmem, size = 0x12000, scoped, tag = 'internal scratch']
  %s0 = inlined_call_operand.vmem [shape: bf16[2,128], index: 0, kind: input, shape index: {}]
  %s1 = inlined_call_operand.vmem [shape: f32[1,128], index: 1, kind: input, shape index: {}]
  %s2 = inlined_call_operand.vmem [shape: f32[1,128], index: 2, kind: input, shape index: {}]
  %s3 = inlined_call_operand.vmem [shape: bf16[2,128], index: 3, kind: output, shape index: {}]
  %s4 = sld [smem:[#allocation0]]
  $region22: #{clip_forward.51} parent=0
    _
  %s6 = ssub.s32 1, %s4
  %s7 = scalar_select 0, %s6, %s4
  // Predicated region
  $region2: #{clip_forward.51} parent=0 // pred_check
    _
  $region3: #{clip_forward.51} parent=0 // pred_check_branch
    %9 = sbr.rel (0) target = $region5
  $region4: #{clip_forward.51} parent=0 // pred_region
    _
  $region5: #{clip_forward.51} parent=0 // pred_fallthru
    _
  // Predicated region
  $region6: #{clip_forward.51} parent=0 // pred_check
    _
  $region7: #{clip_forward.51} parent=0 // pred_check_branch
    %11 = sbr.rel (0) target = $region9
  $region8: #{clip_forward.51} parent=0 // pred_region
    _
  $region9: #{clip_forward.51} parent=0 // pred_fallthru
    _
  // Predicated region
  $region10: #{clip_forward.51} parent=0 // pred_check
    _
  $region11: #{clip_forward.51} parent=0 // pred_check_branch
    %13 = sbr.rel (0) target = $region13
  $region12: #{clip_forward.51} parent=0 // pred_region
    _
  $region13: #{clip_forward.51} parent=0 // pred_fallthru
    _
  %v14 = vld [vmem:[%s0] sm:$0x1]
  %v15 = vunpack.c.l.bf16 %v14
  %vm16 = vcmask 1041408
  %v17 = vsel %vm16, %v15, 0.0
  %18 = vadd.xlane.f32.xlu0 %v17
  %v19 = vpop.xlane.xlu0 %18
  %v20 = vrcp.pop 128.0
  %v21 = vmul.f32 %v19, %v20
  %v22 = vsub.f32 %v15, %v21
  %v23 = vmul.f32 %v22, %v22
  %v24 = vsel %vm16, %v23, 0.0
  %25 = vadd.xlane.f32.xlu0 %v24
  %v26 = vpop.xlane.xlu0 %25
  %v27 = vmul.f32 %v26, %v20
  %v28 = vadd.f32 %v27, 1e-05
  %v29 = vrsqrt.pop %v28
  %v30 = vmul.f32 %v22, %v29
  %v31 = vld [vmem:[%s1] sm:$0x1]
  %v33 = vlaneseq
  %v34 = vshrl.u32 %v33, 7
  %v35 = vsub.s32 0, %v34
  %v36 = vrot.slane %v31, %v35
  %v38 = vmul.f32 %v30, %v36
  %v39 = vld [vmem:[%s2] sm:$0x1]
  %v41 = vlaneseq
  %v42 = vshrl.u32 %v41, 7
  %v43 = vsub.s32 0, %v42
  %v44 = vrot.slane %v39, %v43
  %v46 = vadd.f32 %v38, %v44
  %v47 = vpack.c.bf16 %v46, %v46
  %48 = vst [vmem:[%s3] sm:$0x1] %v47
  // Predicated region
  $region14: #{clip_forward.51} parent=0 // pred_check
    _
  $region15: #{clip_forward.51} parent=0 // pred_check_branch
    %50 = sbr.rel (0) target = $region17
  $region16: #{clip_forward.51} parent=0 // pred_region
    _
  $region17: #{clip_forward.51} parent=0 // pred_fallthru
    _
  // Predicated region
  $region18: #{clip_forward.51} parent=0 // pred_check
    _
  $region19: #{clip_forward.51} parent=0 // pred_check_branch
    %52 = sbr.rel (0) target = $region21
  $region20: #{clip_forward.51} parent=0 // pred_region
    _
  $region21: #{clip_forward.51} parent=0 // pred_fallthru
    _

// kernel: clip_forward.42
$region0: #{clip_forward.42}
  #allocation0 [shape = 'u32[]', space=smem, size = 0x4, offset = 0x4, fixed_abs, tag = 'smem constant byte address 0x4 - core index']
  #allocation1 [shape = 'u32[144,128]{1,0:T(1,128)}', space=vmem, size = 0x12000, scoped, tag = 'internal scratch']
  #allocation2 [shape = 'f32[10,256]{1,0:T(8,128)}', space=vmem, size = 0x4000, scoped, tag = 'scratch operand']
  %s0 = inlined_call_operand.vmem [shape: bf16[10,128], index: 0, kind: input, shape index: {}]
  %s1 = inlined_call_operand.vmem [shape: bf16[128,512], index: 1, kind: input, shape index: {}]
  %s2 = inlined_call_operand.vmem [shape: bf16[1,512], index: 2, kind: input, shape index: {}]
  %s3 = inlined_call_operand.vmem [shape: bf16[10,512], index: 3, kind: output, shape index: {}]
  %s4 = sld [smem:[#allocation0]]
  $region125: #{clip_forward.42} parent=0
    _
  %s6 = ssub.s32 1, %s4
  %s7 = scalar_select 0, %s6, %s4
  $region1: #{clip_forward.42} parent=0
    #allocation3 [shape = 'u8[131072]{0}', space=vmem, size = 0x20000, scoped, tag = 'input window, operand 1']
    #allocation4 [shape = 'u8[16384]{0}', space=vmem, size = 0x4000, scoped, tag = 'output window, operand 0']
    loop: start=0, step=1, limit=4
    $region2: #{clip_forward.42} parent=1 // loop_pre_header
      _
    $region3: #{clip_forward.42} parent=1 // loop_header
      %s9 = sphi 0, %s13
      %p10 = scmp.ge.s32.totalorder %s9, 4
      %s16 = sphi 0, %s35
      %s17 = sphi 0, %s31
      %s18 = sphi 0, %s27
      %s19 = sphi 0, %s16
      %s20 = sphi 0, %s17
      %s21 = sphi 0, %s18
      %s22 = sphi 0, %s19
      %s23 = sphi 0, %s20
      %s24 = sphi 0, %s21
      %s40 = sphi 0, %s42
      %s43 = sphi 0, %s40
      %s44 = sphi 0, %s43
      %s60 = sphi 0, %s44
      %s68 = sphi 0, %s70
      %s71 = sphi 0, %s68
      %s72 = sphi 0, %s71
      %s88 = sphi 0, %s72
      %s94 = sphi 0, %s96
      %s97 = sphi 0, %s94
      %s98 = sphi 0, %s97
      %s114 = sphi 0, %s98
      %s122 = sphi 0, %s124
      %s125 = sphi 0, %s122
      %s126 = sphi 0, %s125
      %s142 = sphi 0, %s126
    $region4: #{clip_forward.42} parent=1 // loop_header_branch
      %12 = sbr.rel (%p10) target = $region8
    $region5: #{clip_forward.42} parent=1 // loop_body
      %s14 = ssub.s32 %s9, 1
      %s15 = ssub.s32 %s9, 2
      %s25 = sadd.s32 1, %s18
      %p26 = scmp.ge.s32.totalorder %s25, 1
      %s27 = scalar_select %p26, 0, %s25
      %s28 = sadd.s32 1, %s17
      %s29 = scalar_select %p26, %s28, %s17
      %p30 = scmp.ge.s32.totalorder %s29, 2
      %s31 = scalar_select %p30, 0, %s29
      %s32 = sadd.s32 1, %s16
      %s33 = scalar_select %p30, %s32, %s16
      %p34 = scmp.ge.s32.totalorder %s33, 1
      %s35 = scalar_select %p34, 0, %s33
      %s36 = ssub.s32 %s16, %s35
      %s37 = ssub.s32 %s18, %s27
      %s38 = sor.u32 %s36, %s37
      %p39 = scmp.eq.s32.totalorder %s38, 0
      %s41 = sadd.s32 %s40, 1
      %s42 = scalar_select %p39, %s40, %s41
      %p45 = pneg %p39
      %p46 = scmp.eq.s32.totalorder %s9, 1
      %p47 = por %p45, %p46
      %p48 = scmp.ne.s32.totalorder %s40, %s43
      %p49 = scmp.eq.s32.totalorder %s9, 0
      %p50 = por %p48, %p49
      %p51 = scmp.ne.s32.totalorder %s40, %s43
      %p52 = scmp.eq.s32.totalorder %s14, 1
      %p53 = por %p51, %p52
      %p54 = scmp.ne.s32.totalorder %s43, %s44
      %p55 = scmp.eq.s32.totalorder %s14, 0
      %p56 = por %p54, %p55
      %p57 = scmp.ne.s32.totalorder %s43, %s44
      %p58 = scmp.eq.s32.totalorder %s15, 1
      %p59 = por %p57, %p58
      %p61 = scmp.ne.s32.totalorder %s44, %s60
      %p62 = scmp.eq.s32.totalorder %s15, 0
      %p63 = por %p61, %p62
      %s64 = ssub.s32 %s18, %s27
      %s65 = ssub.s32 %s17, %s31
      %s66 = sor.u32 %s64, %s65
      %p67 = scmp.eq.s32.totalorder %s66, 0
      %s69 = sadd.s32 %s68, 1
      %s70 = scalar_select %p67, %s68, %s69
      %p73 = pneg %p67
      %p74 = scmp.eq.s32.totalorder %s9, 1
      %p75 = por %p73, %p74
      %p76 = scmp.ne.s32.totalorder %s68, %s71
      %p77 = scmp.eq.s32.totalorder %s9, 0
      %p78 = por %p76, %p77
      %p79 = scmp.ne.s32.totalorder %s68, %s71
      %p80 = scmp.eq.s32.totalorder %s14, 1
      %p81 = por %p79, %p80
      %p82 = scmp.ne.s32.totalorder %s71, %s72
      %p83 = scmp.eq.s32.totalorder %s14, 0
      %p84 = por %p82, %p83
      %p85 = scmp.ne.s32.totalorder %s71, %s72
      %p86 = scmp.eq.s32.totalorder %s15, 1
      %p87 = por %p85, %p86
      %p89 = scmp.ne.s32.totalorder %s72, %s88
      %p90 = scmp.eq.s32.totalorder %s15, 0
      %p91 = por %p89, %p90
      %s92 = ssub.s32 %s17, %s31
      %p93 = scmp.eq.s32.totalorder %s92, 0
      %s95 = sadd.s32 %s94, 1
      %s96 = scalar_select %p93, %s94, %s95
      %p99 = pneg %p93
      %p100 = scmp.eq.s32.totalorder %s9, 1
      %p101 = por %p99, %p100
      %p102 = scmp.ne.s32.totalorder %s94, %s97
      %p103 = scmp.eq.s32.totalorder %s9, 0
      %p104 = por %p102, %p103
      %p105 = scmp.ne.s32.totalorder %s94, %s97
      %p106 = scmp.eq.s32.totalorder %s14, 1
      %p107 = por %p105, %p106
      %p108 = scmp.ne.s32.totalorder %s97, %s98
      %p109 = scmp.eq.s32.totalorder %s14, 0
      %p110 = por %p108, %p109
      %p111 = scmp.ne.s32.totalorder %s97, %s98
      %p112 = scmp.eq.s32.totalorder %s15, 1
      %p113 = por %p111, %p112
      %p115 = scmp.ne.s32.totalorder %s98, %s114
      %p116 = scmp.eq.s32.totalorder %s15, 0
      %p117 = por %p115, %p116
      %s118 = ssub.s32 %s16, %s35
      %s119 = ssub.s32 %s17, %s31
      %s120 = sor.u32 %s118, %s119
      %p121 = scmp.eq.s32.totalorder %s120, 0
      %s123 = sadd.s32 %s122, 1
      %s124 = scalar_select %p121, %s122, %s123
      %p127 = pneg %p121
      %p128 = scmp.eq.s32.totalorder %s9, 1
      %p129 = por %p127, %p128
      %p130 = scmp.ne.s32.totalorder %s122, %s125
      %p131 = scmp.eq.s32.totalorder %s9, 0
      %p132 = por %p130, %p131
      %p133 = scmp.ne.s32.totalorder %s122, %s125
      %p134 = scmp.eq.s32.totalorder %s14, 1
      %p135 = por %p133, %p134
      %p136 = scmp.ne.s32.totalorder %s125, %s126
      %p137 = scmp.eq.s32.totalorder %s14, 0
      %p138 = por %p136, %p137
      %p139 = scmp.ne.s32.totalorder %s125, %s126
      %p140 = scmp.eq.s32.totalorder %s15, 1
      %p141 = por %p139, %p140
      %p143 = scmp.ne.s32.totalorder %s126, %s142
      %p144 = scmp.eq.s32.totalorder %s15, 0
      %p145 = por %p143, %p144
      %p146 = scmp.le.s32.totalorder 1, %s9
      %p147 = scmp.lt.s32.totalorder %s9, 3
      %p148 = pnand %p146, %p147
      %p149 = pneg %p148
      // Predicated region
      $region9: #{clip_forward.42} parent=5 // pred_check
        _
      $region10: #{clip_forward.42} parent=5 // pred_check_branch
        %151 = sbr.rel (%p148) target = $region12
      $region11: #{clip_forward.42} parent=5 // pred_region
        %s152 = ssub.s32 %s9, 1
        // Predicated region
        $region13: #{clip_forward.42} parent=11 // pred_check
          %p153 = pneg %p56
        $region14: #{clip_forward.42} parent=11 // pred_check_branch
          %155 = sbr.rel (%p153) target = $region16
        $region15: #{clip_forward.42} parent=11 // pred_region
          %s156 = smul.u32 2, %s19
          %p157 = scmp.lt.s32.totalorder %s156, 1
          %s158 = scalar_select %p157, %s156, 1
          %p159 = scmp.lt.s32.totalorder %s21, 0
          %s160 = scalar_select %p159, %s21, 0
          %s161 = sadd.s32 %s160, %s158
          %s162 = smul.addr %s161, 4
          %s163 = scalar_lea.vmem %s0, %s162
          %s164 = smul.u32 2, %s19
        $region16: #{clip_forward.42} parent=11 // pred_fallthru
          _
      $region12: #{clip_forward.42} parent=5 // pred_fallthru
        _
      %p165 = scmp.lt.s32.totalorder %s9, 2
      // Predicated region
      $region17: #{clip_forward.42} parent=5 // pred_check
        %p166 = pneg %p165
      $region18: #{clip_forward.42} parent=5 // pred_check_branch
        %168 = sbr.rel (%p166) target = $region20
      $region19: #{clip_forward.42} parent=5 // pred_region
        // Predicated region
        $region21: #{clip_forward.42} parent=19 // pred_check
          %p169 = pneg %p78
        $region22: #{clip_forward.42} parent=19 // pred_check_branch
          %171 = sbr.rel (%p169) target = $region24
        $region23: #{clip_forward.42} parent=19 // pred_region
          %s172 = sand.u32 %s68, 1
          %s173 = sand.u32 %s68, 1
          %s174 = smul.addr %s173, 128
          %s175 = scalar_lea.vmem [#allocation3], %s174
          %s176 = smul.u32 16, %s18
          %s177 = smul.u32 2, %s17
          %s178 = smul.addr %s176, 4
          %s179 = sadd.s32 %s177, %s178
          %s180 = smul.addr %s179, 4
          %s181 = scalar_lea.vmem %s1, %s180
          // Predicated region
          $region25: #{clip_forward.42} parent=23 // pred_check
            _
          $region26: #{clip_forward.42} parent=23 // pred_check_branch
            %183 = sbr.rel (0) target = $region28
          $region27: #{clip_forward.42} parent=23 // pred_region
            // Predicated region
            $region29: #{clip_forward.42} parent=27 // pred_check
              _
            $region30: #{clip_forward.42} parent=27 // pred_check_branch
              %185 = sbr.rel (0) target = $region32
            $region31: #{clip_forward.42} parent=27 // pred_region
              // Predicated region
              $region44: #{clip_forward.42} parent=31 // pred_check
                _
              $region45: #{clip_forward.42} parent=31 // pred_check_branch
                %231 = sbr.rel (0) target = $region47
              $region46: #{clip_forward.42} parent=31 // pred_region
                loop: start=0, step=1, limit=1
                $region48: #{clip_forward.42} parent=46 // loop_pre_header
                  _
                $region49: #{clip_forward.42} parent=46 // loop_header
                  %s233 = sphi 0, %s237
                  %p234 = scmp.ge.s32.totalorder %s233, 1
                  %s238 = sphi %s181, %s181
                  %s239 = sphi %s175, %s175
                $region50: #{clip_forward.42} parent=46 // loop_header_branch
                  %236 = sbr.rel (%p234) target = $region54
                $region51: #{clip_forward.42} parent=46 // loop_body
                  %v240 = vld [vmem:[%s238] sm:$0xff]
                  %241 = vst [vmem:[%s239] sm:$0xff] %v240
                  %v242 = vld [vmem:[%s238 + $0x10] sm:$0xff]
                  %243 = vst [vmem:[%s239 + $0x8] sm:$0xff] %v242
                  %v244 = vld [vmem:[%s238 + $0x20] sm:$0xff]
                  %245 = vst [vmem:[%s239 + $0x10] sm:$0xff] %v244
                  %v246 = vld [vmem:[%s238 + $0x30] sm:$0xff]
                  %247 = vst [vmem:[%s239 + $0x18] sm:$0xff] %v246
                  %v248 = vld [vmem:[%s238 + $0x40] sm:$0xff]
                  %249 = vst [vmem:[%s239 + $0x20] sm:$0xff] %v248
                  %v250 = vld [vmem:[%s238 + $0x50] sm:$0xff]
                  %251 = vst [vmem:[%s239 + $0x28] sm:$0xff] %v250
                  %v252 = vld [vmem:[%s238 + $0x60] sm:$0xff]
                  %253 = vst [vmem:[%s239 + $0x30] sm:$0xff] %v252
                  %v254 = vld [vmem:[%s238 + $0x70] sm:$0xff]
                  %255 = vst [vmem:[%s239 + $0x38] sm:$0xff] %v254
                  %v256 = vld [vmem:[%s238 + $0x80] sm:$0xff]
                  %257 = vst [vmem:[%s239 + $0x40] sm:$0xff] %v256
                  %v258 = vld [vmem:[%s238 + $0x90] sm:$0xff]
                  %259 = vst [vmem:[%s239 + $0x48] sm:$0xff] %v258
                  %v260 = vld [vmem:[%s238 + $0xa0] sm:$0xff]
                  %261 = vst [vmem:[%s239 + $0x50] sm:$0xff] %v260
                  %v262 = vld [vmem:[%s238 + $0xb0] sm:$0xff]
                  %263 = vst [vmem:[%s239 + $0x58] sm:$0xff] %v262
                  %v264 = vld [vmem:[%s238 + $0xc0] sm:$0xff]
                  %265 = vst [vmem:[%s239 + $0x60] sm:$0xff] %v264
                  %v266 = vld [vmem:[%s238 + $0xd0] sm:$0xff]
                  %267 = vst [vmem:[%s239 + $0x68] sm:$0xff] %v266
                  %v268 = vld [vmem:[%s238 + $0xe0] sm:$0xff]
                  %269 = vst [vmem:[%s239 + $0x70] sm:$0xff] %v268
                  %v270 = vld [vmem:[%s238 + $0xf0] sm:$0xff]
                  %271 = vst [vmem:[%s239 + $0x78] sm:$0xff] %v270
                $region52: #{clip_forward.42} parent=46 // loop_footer
                  %s237 = sadd.s32 1, %s233
                $region53: #{clip_forward.42} parent=46 // loop_footer_branch
                  %232 = sbr.rel target = $region49
                $region54: #{clip_forward.42} parent=46 // loop_exit
                  _
              $region47: #{clip_forward.42} parent=31 // pred_fallthru
                _
              // Predicated region
              $region55: #{clip_forward.42} parent=31 // pred_check
                _
              $region56: #{clip_forward.42} parent=31 // pred_check_branch
                %273 = sbr.rel target = $region58
              $region57: #{clip_forward.42} parent=31 // pred_region
                _
              $region58: #{clip_forward.42} parent=31 // pred_fallthru
                _
            $region32: #{clip_forward.42} parent=27 // pred_fallthru
              _
            // Predicated region
            $region33: #{clip_forward.42} parent=27 // pred_check
              _
            $region34: #{clip_forward.42} parent=27 // pred_check_branch
              %187 = sbr.rel target = $region36
            $region35: #{clip_forward.42} parent=27 // pred_region
              %s189 = ssub.s32 256, 1
              loop: start=0, step=1, limit=1
              $region37: #{clip_forward.42} parent=35 // loop_pre_header
                _
              $region38: #{clip_forward.42} parent=35 // loop_header
                %s191 = sphi 0, %s195
                %p192 = scmp.ge.s32.totalorder %s191, 1
                %s196 = sphi %s181, %s181
                %s197 = sphi %s175, %s175
              $region39: #{clip_forward.42} parent=35 // loop_header_branch
                %194 = sbr.rel (%p192) target = $region43
              $region40: #{clip_forward.42} parent=35 // loop_body
                %v198 = vld [vmem:[%s196] sm:%s189]
                %199 = vst [vmem:[%s197] sm:%s189] %v198
                %v200 = vld [vmem:[%s196 + $0x10] sm:%s189]
                %201 = vst [vmem:[%s197 + $0x8] sm:%s189] %v200
                %v202 = vld [vmem:[%s196 + $0x20] sm:%s189]
                %203 = vst [vmem:[%s197 + $0x10] sm:%s189] %v202
                %v204 = vld [vmem:[%s196 + $0x30] sm:%s189]
                %205 = vst [vmem:[%s197 + $0x18] sm:%s189] %v204
                %v206 = vld [vmem:[%s196 + $0x40] sm:%s189]
                %207 = vst [vmem:[%s197 + $0x20] sm:%s189] %v206
                %v208 = vld [vmem:[%s196 + $0x50] sm:%s189]
                %209 = vst [vmem:[%s197 + $0x28] sm:%s189] %v208
                %v210 = vld [vmem:[%s196 + $0x60] sm:%s189]
                %211 = vst [vmem:[%s197 + $0x30] sm:%s189] %v210
                %v212 = vld [vmem:[%s196 + $0x70] sm:%s189]
                %213 = vst [vmem:[%s197 + $0x38] sm:%s189] %v212
                %v214 = vld [vmem:[%s196 + $0x80] sm:%s189]
                %215 = vst [vmem:[%s197 + $0x40] sm:%s189] %v214
                %v216 = vld [vmem:[%s196 + $0x90] sm:%s189]
                %217 = vst [vmem:[%s197 + $0x48] sm:%s189] %v216
                %v218 = vld [vmem:[%s196 + $0xa0] sm:%s189]
                %219 = vst [vmem:[%s197 + $0x50] sm:%s189] %v218
                %v220 = vld [vmem:[%s196 + $0xb0] sm:%s189]
                %221 = vst [vmem:[%s197 + $0x58] sm:%s189] %v220
                %v222 = vld [vmem:[%s196 + $0xc0] sm:%s189]
                %223 = vst [vmem:[%s197 + $0x60] sm:%s189] %v222
                %v224 = vld [vmem:[%s196 + $0xd0] sm:%s189]
                %225 = vst [vmem:[%s197 + $0x68] sm:%s189] %v224
                %v226 = vld [vmem:[%s196 + $0xe0] sm:%s189]
                %227 = vst [vmem:[%s197 + $0x70] sm:%s189] %v226
                %v228 = vld [vmem:[%s196 + $0xf0] sm:%s189]
                %229 = vst [vmem:[%s197 + $0x78] sm:%s189] %v228
              $region41: #{clip_forward.42} parent=35 // loop_footer
                %s195 = sadd.s32 1, %s191
              $region42: #{clip_forward.42} parent=35 // loop_footer_branch
                %190 = sbr.rel target = $region38
              $region43: #{clip_forward.42} parent=35 // loop_exit
                _
            $region36: #{clip_forward.42} parent=27 // pred_fallthru
              _
          $region28: #{clip_forward.42} parent=23 // pred_fallthru
            _
          %274 = vnop
        $region24: #{clip_forward.42} parent=19 // pred_fallthru
          _
        // Predicated region
        $region59: #{clip_forward.42} parent=19 // pred_check
          %p275 = pneg %p104
        $region60: #{clip_forward.42} parent=19 // pred_check_branch
          %277 = sbr.rel (%p275) target = $region62
        $region61: #{clip_forward.42} parent=19 // pred_region
          %s278 = smul.u32 2, %s17
          %p279 = scmp.lt.s32.totalorder %s278, 3
          %s280 = scalar_select %p279, %s278, 3
          %s281 = scalar_lea.vmem %s2, %s280
          %s282 = smul.u32 2, %s17
        $region62: #{clip_forward.42} parent=19 // pred_fallthru
          _
      $region20: #{clip_forward.42} parent=5 // pred_fallthru
        _
      %p283 = scmp.le.s32.totalorder 1, %s9
      %p284 = scmp.lt.s32.totalorder %s9, 3
      %p285 = pnand %p283, %p284
      %p286 = pneg %p285
      // Predicated region
      $region63: #{clip_forward.42} parent=5 // pred_check
        _
      $region64: #{clip_forward.42} parent=5 // pred_check_branch
        %288 = sbr.rel (%p285) target = $region66
      $region65: #{clip_forward.42} parent=5 // pred_region
        %s289 = ssub.s32 %s9, 1
        %s290 = sand.u32 %s71, 1
        %s291 = sand.u32 %s71, 1
        %s292 = smul.addr %s291, 128
        %s293 = scalar_lea.vmem [#allocation3], %s292
        // Predicated region
        $region67: #{clip_forward.42} parent=65 // pred_check
          %p294 = pneg %p84
        $region68: #{clip_forward.42} parent=65 // pred_check_branch
          %296 = sbr.rel (%p294) target = $region70
        $region69: #{clip_forward.42} parent=65 // pred_region
          _
        $region70: #{clip_forward.42} parent=65 // pred_fallthru
          _
        %s297 = smul.u32 2, %s19
        %p298 = scmp.lt.s32.totalorder %s297, 1
        %s299 = scalar_select %p298, %s297, 1
        %p300 = scmp.lt.s32.totalorder %s21, 0
        %s301 = scalar_select %p300, %s21, 0
        %s302 = sadd.s32 %s301, %s299
        %s303 = smul.addr %s302, 4
        %s304 = scalar_lea.vmem %s0, %s303
        %p305 = pneg %p56
        %p306 = pneg %p53
        %s307 = sand.u32 %s71, 1
        %s308 = sand.u32 %s71, 1
        %s309 = smul.addr %s308, 128
        %s310 = scalar_lea.vmem [#allocation3], %s309
        %p311 = pneg %p84
        %p312 = pneg %p81
        %s313 = smul.u32 2, %s20
        %p314 = scmp.lt.s32.totalorder %s313, 3
        %s315 = scalar_select %p314, %s313, 3
        %s316 = scalar_lea.vmem %s2, %s315
        %p317 = pneg %p110
        %p318 = pneg %p107
        %p319 = pneg %p138
        %p320 = pneg %p135
        %s321 = sand.u32 %s125, 1
        %s322 = sand.u32 %s125, 1
        %s323 = smul.addr %s322, 16
        %s324 = scalar_lea.vmem [#allocation4], %s323
        %s325 = smul.u32 2, %s19
        %p326 = scmp.lt.s32.totalorder %s325, 1
        %s327 = scalar_select %p326, %s325, 1
        %p328 = scmp.lt.s32.totalorder %s21, 0
        %s329 = scalar_select %p328, %s21, 0
        %s330 = sadd.s32 %s329, %s327
        %s331 = smul.addr %s330, 4
        %s332 = scalar_lea.vmem %s0, %s331
        %s333 = smul.u32 2, %s19
        %s334 = smul.u32 16, %s21
        %s335 = smul.u32 2, %s20
        %s336 = smul.u32 2, %s20
        %p337 = scmp.lt.s32.totalorder %s336, 3
        %s338 = scalar_select %p337, %s336, 3
        %s339 = scalar_lea.vmem %s2, %s338
        %s340 = smul.u32 2, %s20
        %s341 = smul.u32 2, %s19
        %s342 = smul.u32 2, %s20
        %p344 = scmp.eq.s32.totalorder %s21, 0
        // Predicated region
        $region71: #{clip_forward.42} parent=65 // pred_check
          %p345 = pneg %p344
        $region72: #{clip_forward.42} parent=65 // pred_check_branch
          %347 = sbr.rel (%p345) target = $region74
        $region73: #{clip_forward.42} parent=65 // pred_region
          %348 = vst [vmem:[#allocation2] sm:$0xff] 0.0
          %349 = vst [vmem:[#allocation2 + $0x8] sm:$0xff] 0.0
          %350 = vst [vmem:[#allocation2 + $0x10] sm:$0x3] 0.0
          %351 = vst [vmem:[#allocation2 + $0x18] sm:$0x3] 0.0
        $region74: #{clip_forward.42} parent=65 // pred_fallthru
          _
        %v352 = vld [vmem:[#allocation2] sm:$0xff]
        %v353 = vld [vmem:[#allocation2 + $0x8] sm:$0xff]
        %v354 = vld [vmem:[#allocation2 + $0x10] sm:$0x3]
        %v355 = vld [vmem:[#allocation2 + $0x18] sm:$0x3]
        %v356 = vld [vmem:[%s332] sm:$0xf]
        %v357 = vld [vmem:[%s332 + $0x4] sm:$0x1]
        %v358 = vld [vmem:[%s293] sm:$0xff]
        %v359 = vld [vmem:[%s293 + $0x8] sm:$0xff]
        %v360 = vld [vmem:[%s293 + $0x10] sm:$0xff]
        %v361 = vld [vmem:[%s293 + $0x18] sm:$0xff]
        %v362 = vld [vmem:[%s293 + $0x20] sm:$0xff]
        %v363 = vld [vmem:[%s293 + $0x28] sm:$0xff]
        %v364 = vld [vmem:[%s293 + $0x30] sm:$0xff]
        %v365 = vld [vmem:[%s293 + $0x38] sm:$0xff]
        %v366 = vld [vmem:[%s293 + $0x40] sm:$0xff]
        %v367 = vld [vmem:[%s293 + $0x48] sm:$0xff]
        %v368 = vld [vmem:[%s293 + $0x50] sm:$0xff]
        %v369 = vld [vmem:[%s293 + $0x58] sm:$0xff]
        %v370 = vld [vmem:[%s293 + $0x60] sm:$0xff]
        %v371 = vld [vmem:[%s293 + $0x68] sm:$0xff]
        %v372 = vld [vmem:[%s293 + $0x70] sm:$0xff]
        %v373 = vld [vmem:[%s293 + $0x78] sm:$0xff]
        %v376 = vunpack.c.l.b16 %v356
        %v377 = vunpack.c.l.b16 %v357
        %v378 = vpack.c.b16 %v377, %v376
        %v396 = vunpack.c.l.b16 %v358
        %v397 = vunpack.c.h.b16 %v358
        %v398 = vunpack.c.l.b16 %v359
        %v399 = vunpack.c.h.b16 %v359
        %v400 = vunpack.c.l.b16 %v360
        %v401 = vunpack.c.h.b16 %v360
        %v402 = vunpack.c.l.b16 %v361
        %v403 = vunpack.c.h.b16 %v361
        %v404 = vunpack.c.l.b16 %v362
        %v405 = vunpack.c.h.b16 %v362
        %v406 = vunpack.c.l.b16 %v363
        %v407 = vunpack.c.h.b16 %v363
        %v408 = vunpack.c.l.b16 %v364
        %v409 = vunpack.c.h.b16 %v364
        %v410 = vunpack.c.l.b16 %v365
        %v411 = vunpack.c.h.b16 %v365
        %v412 = vunpack.c.l.b16 %v366
        %v413 = vunpack.c.h.b16 %v366
        %v414 = vunpack.c.l.b16 %v367
        %v415 = vunpack.c.h.b16 %v367
        %v416 = vunpack.c.l.b16 %v368
        %v417 = vunpack.c.h.b16 %v368
        %v418 = vunpack.c.l.b16 %v369
        %v419 = vunpack.c.h.b16 %v369
        %v420 = vunpack.c.l.b16 %v370
        %v421 = vunpack.c.h.b16 %v370
        %v422 = vunpack.c.l.b16 %v371
        %v423 = vunpack.c.h.b16 %v371
        %v424 = vunpack.c.l.b16 %v372
        %v425 = vunpack.c.h.b16 %v372
        %v426 = vunpack.c.l.b16 %v373
        %v427 = vunpack.c.h.b16 %v373
        %v428 = vpack.c.b16 %v398, %v396
        %v429 = vpack.c.b16 %v399, %v397
        %v430 = vpack.c.b16 %v402, %v400
        %v431 = vpack.c.b16 %v403, %v401
        %v432 = vpack.c.b16 %v406, %v404
        %v433 = vpack.c.b16 %v407, %v405
        %v434 = vpack.c.b16 %v410, %v408
        %v435 = vpack.c.b16 %v411, %v409
        %v436 = vpack.c.b16 %v414, %v412
        %v437 = vpack.c.b16 %v415, %v413
        %v438 = vpack.c.b16 %v418, %v416
        %v439 = vpack.c.b16 %v419, %v417
        %v440 = vpack.c.b16 %v422, %v420
        %v441 = vpack.c.b16 %v423, %v421
        %v442 = vpack.c.b16 %v426, %v424
        %v443 = vpack.c.b16 %v427, %v425
        %460 = vmatprep.subr.bf16.mxu0 %v443
        %461 = vmatpush1.bf16.msra.mxu0 %v442
        %462 = vmatprep.subr.bf16.mxu0 %v441
        %463 = vmatpush1.bf16.msra.mxu0 %v440
        %464 = vmatprep.subr.bf16.mxu0 %v439
        %465 = vmatpush1.bf16.msra.mxu0 %v438
        %466 = vmatprep.subr.bf16.mxu0 %v437
        %467 = vmatpush1.bf16.msra.mxu0 %v436
        %468 = vmatprep.subr.bf16.mxu0 %v435
        %469 = vmatpush1.bf16.msra.mxu0 %v434
        %470 = vmatprep.subr.bf16.mxu0 %v433
        %471 = vmatpush1.bf16.msra.mxu0 %v432
        %472 = vmatprep.subr.bf16.mxu0 %v431
        %473 = vmatpush1.bf16.msra.mxu0 %v430
        %474 = vmatprep.subr.bf16.mxu0 %v429
        %475 = vmatpush1.bf16.msra.mxu0 %v428
        %476 = vmatprep.subr.bf16.mxu0 0
        %477 = vmatpush2.bf16.msra.mxu0 0
        %478 = vmatprep.subr.bf16.mxu0 0
        %479 = vmatpush2.bf16.msra.mxu0 0
        %480 = vmatprep.subr.bf16.mxu0 0
        %481 = vmatpush2.bf16.msra.mxu0 0
        %482 = vmatprep.subr.bf16.mxu0 0
        %483 = vmatpush2.bf16.msra.mxu0 0
        %484 = vmatprep.subr.bf16.mxu0 0
        %485 = vmatpush2.bf16.msra.mxu0 0
        %486 = vmatprep.subr.bf16.mxu0 0
        %487 = vmatpush2.bf16.msra.mxu0 0
        %488 = vmatprep.subr.bf16.mxu0 0
        %489 = vmatpush2.bf16.msra.mxu0 0
        %490 = vmatprep.subr.bf16.mxu0 0
        %491 = vmatpush2.bf16.msra.mxu0 0
        %492 = vmatprep.mubr.bf16.mxu0 0
        %493 = vmatmul.mubr.bf16.gmra.mxu0 %v378
        %v494 = vpop.f32.mrf.mxu0
        %v495 = vadd.f32 0.0, %v494
        %v496 = vpop.f32.mrf.mxu0
        %v497 = vadd.f32 0.0, %v496
        %v498 = vpop.f32.mrf.mxu0
        %v499 = vadd.f32 0.0, %v498
        %v500 = vpop.f32.mrf.mxu0
        %v501 = vadd.f32 0.0, %v500
        %502 = vdwg.mxu0
        %v503 = vadd.f32 %v352, %v495
        %v504 = vadd.f32 %v353, %v497
        %v505 = vadd.f32 %v354, %v499
        %v506 = vadd.f32 %v355, %v501
        %507 = vst [vmem:[#allocation2] sm:$0xff] %v503
        %508 = vst [vmem:[#allocation2 + $0x8] sm:$0xff] %v504
        %509 = vst [vmem:[#allocation2 + $0x10] sm:$0x3] %v505
        %510 = vst [vmem:[#allocation2 + $0x18] sm:$0x3] %v506
        // Predicated region
        $region75: #{clip_forward.42} parent=65 // pred_check
          %p511 = pneg %p344
        $region76: #{clip_forward.42} parent=65 // pred_check_branch
          %513 = sbr.rel (%p511) target = $region78
        $region77: #{clip_forward.42} parent=65 // pred_region
          %v514 = vld [vmem:[#allocation2] sm:$0xff]
          %v515 = vld [vmem:[#allocation2 + $0x8] sm:$0xff]
          %v516 = vld [vmem:[#allocation2 + $0x10] sm:$0x3]
          %v517 = vld [vmem:[#allocation2 + $0x18] sm:$0x3]
          %v518 = vld [vmem:[%s339] sm:$0x3]
          %v519 = vunpack.c.l.bf16 %v518
          %v521 = vlaneseq
          %v522 = vshrl.u32 %v521, 7
          %v523 = vsub.s32 0, %v522
          %v524 = vrot.slane %v519, %v523
          %v525 = vlaneseq
          %v526 = vshrl.u32 %v525, 7
          %v527 = vsub.s32 2, %v526
          %v528 = vrot.slane %v519, %v527
          %v531 = vlaneseq
          %v532 = vshrl.u32 %v531, 7
          %v533 = vsub.s32 0, %v532
          %v534 = vrot.slane %v524, %v533
          %v535 = vlaneseq
          %v536 = vshrl.u32 %v535, 7
          %v537 = vsub.s32 0, %v536
          %v538 = vrot.slane %v528, %v537
          %v539 = vadd.f32 %v514, %v534
          %v540 = vadd.f32 %v515, %v538
          %v541 = vadd.f32 %v516, %v534
          %v542 = vadd.f32 %v517, %v538
          %v543 = vmul.f32 %v539, 1.702
          %v544 = vmul.f32 %v540, 1.702
          %v545 = vmul.f32 %v541, 1.702
          %v546 = vmul.f32 %v542, 1.702
          %v547 = vxor.u32 %v543, 2147483648
          %v548 = vxor.u32 %v544, 2147483648
          %v549 = vxor.u32 %v545, 2147483648
          %v550 = vxor.u32 %v546, 2147483648
          %v551 = vmul.f32 %v547, 1.442695
          %v552 = vpow.pop %v551
          %v553 = vmul.f32 %v548, 1.442695
          %v554 = vpow.pop %v553
          %v555 = vmul.f32 %v549, 1.442695
          %v556 = vpow.pop %v555
          %v557 = vmul.f32 %v550, 1.442695
          %v558 = vpow.pop %v557
          %v559 = vadd.f32 %v552, 1.0
          %v560 = vadd.f32 %v554, 1.0
          %v561 = vadd.f32 %v556, 1.0
          %v562 = vadd.f32 %v558, 1.0
          %v563 = vrcp.pop %v559
          %v564 = vmul.f32 1.0, %v563
          %v565 = vrcp.pop %v560
          %v566 = vmul.f32 1.0, %v565
          %v567 = vrcp.pop %v561
          %v568 = vmul.f32 1.0, %v567
          %v569 = vrcp.pop %v562
          %v570 = vmul.f32 1.0, %v569
          %v571 = vmul.f32 %v539, %v564
          %v572 = vmul.f32 %v540, %v566
          %v573 = vmul.f32 %v541, %v568
          %v574 = vmul.f32 %v542, %v570
          %v575 = vpack.c.bf16 %v573, %v571
          %v576 = vpack.c.bf16 %v574, %v572
          %v579 = vunpack.c.l.b16 %v575
          %v580 = vunpack.c.l.b16 %v576
          %v581 = vunpack.c.h.b16 %v575
          %v582 = vunpack.c.h.b16 %v576
          %v583 = vpack.c.b16 %v580, %v579
          %v584 = vpack.c.b16 %v582, %v581
          %587 = vst [vmem:[%s324] sm:$0xff] %v583
          %588 = vst [vmem:[%s324 + $0x8] sm:$0x11] %v584
        $region78: #{clip_forward.42} parent=65 // pred_fallthru
          _
        %s589 = sand.u32 %s125, 1
        %s590 = sand.u32 %s125, 1
        %s591 = smul.addr %s590, 16
        %s592 = scalar_lea.vmem [#allocation4], %s591
        // Predicated region
        $region79: #{clip_forward.42} parent=65 // pred_check
          %p593 = pneg %p135
        $region80: #{clip_forward.42} parent=65 // pred_check_branch
          %595 = sbr.rel (%p593) target = $region82
        $region81: #{clip_forward.42} parent=65 // pred_region
          %s596 = smul.u32 2, %s19
          %s597 = smul.u32 2, %s20
          %s598 = smul.addr %s596, 4
          %s599 = sadd.s32 %s597, %s598
          %s600 = smul.addr %s599, 4
          %s601 = scalar_lea.vmem %s3, %s600
          // Predicated region
          $region83: #{clip_forward.42} parent=81 // pred_check
            _
          $region84: #{clip_forward.42} parent=81 // pred_check_branch
            %603 = sbr.rel (0) target = $region86
          $region85: #{clip_forward.42} parent=81 // pred_region
            // Predicated region
            $region87: #{clip_forward.42} parent=85 // pred_check
              _
            $region88: #{clip_forward.42} parent=85 // pred_check_branch
              %605 = sbr.rel (0) target = $region90
            $region89: #{clip_forward.42} parent=85 // pred_region
              // Predicated region
              $region102: #{clip_forward.42} parent=89 // pred_check
                _
              $region103: #{clip_forward.42} parent=89 // pred_check_branch
                %623 = sbr.rel (0) target = $region105
              $region104: #{clip_forward.42} parent=89 // pred_region
                loop: start=0, step=1, limit=1
                $region106: #{clip_forward.42} parent=104 // loop_pre_header
                  _
                $region107: #{clip_forward.42} parent=104 // loop_header
                  %s625 = sphi 0, %s629
                  %p626 = scmp.ge.s32.totalorder %s625, 1
                  %s630 = sphi %s592, %s592
                  %s631 = sphi %s601, %s601
                $region108: #{clip_forward.42} parent=104 // loop_header_branch
                  %628 = sbr.rel (%p626) target = $region112
                $region109: #{clip_forward.42} parent=104 // loop_body
                  %v632 = vld [vmem:[%s630] sm:$0xff]
                  %633 = vst [vmem:[%s631] sm:$0xff] %v632
                  %v634 = vld [vmem:[%s630 + $0x8] sm:$0xff]
                  %635 = vst [vmem:[%s631 + $0x10] sm:$0xff] %v634
                $region110: #{clip_forward.42} parent=104 // loop_footer
                  %s629 = sadd.s32 1, %s625
                $region111: #{clip_forward.42} parent=104 // loop_footer_branch
                  %624 = sbr.rel target = $region107
                $region112: #{clip_forward.42} parent=104 // loop_exit
                  _
              $region105: #{clip_forward.42} parent=89 // pred_fallthru
                _
              // Predicated region
              $region113: #{clip_forward.42} parent=89 // pred_check
                _
              $region114: #{clip_forward.42} parent=89 // pred_check_branch
                %637 = sbr.rel target = $region116
              $region115: #{clip_forward.42} parent=89 // pred_region
                _
              $region116: #{clip_forward.42} parent=89 // pred_fallthru
                _
            $region90: #{clip_forward.42} parent=85 // pred_fallthru
              _
            // Predicated region
            $region91: #{clip_forward.42} parent=85 // pred_check
              _
            $region92: #{clip_forward.42} parent=85 // pred_check_branch
              %607 = sbr.rel target = $region94
            $region93: #{clip_forward.42} parent=85 // pred_region
              %s609 = ssub.s32 256, 1
              loop: start=0, step=1, limit=1
              $region95: #{clip_forward.42} parent=93 // loop_pre_header
                _
              $region96: #{clip_forward.42} parent=93 // loop_header
                %s611 = sphi 0, %s615
                %p612 = scmp.ge.s32.totalorder %s611, 1
                %s616 = sphi %s592, %s592
                %s617 = sphi %s601, %s601
              $region97: #{clip_forward.42} parent=93 // loop_header_branch
                %614 = sbr.rel (%p612) target = $region101
              $region98: #{clip_forward.42} parent=93 // loop_body
                %v618 = vld [vmem:[%s616] sm:%s609]
                %619 = vst [vmem:[%s617] sm:%s609] %v618
                %v620 = vld [vmem:[%s616 + $0x8] sm:%s609]
                %621 = vst [vmem:[%s617 + $0x10] sm:%s609] %v620
              $region99: #{clip_forward.42} parent=93 // loop_footer
                %s615 = sadd.s32 1, %s611
              $region100: #{clip_forward.42} parent=93 // loop_footer_branch
                %610 = sbr.rel target = $region96
              $region101: #{clip_forward.42} parent=93 // loop_exit
                _
            $region94: #{clip_forward.42} parent=85 // pred_fallthru
              _
          $region86: #{clip_forward.42} parent=81 // pred_fallthru
            _
          %638 = vnop
        $region82: #{clip_forward.42} parent=65 // pred_fallthru
          _
      $region66: #{clip_forward.42} parent=5 // pred_fallthru
        _
      %p639 = scmp.le.s32.totalorder 2, %s9
      // Predicated region
      $region117: #{clip_forward.42} parent=5 // pred_check
        %p640 = pneg %p639
      $region118: #{clip_forward.42} parent=5 // pred_check_branch
        %642 = sbr.rel (%p640) target = $region120
      $region119: #{clip_forward.42} parent=5 // pred_region
        %s643 = ssub.s32 %s9, 2
        // Predicated region
        $region121: #{clip_forward.42} parent=119 // pred_check
          %p644 = pneg %p141
        $region122: #{clip_forward.42} parent=119 // pred_check_branch
          %646 = sbr.rel (%p644) target = $region124
        $region123: #{clip_forward.42} parent=119 // pred_region
          %s647 = sand.u32 %s126, 1
          %s648 = sand.u32 %s126, 1
          %s649 = smul.addr %s648, 16
          %s650 = scalar_lea.vmem [#allocation4], %s649
        $region124: #{clip_forward.42} parent=119 // pred_fallthru
          _
      $region120: #{clip_forward.42} parent=5 // pred_fallthru
        _
    $region6: #{clip_forward.42} parent=1 // loop_footer
      %s13 = sadd.s32 1, %s9
    $region7: #{clip_forward.42} parent=1 // loop_footer_branch
      %8 = sbr.rel target = $region3
    $region8: #{clip_forward.42} parent=1 // loop_exit
      _

// kernel: clip_forward.43
$region0: #{clip_forward.43}
  #allocation0 [shape = 'u32[]', space=smem, size = 0x4, offset = 0x4, fixed_abs, tag = 'smem constant byte address 0x4 - core index']
  #allocation1 [shape = 'u32[144,128]{1,0:T(1,128)}', space=vmem, size = 0x12000, scoped, tag = 'internal scratch']
  #allocation2 [shape = 'f32[10,128]{1,0:T(8,128)}', space=vmem, size = 0x2000, scoped, tag = 'scratch operand']
  %s0 = inlined_call_operand.vmem [shape: bf16[10,512], index: 0, kind: input, shape index: {}]
  %s1 = inlined_call_operand.vmem [shape: bf16[512,128], index: 1, kind: input, shape index: {}]
  %s2 = inlined_call_operand.vmem [shape: bf16[1,128], index: 2, kind: input, shape index: {}]
  %s3 = inlined_call_operand.vmem [shape: bf16[10,128], index: 3, kind: input, shape index: {}]
  %s4 = inlined_call_operand.vmem [shape: bf16[10,128], index: 4, kind: output, shape index: {}]
  %s5 = sld [smem:[#allocation0]]
  $region34: #{clip_forward.43} parent=0
    _
  %s7 = ssub.s32 1, %s5
  %s8 = scalar_select 0, %s7, %s5
  // Predicated region
  $region2: #{clip_forward.43} parent=0 // pred_check
    _
  $region3: #{clip_forward.43} parent=0 // pred_check_branch
    %10 = sbr.rel (0) target = $region5
  $region4: #{clip_forward.43} parent=0 // pred_region
    _
  $region5: #{clip_forward.43} parent=0 // pred_fallthru
    _
  // Predicated region
  $region6: #{clip_forward.43} parent=0 // pred_check
    _
  $region7: #{clip_forward.43} parent=0 // pred_check_branch
    %12 = sbr.rel (0) target = $region9
  $region8: #{clip_forward.43} parent=0 // pred_region
    _
  $region9: #{clip_forward.43} parent=0 // pred_fallthru
    _
  // Predicated region
  $region10: #{clip_forward.43} parent=0 // pred_check
    _
  $region11: #{clip_forward.43} parent=0 // pred_check_branch
    %14 = sbr.rel (0) target = $region13
  $region12: #{clip_forward.43} parent=0 // pred_region
    _
  $region13: #{clip_forward.43} parent=0 // pred_fallthru
    _
  // Predicated region
  $region14: #{clip_forward.43} parent=0 // pred_check
    _
  $region15: #{clip_forward.43} parent=0 // pred_check_branch
    %16 = sbr.rel (0) target = $region17
  $region16: #{clip_forward.43} parent=0 // pred_region
    _
  $region17: #{clip_forward.43} parent=0 // pred_fallthru
    _
  %p18 = scmp.eq.s32.totalorder 0, 0
  // Predicated region
  $region18: #{clip_forward.43} parent=0 // pred_check
    %p19 = pneg %p18
  $region19: #{clip_forward.43} parent=0 // pred_check_branch
    %21 = sbr.rel (%p19) target = $region21
  $region20: #{clip_forward.43} parent=0 // pred_region
    %22 = vst [vmem:[#allocation2] sm:$0xff] 0.0
    %23 = vst [vmem:[#allocation2 + $0x8] sm:$0x3] 0.0
  $region21: #{clip_forward.43} parent=0 // pred_fallthru
    _
  %v24 = vld [vmem:[#allocation2] sm:$0xff]
  %v25 = vld [vmem:[#allocation2 + $0x8] sm:$0x3]
  %v26 = vld [vmem:[%s0] sm:$0xff]
  %v27 = vld [vmem:[%s0 + $0x8] sm:$0xff]
  %v28 = vld [vmem:[%s0 + $0x10] sm:$0x11]
  %v29 = vld [vmem:[%s0 + $0x18] sm:$0x11]
  %v30 = vld [vmem:[%s1] sm:$0xf]
  %v31 = vld [vmem:[%s1 + $0x4] sm:$0xf]
  %v32 = vld [vmem:[%s1 + $0x8] sm:$0xf]
  %v33 = vld [vmem:[%s1 + $0xc] sm:$0xf]
  %v34 = vld [vmem:[%s1 + $0x10] sm:$0xf]
  %v35 = vld [vmem:[%s1 + $0x14] sm:$0xf]
  %v36 = vld [vmem:[%s1 + $0x18] sm:$0xf]
  %v37 = vld [vmem:[%s1 + $0x1c] sm:$0xf]
  %v38 = vld [vmem:[%s1 + $0x20] sm:$0xf]
  %v39 = vld [vmem:[%s1 + $0x24] sm:$0xf]
  %v40 = vld [vmem:[%s1 + $0x28] sm:$0xf]
  %v41 = vld [vmem:[%s1 + $0x2c] sm:$0xf]
  %v42 = vld [vmem:[%s1 + $0x30] sm:$0xf]
  %v43 = vld [vmem:[%s1 + $0x34] sm:$0xf]
  %v44 = vld [vmem:[%s1 + $0x38] sm:$0xf]
  %v45 = vld [vmem:[%s1 + $0x3c] sm:$0xf]
  %v46 = vld [vmem:[%s1 + $0x40] sm:$0xf]
  %v47 = vld [vmem:[%s1 + $0x44] sm:$0xf]
  %v48 = vld [vmem:[%s1 + $0x48] sm:$0xf]
  %v49 = vld [vmem:[%s1 + $0x4c] sm:$0xf]
  %v50 = vld [vmem:[%s1 + $0x50] sm:$0xf]
  %v51 = vld [vmem:[%s1 + $0x54] sm:$0xf]
  %v52 = vld [vmem:[%s1 + $0x58] sm:$0xf]
  %v53 = vld [vmem:[%s1 + $0x5c] sm:$0xf]
  %v54 = vld [vmem:[%s1 + $0x60] sm:$0xf]
  %v55 = vld [vmem:[%s1 + $0x64] sm:$0xf]
  %v56 = vld [vmem:[%s1 + $0x68] sm:$0xf]
  %v57 = vld [vmem:[%s1 + $0x6c] sm:$0xf]
  %v58 = vld [vmem:[%s1 + $0x70] sm:$0xf]
  %v59 = vld [vmem:[%s1 + $0x74] sm:$0xf]
  %v60 = vld [vmem:[%s1 + $0x78] sm:$0xf]
  %v61 = vld [vmem:[%s1 + $0x7c] sm:$0xf]
  %v62 = vld [vmem:[%s1 + $0x80] sm:$0xf]
  %v63 = vld [vmem:[%s1 + $0x84] sm:$0xf]
  %v64 = vld [vmem:[%s1 + $0x88] sm:$0xf]
  %v65 = vld [vmem:[%s1 + $0x8c] sm:$0xf]
  %v66 = vld [vmem:[%s1 + $0x90] sm:$0xf]
  %v67 = vld [vmem:[%s1 + $0x94] sm:$0xf]
  %v68 = vld [vmem:[%s1 + $0x98] sm:$0xf]
  %v69 = vld [vmem:[%s1 + $0x9c] sm:$0xf]
  %v70 = vld [vmem:[%s1 + $0xa0] sm:$0xf]
  %v71 = vld [vmem:[%s1 + $0xa4] sm:$0xf]
  %v72 = vld [vmem:[%s1 + $0xa8] sm:$0xf]
  %v73 = vld [vmem:[%s1 + $0xac] sm:$0xf]
  %v74 = vld [vmem:[%s1 + $0xb0] sm:$0xf]
  %v75 = vld [vmem:[%s1 + $0xb4] sm:$0xf]
  %v76 = vld [vmem:[%s1 + $0xb8] sm:$0xf]
  %v77 = vld [vmem:[%s1 + $0xbc] sm:$0xf]
  %v78 = vld [vmem:[%s1 + $0xc0] sm:$0xf]
  %v79 = vld [vmem:[%s1 + $0xc4] sm:$0xf]
  %v80 = vld [vmem:[%s1 + $0xc8] sm:$0xf]
  %v81 = vld [vmem:[%s1 + $0xcc] sm:$0xf]
  %v82 = vld [vmem:[%s1 + $0xd0] sm:$0xf]
  %v83 = vld [vmem:[%s1 + $0xd4] sm:$0xf]
  %v84 = vld [vmem:[%s1 + $0xd8] sm:$0xf]
  %v85 = vld [vmem:[%s1 + $0xdc] sm:$0xf]
  %v86 = vld [vmem:[%s1 + $0xe0] sm:$0xf]
  %v87 = vld [vmem:[%s1 + $0xe4] sm:$0xf]
  %v88 = vld [vmem:[%s1 + $0xe8] sm:$0xf]
  %v89 = vld [vmem:[%s1 + $0xec] sm:$0xf]
  %v90 = vld [vmem:[%s1 + $0xf0] sm:$0xf]
  %v91 = vld [vmem:[%s1 + $0xf4] sm:$0xf]
  %v92 = vld [vmem:[%s1 + $0xf8] sm:$0xf]
  %v93 = vld [vmem:[%s1 + $0xfc] sm:$0xf]
  %v98 = vunpack.c.l.b16 %v26
  %v99 = vunpack.c.h.b16 %v26
  %v100 = vunpack.c.l.b16 %v27
  %v101 = vunpack.c.h.b16 %v27
  %v102 = vunpack.c.l.b16 %v28
  %v103 = vunpack.c.h.b16 %v28
  %v104 = vunpack.c.l.b16 %v29
  %v105 = vunpack.c.h.b16 %v29
  %v106 = vpack.c.b16 %v102, %v98
  %v107 = vpack.c.b16 %v103, %v99
  %v108 = vpack.c.b16 %v104, %v100
  %v109 = vpack.c.b16 %v105, %v101
  %v178 = vunpack.c.l.b16 %v30
  %v179 = vunpack.c.l.b16 %v31
  %v180 = vunpack.c.l.b16 %v32
  %v181 = vunpack.c.l.b16 %v33
  %v182 = vunpack.c.l.b16 %v34
  %v183 = vunpack.c.l.b16 %v35
  %v184 = vunpack.c.l.b16 %v36
  %v185 = vunpack.c.l.b16 %v37
  %v186 = vunpack.c.l.b16 %v38
  %v187 = vunpack.c.l.b16 %v39
  %v188 = vunpack.c.l.b16 %v40
  %v189 = vunpack.c.l.b16 %v41
  %v190 = vunpack.c.l.b16 %v42
  %v191 = vunpack.c.l.b16 %v43
  %v192 = vunpack.c.l.b16 %v44
  %v193 = vunpack.c.l.b16 %v45
  %v194 = vunpack.c.l.b16 %v46
  %v195 = vunpack.c.l.b16 %v47
  %v196 = vunpack.c.l.b16 %v48
  %v197 = vunpack.c.l.b16 %v49
  %v198 = vunpack.c.l.b16 %v50
  %v199 = vunpack.c.l.b16 %v51
  %v200 = vunpack.c.l.b16 %v52
  %v201 = vunpack.c.l.b16 %v53
  %v202 = vunpack.c.l.b16 %v54
  %v203 = vunpack.c.l.b16 %v55
  %v204 = vunpack.c.l.b16 %v56
  %v205 = vunpack.c.l.b16 %v57
  %v206 = vunpack.c.l.b16 %v58
  %v207 = vunpack.c.l.b16 %v59
  %v208 = vunpack.c.l.b16 %v60
  %v209 = vunpack.c.l.b16 %v61
  %v210 = vunpack.c.l.b16 %v62
  %v211 = vunpack.c.l.b16 %v63
  %v212 = vunpack.c.l.b16 %v64
  %v213 = vunpack.c.l.b16 %v65
  %v214 = vunpack.c.l.b16 %v66
  %v215 = vunpack.c.l.b16 %v67
  %v216 = vunpack.c.l.b16 %v68
  %v217 = vunpack.c.l.b16 %v69
  %v218 = vunpack.c.l.b16 %v70
  %v219 = vunpack.c.l.b16 %v71
  %v220 = vunpack.c.l.b16 %v72
  %v221 = vunpack.c.l.b16 %v73
  %v222 = vunpack.c.l.b16 %v74
  %v223 = vunpack.c.l.b16 %v75
  %v224 = vunpack.c.l.b16 %v76
  %v225 = vunpack.c.l.b16 %v77
  %v226 = vunpack.c.l.b16 %v78
  %v227 = vunpack.c.l.b16 %v79
  %v228 = vunpack.c.l.b16 %v80
  %v229 = vunpack.c.l.b16 %v81
  %v230 = vunpack.c.l.b16 %v82
  %v231 = vunpack.c.l.b16 %v83
  %v232 = vunpack.c.l.b16 %v84
  %v233 = vunpack.c.l.b16 %v85
  %v234 = vunpack.c.l.b16 %v86
  %v235 = vunpack.c.l.b16 %v87
  %v236 = vunpack.c.l.b16 %v88
  %v237 = vunpack.c.l.b16 %v89
  %v238 = vunpack.c.l.b16 %v90
  %v239 = vunpack.c.l.b16 %v91
  %v240 = vunpack.c.l.b16 %v92
  %v241 = vunpack.c.l.b16 %v93
  %v242 = vpack.c.b16 %v179, %v178
  %v243 = vpack.c.b16 %v181, %v180
  %v244 = vpack.c.b16 %v183, %v182
  %v245 = vpack.c.b16 %v185, %v184
  %v246 = vpack.c.b16 %v187, %v186
  %v247 = vpack.c.b16 %v189, %v188
  %v248 = vpack.c.b16 %v191, %v190
  %v249 = vpack.c.b16 %v193, %v192
  %v250 = vpack.c.b16 %v195, %v194
  %v251 = vpack.c.b16 %v197, %v196
  %v252 = vpack.c.b16 %v199, %v198
  %v253 = vpack.c.b16 %v201, %v200
  %v254 = vpack.c.b16 %v203, %v202
  %v255 = vpack.c.b16 %v205, %v204
  %v256 = vpack.c.b16 %v207, %v206
  %v257 = vpack.c.b16 %v209, %v208
  %v258 = vpack.c.b16 %v211, %v210
  %v259 = vpack.c.b16 %v213, %v212
  %v260 = vpack.c.b16 %v215, %v214
  %v261 = vpack.c.b16 %v217, %v216
  %v262 = vpack.c.b16 %v219, %v218
  %v263 = vpack.c.b16 %v221, %v220
  %v264 = vpack.c.b16 %v223, %v222
  %v265 = vpack.c.b16 %v225, %v224
  %v266 = vpack.c.b16 %v227, %v226
  %v267 = vpack.c.b16 %v229, %v228
  %v268 = vpack.c.b16 %v231, %v230
  %v269 = vpack.c.b16 %v233, %v232
  %v270 = vpack.c.b16 %v235, %v234
  %v271 = vpack.c.b16 %v237, %v236
  %v272 = vpack.c.b16 %v239, %v238
  %v273 = vpack.c.b16 %v241, %v240
  %306 = vmatprep.subr.bf16.mxu0 0
  %307 = vmatpush1.bf16.msra.mxu0 %v249
  %308 = vmatprep.subr.bf16.mxu0 0
  %309 = vmatpush1.bf16.msra.mxu0 %v248
  %310 = vmatprep.subr.bf16.mxu0 0
  %311 = vmatpush1.bf16.msra.mxu0 %v247
  %312 = vmatprep.subr.bf16.mxu0 0
  %313 = vmatpush1.bf16.msra.mxu0 %v246
  %314 = vmatprep.subr.bf16.mxu0 0
  %315 = vmatpush1.bf16.msra.mxu0 %v245
  %316 = vmatprep.subr.bf16.mxu0 0
  %317 = vmatpush1.bf16.msra.mxu0 %v244
  %318 = vmatprep.subr.bf16.mxu0 0
  %319 = vmatpush1.bf16.msra.mxu0 %v243
  %320 = vmatprep.subr.bf16.mxu0 0
  %321 = vmatpush1.bf16.msra.mxu0 %v242
  %322 = vmatprep.subr.bf16.mxu0 0
  %323 = vmatpush2.bf16.msra.mxu0 %v257
  %324 = vmatprep.subr.bf16.mxu0 0
  %325 = vmatpush2.bf16.msra.mxu0 %v256
  %326 = vmatprep.subr.bf16.mxu0 0
  %327 = vmatpush2.bf16.msra.mxu0 %v255
  %328 = vmatprep.subr.bf16.mxu0 0
  %329 = vmatpush2.bf16.msra.mxu0 %v254
  %330 = vmatprep.subr.bf16.mxu0 0
  %331 = vmatpush2.bf16.msra.mxu0 %v253
  %332 = vmatprep.subr.bf16.mxu0 0
  %333 = vmatpush2.bf16.msra.mxu0 %v252
  %334 = vmatprep.subr.bf16.mxu0 0
  %335 = vmatpush2.bf16.msra.mxu0 %v251
  %336 = vmatprep.subr.bf16.mxu0 0
  %337 = vmatpush2.bf16.msra.mxu0 %v250
  %338 = vmatprep.mubr.bf16.mxu0 %v107
  %339 = vmatmul.mubr.bf16.gmra.mxu0 %v106
  %v340 = vpop.f32.mrf.mxu0
  %v341 = vadd.f32 0.0, %v340
  %v342 = vpop.f32.mrf.mxu0
  %v343 = vpop.f32.mrf.mxu0
  %v344 = vadd.f32 0.0, %v343
  %v345 = vpop.f32.mrf.mxu0
  %346 = vdwg.mxu0
  %347 = vmatprep.subr.bf16.mxu0 0
  %348 = vmatpush1.bf16.msra.mxu0 %v265
  %349 = vmatprep.subr.bf16.mxu0 0
  %350 = vmatpush1.bf16.msra.mxu0 %v264
  %351 = vmatprep.subr.bf16.mxu0 0
  %352 = vmatpush1.bf16.msra.mxu0 %v263
  %353 = vmatprep.subr.bf16.mxu0 0
  %354 = vmatpush1.bf16.msra.mxu0 %v262
  %355 = vmatprep.subr.bf16.mxu0 0
  %356 = vmatpush1.bf16.msra.mxu0 %v261
  %357 = vmatprep.subr.bf16.mxu0 0
  %358 = vmatpush1.bf16.msra.mxu0 %v260
  %359 = vmatprep.subr.bf16.mxu0 0
  %360 = vmatpush1.bf16.msra.mxu0 %v259
  %361 = vmatprep.subr.bf16.mxu0 0
  %362 = vmatpush1.bf16.msra.mxu0 %v258
  %363 = vmatprep.subr.bf16.mxu0 0
  %364 = vmatpush2.bf16.msra.mxu0 %v273
  %365 = vmatprep.subr.bf16.mxu0 0
  %366 = vmatpush2.bf16.msra.mxu0 %v272
  %367 = vmatprep.subr.bf16.mxu0 0
  %368 = vmatpush2.bf16.msra.mxu0 %v271
  %369 = vmatprep.subr.bf16.mxu0 0
  %370 = vmatpush2.bf16.msra.mxu0 %v270
  %371 = vmatprep.subr.bf16.mxu0 0
  %372 = vmatpush2.bf16.msra.mxu0 %v269
  %373 = vmatprep.subr.bf16.mxu0 0
  %374 = vmatpush2.bf16.msra.mxu0 %v268
  %375 = vmatprep.subr.bf16.mxu0 0
  %376 = vmatpush2.bf16.msra.mxu0 %v267
  %377 = vmatprep.subr.bf16.mxu0 0
  %378 = vmatpush2.bf16.msra.mxu0 %v266
  %379 = vmatprep.mubr.bf16.mxu0 %v109
  %380 = vmatmul.mubr.bf16.gmra.mxu0 %v108
  %v381 = vpop.f32.mrf.mxu0
  %v382 = vadd.f32 %v341, %v381
  %v383 = vpop.f32.mrf.mxu0
  %v384 = vpop.f32.mrf.mxu0
  %v385 = vadd.f32 %v344, %v384
  %v386 = vpop.f32.mrf.mxu0
  %387 = vdwg.mxu0
  %v388 = vadd.f32 %v24, %v382
  %v389 = vadd.f32 %v25, %v385
  %390 = vst [vmem:[#allocation2] sm:$0xff] %v388
  %391 = vst [vmem:[#allocation2 + $0x8] sm:$0x3] %v389
  // Predicated region
  $region22: #{clip_forward.43} parent=0 // pred_check
    %p392 = pneg %p18
  $region23: #{clip_forward.43} parent=0 // pred_check_branch
    %394 = sbr.rel (%p392) target = $region25
  $region24: #{clip_forward.43} parent=0 // pred_region
    %v395 = vld [vmem:[#allocation2] sm:$0xff]
    %v396 = vld [vmem:[#allocation2 + $0x8] sm:$0x3]
    %v397 = vld [vmem:[%s2] sm:$0x1]
    %v398 = vunpack.c.l.bf16 %v397
    %v399 = vlaneseq
    %v400 = vshrl.u32 %v399, 7
    %v401 = vsub.s32 0, %v400
    %v402 = vrot.slane %v398, %v401
    %v403 = vadd.f32 %v395, %v402
    %v404 = vadd.f32 %v396, %v402
    %v405 = vld [vmem:[%s3] sm:$0xf]
    %v406 = vld [vmem:[%s3 + $0x4] sm:$0x1]
    %v407 = vunpack.c.l.bf16 %v405
    %v408 = vunpack.c.l.bf16 %v406
    %v409 = vadd.f32 %v403, %v407
    %v410 = vadd.f32 %v404, %v408
    %v411 = vpack.c.bf16 %v410, %v409
    %v413 = vunpack.c.l.b16 %v411
    %v414 = vunpack.c.h.b16 %v411
    %v415 = vpack.c.b16 %v413, %v413
    %v416 = vpack.c.b16 %v414, %v414
    %419 = vst [vmem:[%s4] sm:$0xf] %v415
    %420 = vst [vmem:[%s4 + $0x4] sm:$0x1] %v416
  $region25: #{clip_forward.43} parent=0 // pred_fallthru
    _
  // Predicated region
  $region26: #{clip_forward.43} parent=0 // pred_check
    _
  $region27: #{clip_forward.43} parent=0 // pred_check_branch
    %422 = sbr.rel (0) target = $region29
  $region28: #{clip_forward.43} parent=0 // pred_region
    _
  $region29: #{clip_forward.43} parent=0 // pred_fallthru
    _
  // Predicated region
  $region30: #{clip_forward.43} parent=0 // pred_check
    _
  $region31: #{clip_forward.43} parent=0 // pred_check_branch
    %424 = sbr.rel (0) target = $region33
  $region32: #{clip_forward.43} parent=0 // pred_region
    _
  $region33: #{clip_forward.43} parent=0 // pred_fallthru
    _

// kernel: clip_forward.52
$region0: #{clip_forward.52}
  #allocation0 [shape = 'u32[]', space=smem, size = 0x4, offset = 0x4, fixed_abs, tag = 'smem constant byte address 0x4 - core index']
  #allocation1 [shape = 'u32[144,128]{1,0:T(1,128)}', space=vmem, size = 0x12000, scoped, tag = 'internal scratch']
  #allocation2 [shape = 'f32[2,32]{1,0:T(2,128)}', space=vmem, size = 0x400, scoped, tag = 'scratch operand']
  %s0 = inlined_call_operand.vmem [shape: bf16[2,128], index: 0, kind: input, shape index: {}]
  %s1 = inlined_call_operand.vmem [shape: bf16[128,32], index: 1, kind: input, shape index: {}]
  %s2 = inlined_call_operand.vmem [shape: bf16[2,32], index: 2, kind: output, shape index: {}]
  %s3 = sld [smem:[#allocation0]]
  $region26: #{clip_forward.52} parent=0
    _
  %s5 = ssub.s32 1, %s3
  %s6 = scalar_select 0, %s5, %s3
  // Predicated region
  $region2: #{clip_forward.52} parent=0 // pred_check
    _
  $region3: #{clip_forward.52} parent=0 // pred_check_branch
    %8 = sbr.rel (0) target = $region5
  $region4: #{clip_forward.52} parent=0 // pred_region
    _
  $region5: #{clip_forward.52} parent=0 // pred_fallthru
    _
  // Predicated region
  $region6: #{clip_forward.52} parent=0 // pred_check
    _
  $region7: #{clip_forward.52} parent=0 // pred_check_branch
    %10 = sbr.rel (0) target = $region9
  $region8: #{clip_forward.52} parent=0 // pred_region
    _
  $region9: #{clip_forward.52} parent=0 // pred_fallthru
    _
  %p12 = scmp.eq.s32.totalorder 0, 0
  // Predicated region
  $region10: #{clip_forward.52} parent=0 // pred_check
    %p13 = pneg %p12
  $region11: #{clip_forward.52} parent=0 // pred_check_branch
    %15 = sbr.rel (%p13) target = $region13
  $region12: #{clip_forward.52} parent=0 // pred_region
    %vm16 = vcmask 254976
    %17 = vst.msk [vmem:[#allocation2] sm:$0x3] %vm16, 0.0
  $region13: #{clip_forward.52} parent=0 // pred_fallthru
    _
  %v18 = vld [vmem:[#allocation2] sm:$0x3]
  %v19 = vld [vmem:[%s0] sm:$0x1]
  %v20 = vld [vmem:[%s1] sm:$0xf]
  %v21 = vld [vmem:[%s1 + $0x4] sm:$0xf]
  %v22 = vld [vmem:[%s1 + $0x8] sm:$0xf]
  %v23 = vld [vmem:[%s1 + $0xc] sm:$0xf]
  %v24 = vld [vmem:[%s1 + $0x10] sm:$0xf]
  %v25 = vld [vmem:[%s1 + $0x14] sm:$0xf]
  %v26 = vld [vmem:[%s1 + $0x18] sm:$0xf]
  %v27 = vld [vmem:[%s1 + $0x1c] sm:$0xf]
  %v28 = vld [vmem:[%s1 + $0x20] sm:$0xf]
  %v29 = vld [vmem:[%s1 + $0x24] sm:$0xf]
  %v30 = vld [vmem:[%s1 + $0x28] sm:$0xf]
  %v31 = vld [vmem:[%s1 + $0x2c] sm:$0xf]
  %v32 = vld [vmem:[%s1 + $0x30] sm:$0xf]
  %v33 = vld [vmem:[%s1 + $0x34] sm:$0xf]
  %v34 = vld [vmem:[%s1 + $0x38] sm:$0xf]
  %v35 = vld [vmem:[%s1 + $0x3c] sm:$0xf]
  %v52 = vunpack.c.l.b16 %v20
  %v53 = vunpack.c.l.b16 %v21
  %v54 = vunpack.c.l.b16 %v22
  %v55 = vunpack.c.l.b16 %v23
  %v56 = vunpack.c.l.b16 %v24
  %v57 = vunpack.c.l.b16 %v25
  %v58 = vunpack.c.l.b16 %v26
  %v59 = vunpack.c.l.b16 %v27
  %v60 = vunpack.c.l.b16 %v28
  %v61 = vunpack.c.l.b16 %v29
  %v62 = vunpack.c.l.b16 %v30
  %v63 = vunpack.c.l.b16 %v31
  %v64 = vunpack.c.l.b16 %v32
  %v65 = vunpack.c.l.b16 %v33
  %v66 = vunpack.c.l.b16 %v34
  %v67 = vunpack.c.l.b16 %v35
  %v68 = vpack.c.b16 %v53, %v52
  %v69 = vpack.c.b16 %v55, %v54
  %v70 = vpack.c.b16 %v57, %v56
  %v71 = vpack.c.b16 %v59, %v58
  %v72 = vpack.c.b16 %v61, %v60
  %v73 = vpack.c.b16 %v63, %v62
  %v74 = vpack.c.b16 %v65, %v64
  %v75 = vpack.c.b16 %v67, %v66
  %84 = vmatprep.subr.bf16.mxu0 0
  %85 = vmatpush1.bf16.msra.mxu0 %v75
  %86 = vmatprep.subr.bf16.mxu0 0
  %87 = vmatpush1.bf16.msra.mxu0 %v74
  %88 = vmatprep.subr.bf16.mxu0 0
  %89 = vmatpush1.bf16.msra.mxu0 %v73
  %90 = vmatprep.subr.bf16.mxu0 0
  %91 = vmatpush1.bf16.msra.mxu0 %v72
  %92 = vmatprep.subr.bf16.mxu0 0
  %93 = vmatpush1.bf16.msra.mxu0 %v71
  %94 = vmatprep.subr.bf16.mxu0 0
  %95 = vmatpush1.bf16.msra.mxu0 %v70
  %96 = vmatprep.subr.bf16.mxu0 0
  %97 = vmatpush1.bf16.msra.mxu0 %v69
  %98 = vmatprep.subr.bf16.mxu0 0
  %99 = vmatpush1.bf16.msra.mxu0 %v68
  %100 = vmatprep.subr.bf16.mxu0 0
  %101 = vmatpush2.bf16.msra.mxu0 0
  %102 = vmatprep.subr.bf16.mxu0 0
  %103 = vmatpush2.bf16.msra.mxu0 0
  %104 = vmatprep.subr.bf16.mxu0 0
  %105 = vmatpush2.bf16.msra.mxu0 0
  %106 = vmatprep.subr.bf16.mxu0 0
  %107 = vmatpush2.bf16.msra.mxu0 0
  %108 = vmatprep.subr.bf16.mxu0 0
  %109 = vmatpush2.bf16.msra.mxu0 0
  %110 = vmatprep.subr.bf16.mxu0 0
  %111 = vmatpush2.bf16.msra.mxu0 0
  %112 = vmatprep.subr.bf16.mxu0 0
  %113 = vmatpush2.bf16.msra.mxu0 0
  %114 = vmatprep.subr.bf16.mxu0 0
  %115 = vmatpush2.bf16.msra.mxu0 0
  %116 = vmatprep.mubr.bf16.mxu0 0
  %117 = vmatmul.mubr.bf16.gmra.mxu0 %v19
  %v118 = vpop.f32.mrf.mxu0
  %v119 = vadd.f32 0.0, %v118
  %v120 = vpop.f32.mrf.mxu0
  %v121 = vpop.f32.mrf.mxu0
  %v122 = vpop.f32.mrf.mxu0
  %123 = vdwg.mxu0
  %v124 = vadd.f32 %v18, %v119
  %vm125 = vcmask 254976
  %126 = vst.msk [vmem:[#allocation2] sm:$0x3] %vm125, %v124
  // Predicated region
  $region14: #{clip_forward.52} parent=0 // pred_check
    %p127 = pneg %p12
  $region15: #{clip_forward.52} parent=0 // pred_check_branch
    %129 = sbr.rel (%p127) target = $region17
  $region16: #{clip_forward.52} parent=0 // pred_region
    %v130 = vld [vmem:[#allocation2] sm:$0x3]
    %v131 = vpack.c.bf16 %v130, %v130
    %vm132 = vcmask 253952
    %133 = vst.msk [vmem:[%s2] sm:$0x1] %vm132, %v131
  $region17: #{clip_forward.52} parent=0 // pred_fallthru
    _
  // Predicated region
  $region18: #{clip_forward.52} parent=0 // pred_check
    _
  $region19: #{clip_forward.52} parent=0 // pred_check_branch
    %135 = sbr.rel (0) target = $region21
  $region20: #{clip_forward.52} parent=0 // pred_region
    _
  $region21: #{clip_forward.52} parent=0 // pred_fallthru
    _
  // Predicated region
  $region22: #{clip_forward.52} parent=0 // pred_check
    _
  $region23: #{clip_forward.52} parent=0 // pred_check_branch
    %137 = sbr.rel (0) target = $region25
  $region24: #{clip_forward.52} parent=0 // pred_region
    _
  $region25: #{clip_forward.52} parent=0 // pred_fallthru
    _

// kernel: clip_forward.53
$region0: #{clip_forward.53}
  #allocation0 [shape = 'u32[]', space=smem, size = 0x4, offset = 0x4, fixed_abs, tag = 'smem constant byte address 0x4 - core index']
  #allocation1 [shape = 'u32[144,128]{1,0:T(1,128)}', space=vmem, size = 0x12000, scoped, tag = 'internal scratch']
  %s0 = inlined_call_operand.vmem [shape: bf16[16,64], index: 0, kind: input, shape index: {}]
  %s1 = inlined_call_operand.vmem [shape: f32[1,64], index: 1, kind: input, shape index: {}]
  %s2 = inlined_call_operand.vmem [shape: f32[1,64], index: 2, kind: input, shape index: {}]
  %s3 = inlined_call_operand.vmem [shape: bf16[16,64], index: 3, kind: output, shape index: {}]
  %s4 = sld [smem:[#allocation0]]
  $region22: #{clip_forward.53} parent=0
    _
  %s6 = ssub.s32 1, %s4
  %s7 = scalar_select 0, %s6, %s4
  // Predicated region
  $region2: #{clip_forward.53} parent=0 // pred_check
    _
  $region3: #{clip_forward.53} parent=0 // pred_check_branch
    %9 = sbr.rel (0) target = $region5
  $region4: #{clip_forward.53} parent=0 // pred_region
    _
  $region5: #{clip_forward.53} parent=0 // pred_fallthru
    _
  // Predicated region
  $region6: #{clip_forward.53} parent=0 // pred_check
    _
  $region7: #{clip_forward.53} parent=0 // pred_check_branch
    %11 = sbr.rel (0) target = $region9
  $region8: #{clip_forward.53} parent=0 // pred_region
    _
  $region9: #{clip_forward.53} parent=0 // pred_fallthru
    _
  // Predicated region
  $region10: #{clip_forward.53} parent=0 // pred_check
    _
  $region11: #{clip_forward.53} parent=0 // pred_check_branch
    %13 = sbr.rel (0) target = $region13
  $region12: #{clip_forward.53} parent=0 // pred_region
    _
  $region13: #{clip_forward.53} parent=0 // pred_fallthru
    _
  %v14 = vld [vmem:[%s0] sm:$0xf]
  %v15 = vld [vmem:[%s0 + $0x4] sm:$0xf]
  %v16 = vunpack.c.l.bf16 %v14
  %v17 = vunpack.c.l.bf16 %v15
  %vm18 = vcmask 523264
  %v19 = vsel %vm18, %v16, 0.0
  %20 = vadd.xlane.f32.xlu0 %v19
  %v21 = vpop.xlane.xlu0 %20
  %v22 = vsel %vm18, %v17, 0.0
  %23 = vadd.xlane.f32.xlu0 %v22
  %v24 = vpop.xlane.xlu0 %23
  %v25 = vrcp.pop 64.0
  %v26 = vmul.f32 %v21, %v25
  %v27 = vmul.f32 %v24, %v25
  %v28 = vsub.f32 %v16, %v26
  %v29 = vsub.f32 %v17, %v27
  %v30 = vmul.f32 %v28, %v28
  %v31 = vmul.f32 %v29, %v29
  %v32 = vsel %vm18, %v30, 0.0
  %33 = vadd.xlane.f32.xlu0 %v32
  %v34 = vpop.xlane.xlu0 %33
  %v35 = vsel %vm18, %v31, 0.0
  %36 = vadd.xlane.f32.xlu0 %v35
  %v37 = vpop.xlane.xlu0 %36
  %v38 = vmul.f32 %v34, %v25
  %v39 = vmul.f32 %v37, %v25
  %v40 = vadd.f32 %v38, 1e-05
  %v41 = vadd.f32 %v39, 1e-05
  %v42 = vrsqrt.pop %v40
  %v43 = vrsqrt.pop %v41
  %v44 = vmul.f32 %v28, %v42
  %v45 = vmul.f32 %v29, %v43
  %v46 = vld [vmem:[%s1] sm:$0x1]
  %v48 = vlaneseq
  %v49 = vshrl.u32 %v48, 7
  %v50 = vsub.s32 0, %v49
  %v51 = vrot.slane %v46, %v50
  %v53 = vmul.f32 %v44, %v51
  %v54 = vmul.f32 %v45, %v51
  %v55 = vld [vmem:[%s2] sm:$0x1]
  %v57 = vlaneseq
  %v58 = vshrl.u32 %v57, 7
  %v59 = vsub.s32 0, %v58
  %v60 = vrot.slane %v55, %v59
  %v62 = vadd.f32 %v53, %v60
  %v63 = vadd.f32 %v54, %v60
  %v64 = vpack.c.bf16 %v63, %v62
  %v66 = vunpack.c.l.b16 %v64
  %v67 = vunpack.c.h.b16 %v64
  %v68 = vpack.c.b16 %v66, %v66
  %v69 = vpack.c.b16 %v67, %v67
  %vm72 = vcmask 519168
  %73 = vst.msk [vmem:[%s3] sm:$0xf] %vm72, %v68
  %74 = vst.msk [vmem:[%s3 + $0x4] sm:$0xf] %vm72, %v69
  // Predicated region
  $region14: #{clip_forward.53} parent=0 // pred_check
    _
  $region15: #{clip_forward.53} parent=0 // pred_check_branch
    %76 = sbr.rel (0) target = $region17
  $region16: #{clip_forward.53} parent=0 // pred_region
    _
  $region17: #{clip_forward.53} parent=0 // pred_fallthru
    _
  // Predicated region
  $region18: #{clip_forward.53} parent=0 // pred_check
    _
  $region19: #{clip_forward.53} parent=0 // pred_check_branch
    %78 = sbr.rel (0) target = $region21
  $region20: #{clip_forward.53} parent=0 // pred_region
    _
  $region21: #{clip_forward.53} parent=0 // pred_fallthru
    _

// kernel: clip_forward.54
$region0: #{clip_forward.54}
  #allocation0 [shape = 'u32[]', space=smem, size = 0x4, offset = 0x4, fixed_abs, tag = 'smem constant byte address 0x4 - core index']
  #allocation1 [shape = 'u32[144,128]{1,0:T(1,128)}', space=vmem, size = 0x12000, scoped, tag = 'internal scratch']
  #allocation2 [shape = 'f32[16,192]{1,0:T(8,128)}', space=vmem, size = 0x4000, scoped, tag = 'scratch operand']
  %s0 = inlined_call_operand.vmem [shape: bf16[16,64], index: 0, kind: input, shape index: {}]
  %s1 = inlined_call_operand.vmem [shape: bf16[64,192], index: 1, kind: input, shape index: {}]
  %s2 = inlined_call_operand.vmem [shape: bf16[1,192], index: 2, kind: input, shape index: {}]
  %s3 = inlined_call_operand.vmem [shape: bf16[16,192], index: 3, kind: output, shape index: {}]
  %s4 = sld [smem:[#allocation0]]
  $region30: #{clip_forward.54} parent=0
    _
  %s6 = ssub.s32 1, %s4
  %s7 = scalar_select 0, %s6, %s4
  // Predicated region
  $region2: #{clip_forward.54} parent=0 // pred_check
    _
  $region3: #{clip_forward.54} parent=0 // pred_check_branch
    %9 = sbr.rel (0) target = $region5
  $region4: #{clip_forward.54} parent=0 // pred_region
    _
  $region5: #{clip_forward.54} parent=0 // pred_fallthru
    _
  // Predicated region
  $region6: #{clip_forward.54} parent=0 // pred_check
    _
  $region7: #{clip_forward.54} parent=0 // pred_check_branch
    %11 = sbr.rel (0) target = $region9
  $region8: #{clip_forward.54} parent=0 // pred_region
    _
  $region9: #{clip_forward.54} parent=0 // pred_fallthru
    _
  // Predicated region
  $region10: #{clip_forward.54} parent=0 // pred_check
    _
  $region11: #{clip_forward.54} parent=0 // pred_check_branch
    %13 = sbr.rel (0) target = $region13
  $region12: #{clip_forward.54} parent=0 // pred_region
    _
  $region13: #{clip_forward.54} parent=0 // pred_fallthru
    _
  %p15 = scmp.eq.s32.totalorder 0, 0
  // Predicated region
  $region14: #{clip_forward.54} parent=0 // pred_check
    %p16 = pneg %p15
  $region15: #{clip_forward.54} parent=0 // pred_check_branch
    %18 = sbr.rel (%p16) target = $region17
  $region16: #{clip_forward.54} parent=0 // pred_region
    %19 = vst [vmem:[#allocation2] sm:$0xff] 0.0
    %vm20 = vcmask 523264
    %21 = vst.msk [vmem:[#allocation2 + $0x8] sm:$0xff] %vm20, 0.0
    %22 = vst [vmem:[#allocation2 + $0x10] sm:$0xff] 0.0
    %23 = vst.msk [vmem:[#allocation2 + $0x18] sm:$0xff] %vm20, 0.0
  $region17: #{clip_forward.54} parent=0 // pred_fallthru
    _
  %v24 = vld [vmem:[#allocation2] sm:$0xff]
  %v25 = vld [vmem:[#allocation2 + $0x8] sm:$0xff]
  %v26 = vld [vmem:[#allocation2 + $0x10] sm:$0xff]
  %v27 = vld [vmem:[#allocation2 + $0x18] sm:$0xff]
  %v28 = vld [vmem:[%s0] sm:$0xf]
  %v29 = vld [vmem:[%s0 + $0x4] sm:$0xf]
  %v30 = vld [vmem:[%s1] sm:$0xff]
  %v31 = vld [vmem:[%s1 + $0x8] sm:$0xff]
  %v32 = vld [vmem:[%s1 + $0x10] sm:$0xff]
  %v33 = vld [vmem:[%s1 + $0x18] sm:$0xff]
  %v34 = vld [vmem:[%s1 + $0x20] sm:$0xff]
  %v35 = vld [vmem:[%s1 + $0x28] sm:$0xff]
  %v36 = vld [vmem:[%s1 + $0x30] sm:$0xff]
  %v37 = vld [vmem:[%s1 + $0x38] sm:$0xff]
  %v40 = vunpack.c.l.b16 %v28
  %v41 = vunpack.c.l.b16 %v29
  %v42 = vpack.c.b16 %v41, %v40
  %v51 = vunpack.c.l.b16 %v30
  %v52 = vunpack.c.h.b16 %v30
  %v53 = vunpack.c.l.b16 %v31
  %v54 = vunpack.c.h.b16 %v31
  %v55 = vunpack.c.l.b16 %v32
  %v56 = vunpack.c.h.b16 %v32
  %v57 = vunpack.c.l.b16 %v33
  %v58 = vunpack.c.h.b16 %v33
  %v59 = vunpack.c.l.b16 %v34
  %v60 = vunpack.c.h.b16 %v34
  %v61 = vunpack.c.l.b16 %v35
  %v62 = vunpack.c.h.b16 %v35
  %v63 = vunpack.c.l.b16 %v36
  %v64 = vunpack.c.h.b16 %v36
  %v65 = vunpack.c.l.b16 %v37
  %v66 = vunpack.c.h.b16 %v37
  %v67 = vpack.c.b16 %v53, %v51
  %v68 = vpack.c.b16 %v54, %v52
  %v69 = vpack.c.b16 %v57, %v55
  %v70 = vpack.c.b16 %v58, %v56
  %v71 = vpack.c.b16 %v61, %v59
  %v72 = vpack.c.b16 %v62, %v60
  %v73 = vpack.c.b16 %v65, %v63
  %v74 = vpack.c.b16 %v66, %v64
  %vm83 = vcmask 523264
  %v85 = vsel %vm83, %v42, 0
  %87 = vmatprep.subr.bf16.mxu0 0
  %88 = vmatpush1.bf16.msra.mxu0 0
  %89 = vmatprep.subr.bf16.mxu0 0
  %90 = vmatpush1.bf16.msra.mxu0 0
  %91 = vmatprep.subr.bf16.mxu0 0
  %92 = vmatpush1.bf16.msra.mxu0 0
  %93 = vmatprep.subr.bf16.mxu0 0
  %94 = vmatpush1.bf16.msra.mxu0 0
  %95 = vmatprep.subr.bf16.mxu0 %v74
  %96 = vmatpush1.bf16.msra.mxu0 %v73
  %97 = vmatprep.subr.bf16.mxu0 %v72
  %98 = vmatpush1.bf16.msra.mxu0 %v71
  %99 = vmatprep.subr.bf16.mxu0 %v70
  %100 = vmatpush1.bf16.msra.mxu0 %v69
  %101 = vmatprep.subr.bf16.mxu0 %v68
  %102 = vmatpush1.bf16.msra.mxu0 %v67
  %103 = vmatprep.subr.bf16.mxu0 0
  %104 = vmatpush2.bf16.msra.mxu0 0
  %105 = vmatprep.subr.bf16.mxu0 0
  %106 = vmatpush2.bf16.msra.mxu0 0
  %107 = vmatprep.subr.bf16.mxu0 0
  %108 = vmatpush2.bf16.msra.mxu0 0
  %109 = vmatprep.subr.bf16.mxu0 0
  %110 = vmatpush2.bf16.msra.mxu0 0
  %111 = vmatprep.subr.bf16.mxu0 0
  %112 = vmatpush2.bf16.msra.mxu0 0
  %113 = vmatprep.subr.bf16.mxu0 0
  %114 = vmatpush2.bf16.msra.mxu0 0
  %115 = vmatprep.subr.bf16.mxu0 0
  %116 = vmatpush2.bf16.msra.mxu0 0
  %117 = vmatprep.subr.bf16.mxu0 0
  %118 = vmatpush2.bf16.msra.mxu0 0
  %119 = vmatprep.mubr.bf16.mxu0 0
  %120 = vmatmul.mubr.bf16.gmra.mxu0 %v85
  %v121 = vpop.f32.mrf.mxu0
  %v122 = vadd.f32 0.0, %v121
  %v123 = vpop.f32.mrf.mxu0
  %v124 = vadd.f32 0.0, %v123
  %v125 = vpop.f32.mrf.mxu0
  %v126 = vadd.f32 0.0, %v125
  %v127 = vpop.f32.mrf.mxu0
  %v128 = vadd.f32 0.0, %v127
  %129 = vdwg.mxu0
  %v130 = vadd.f32 %v24, %v122
  %v131 = vadd.f32 %v25, %v124
  %v132 = vadd.f32 %v26, %v126
  %v133 = vadd.f32 %v27, %v128
  %134 = vst [vmem:[#allocation2] sm:$0xff] %v130
  %135 = vst.msk [vmem:[#allocation2 + $0x8] sm:$0xff] %vm83, %v131
  %136 = vst [vmem:[#allocation2 + $0x10] sm:$0xff] %v132
  %137 = vst.msk [vmem:[#allocation2 + $0x18] sm:$0xff] %vm83, %v133
  // Predicated region
  $region18: #{clip_forward.54} parent=0 // pred_check
    %p138 = pneg %p15
  $region19: #{clip_forward.54} parent=0 // pred_check_branch
    %140 = sbr.rel (%p138) target = $region21
  $region20: #{clip_forward.54} parent=0 // pred_region
    %v141 = vld [vmem:[#allocation2] sm:$0xff]
    %v142 = vld [vmem:[#allocation2 + $0x8] sm:$0xff]
    %v143 = vld [vmem:[#allocation2 + $0x10] sm:$0xff]
    %v144 = vld [vmem:[#allocation2 + $0x18] sm:$0xff]
    %v145 = vld [vmem:[%s2] sm:$0x3]
    %v146 = vunpack.c.l.bf16 %v145
    %v148 = vlaneseq
    %v149 = vshrl.u32 %v148, 7
    %v150 = vsub.s32 0, %v149
    %v151 = vrot.slane %v146, %v150
    %v152 = vlaneseq
    %v153 = vshrl.u32 %v152, 7
    %v154 = vsub.s32 2, %v153
    %v155 = vrot.slane %v146, %v154
    %v158 = vlaneseq
    %v159 = vshrl.u32 %v158, 7
    %v160 = vsub.s32 0, %v159
    %v161 = vrot.slane %v151, %v160
    %v162 = vlaneseq
    %v163 = vshrl.u32 %v162, 7
    %v164 = vsub.s32 0, %v163
    %v165 = vrot.slane %v155, %v164
    %v166 = vadd.f32 %v141, %v161
    %v167 = vadd.f32 %v142, %v165
    %v168 = vadd.f32 %v143, %v161
    %v169 = vadd.f32 %v144, %v165
    %v170 = vpack.c.bf16 %v168, %v166
    %v171 = vpack.c.bf16 %v169, %v167
    %v174 = vunpack.c.l.b16 %v170
    %v175 = vunpack.c.l.b16 %v171
    %v176 = vunpack.c.h.b16 %v170
    %v177 = vunpack.c.h.b16 %v171
    %v178 = vpack.c.b16 %v175, %v174
    %v179 = vpack.c.b16 %v177, %v176
    %vm182 = vcmask 1043456
    %vm183 = vcmask 523268
    %vm184 = vmor %vm183, %vm182
    %185 = vst.msk [vmem:[%s3] sm:$0xff] %vm184, %v178
    %186 = vst.msk [vmem:[%s3 + $0x8] sm:$0xff] %vm184, %v179
  $region21: #{clip_forward.54} parent=0 // pred_fallthru
    _
  // Predicated region
  $region22: #{clip_forward.54} parent=0 // pred_check
    _
  $region23: #{clip_forward.54} parent=0 // pred_check_branch
    %188 = sbr.rel (0) target = $region25
  $region24: #{clip_forward.54} parent=0 // pred_region
    _
  $region25: #{clip_forward.54} parent=0 // pred_fallthru
    _
  // Predicated region
  $region26: #{clip_forward.54} parent=0 // pred_check
    _
  $region27: #{clip_forward.54} parent=0 // pred_check_branch
    %190 = sbr.rel (0) target = $region29
  $region28: #{clip_forward.54} parent=0 // pred_region
    _
  $region29: #{clip_forward.54} parent=0 // pred_fallthru
    _

// kernel: clip_forward.56
$region0: #{clip_forward.56}
  #allocation0 [shape = 'u32[]', space=smem, size = 0x4, offset = 0x4, fixed_abs, tag = 'smem constant byte address 0x4 - core index']
  #allocation1 [shape = 'u32[144,128]{1,0:T(1,128)}', space=vmem, size = 0x12000, scoped, tag = 'internal scratch']
  #allocation2 [shape = 'f32[16,64]{1,0:T(8,128)}', space=vmem, size = 0x2000, scoped, tag = 'scratch operand']
  %s0 = inlined_call_operand.vmem [shape: bf16[16,64], index: 0, kind: input, shape index: {}]
  %s1 = inlined_call_operand.vmem [shape: bf16[64,64], index: 1, kind: input, shape index: {}]
  %s2 = inlined_call_operand.vmem [shape: bf16[1,64], index: 2, kind: input, shape index: {}]
  %s3 = inlined_call_operand.vmem [shape: bf16[16,64], index: 3, kind: input, shape index: {}]
  %s4 = inlined_call_operand.vmem [shape: bf16[16,64], index: 4, kind: output, shape index: {}]
  %s5 = sld [smem:[#allocation0]]
  $region34: #{clip_forward.56} parent=0
    _
  %s7 = ssub.s32 1, %s5
  %s8 = scalar_select 0, %s7, %s5
  // Predicated region
  $region2: #{clip_forward.56} parent=0 // pred_check
    _
  $region3: #{clip_forward.56} parent=0 // pred_check_branch
    %10 = sbr.rel (0) target = $region5
  $region4: #{clip_forward.56} parent=0 // pred_region
    _
  $region5: #{clip_forward.56} parent=0 // pred_fallthru
    _
  // Predicated region
  $region6: #{clip_forward.56} parent=0 // pred_check
    _
  $region7: #{clip_forward.56} parent=0 // pred_check_branch
    %12 = sbr.rel (0) target = $region9
  $region8: #{clip_forward.56} parent=0 // pred_region
    _
  $region9: #{clip_forward.56} parent=0 // pred_fallthru
    _
  // Predicated region
  $region10: #{clip_forward.56} parent=0 // pred_check
    _
  $region11: #{clip_forward.56} parent=0 // pred_check_branch
    %14 = sbr.rel (0) target = $region13
  $region12: #{clip_forward.56} parent=0 // pred_region
    _
  $region13: #{clip_forward.56} parent=0 // pred_fallthru
    _
  // Predicated region
  $region14: #{clip_forward.56} parent=0 // pred_check
    _
  $region15: #{clip_forward.56} parent=0 // pred_check_branch
    %16 = sbr.rel (0) target = $region17
  $region16: #{clip_forward.56} parent=0 // pred_region
    _
  $region17: #{clip_forward.56} parent=0 // pred_fallthru
    _
  %p18 = scmp.eq.s32.totalorder 0, 0
  // Predicated region
  $region18: #{clip_forward.56} parent=0 // pred_check
    %p19 = pneg %p18
  $region19: #{clip_forward.56} parent=0 // pred_check_branch
    %21 = sbr.rel (%p19) target = $region21
  $region20: #{clip_forward.56} parent=0 // pred_region
    %vm22 = vcmask 523264
    %23 = vst.msk [vmem:[#allocation2] sm:$0xff] %vm22, 0.0
    %24 = vst.msk [vmem:[#allocation2 + $0x8] sm:$0xff] %vm22, 0.0
  $region21: #{clip_forward.56} parent=0 // pred_fallthru
    _
  %v25 = vld [vmem:[#allocation2] sm:$0xff]
  %v26 = vld [vmem:[#allocation2 + $0x8] sm:$0xff]
  %v27 = vld [vmem:[%s0] sm:$0xf]
  %v28 = vld [vmem:[%s0 + $0x4] sm:$0xf]
  %v29 = vld [vmem:[%s1] sm:$0xf]
  %v30 = vld [vmem:[%s1 + $0x4] sm:$0xf]
  %v31 = vld [vmem:[%s1 + $0x8] sm:$0xf]
  %v32 = vld [vmem:[%s1 + $0xc] sm:$0xf]
  %v33 = vld [vmem:[%s1 + $0x10] sm:$0xf]
  %v34 = vld [vmem:[%s1 + $0x14] sm:$0xf]
  %v35 = vld [vmem:[%s1 + $0x18] sm:$0xf]
  %v36 = vld [vmem:[%s1 + $0x1c] sm:$0xf]
  %v39 = vunpack.c.l.b16 %v27
  %v40 = vunpack.c.l.b16 %v28
  %v41 = vpack.c.b16 %v40, %v39
  %v50 = vunpack.c.l.b16 %v29
  %v51 = vunpack.c.l.b16 %v30
  %v52 = vunpack.c.l.b16 %v31
  %v53 = vunpack.c.l.b16 %v32
  %v54 = vunpack.c.l.b16 %v33
  %v55 = vunpack.c.l.b16 %v34
  %v56 = vunpack.c.l.b16 %v35
  %v57 = vunpack.c.l.b16 %v36
  %v58 = vpack.c.b16 %v51, %v50
  %v59 = vpack.c.b16 %v53, %v52
  %v60 = vpack.c.b16 %v55, %v54
  %v61 = vpack.c.b16 %v57, %v56
  %vm66 = vcmask 523264
  %v68 = vsel %vm66, %v41, 0
  %70 = vmatprep.subr.bf16.mxu0 0
  %71 = vmatpush1.bf16.msra.mxu0 0
  %72 = vmatprep.subr.bf16.mxu0 0
  %73 = vmatpush1.bf16.msra.mxu0 0
  %74 = vmatprep.subr.bf16.mxu0 0
  %75 = vmatpush1.bf16.msra.mxu0 0
  %76 = vmatprep.subr.bf16.mxu0 0
  %77 = vmatpush1.bf16.msra.mxu0 0
  %78 = vmatprep.subr.bf16.mxu0 0
  %79 = vmatpush1.bf16.msra.mxu0 %v61
  %80 = vmatprep.subr.bf16.mxu0 0
  %81 = vmatpush1.bf16.msra.mxu0 %v60
  %82 = vmatprep.subr.bf16.mxu0 0
  %83 = vmatpush1.bf16.msra.mxu0 %v59
  %84 = vmatprep.subr.bf16.mxu0 0
  %85 = vmatpush1.bf16.msra.mxu0 %v58
  %86 = vmatprep.subr.bf16.mxu0 0
  %87 = vmatpush2.bf16.msra.mxu0 0
  %88 = vmatprep.subr.bf16.mxu0 0
  %89 = vmatpush2.bf16.msra.mxu0 0
  %90 = vmatprep.subr.bf16.mxu0 0
  %91 = vmatpush2.bf16.msra.mxu0 0
  %92 = vmatprep.subr.bf16.mxu0 0
  %93 = vmatpush2.bf16.msra.mxu0 0
  %94 = vmatprep.subr.bf16.mxu0 0
  %95 = vmatpush2.bf16.msra.mxu0 0
  %96 = vmatprep.subr.bf16.mxu0 0
  %97 = vmatpush2.bf16.msra.mxu0 0
  %98 = vmatprep.subr.bf16.mxu0 0
  %99 = vmatpush2.bf16.msra.mxu0 0
  %100 = vmatprep.subr.bf16.mxu0 0
  %101 = vmatpush2.bf16.msra.mxu0 0
  %102 = vmatprep.mubr.bf16.mxu0 0
  %103 = vmatmul.mubr.bf16.gmra.mxu0 %v68
  %v104 = vpop.f32.mrf.mxu0
  %v105 = vadd.f32 0.0, %v104
  %v106 = vpop.f32.mrf.mxu0
  %v107 = vpop.f32.mrf.mxu0
  %v108 = vadd.f32 0.0, %v107
  %v109 = vpop.f32.mrf.mxu0
  %110 = vdwg.mxu0
  %v111 = vadd.f32 %v25, %v105
  %v112 = vadd.f32 %v26, %v108
  %113 = vst.msk [vmem:[#allocation2] sm:$0xff] %vm66, %v111
  %114 = vst.msk [vmem:[#allocation2 + $0x8] sm:$0xff] %vm66, %v112
  // Predicated region
  $region22: #{clip_forward.56} parent=0 // pred_check
    %p115 = pneg %p18
  $region23: #{clip_forward.56} parent=0 // pred_check_branch
    %117 = sbr.rel (%p115) target = $region25
  $region24: #{clip_forward.56} parent=0 // pred_region
    %v118 = vld [vmem:[#allocation2] sm:$0xff]
    %v119 = vld [vmem:[#allocation2 + $0x8] sm:$0xff]
    %v120 = vld [vmem:[%s2] sm:$0x1]
    %v121 = vunpack.c.l.bf16 %v120
    %v122 = vlaneseq
    %v123 = vshrl.u32 %v122, 7
    %v124 = vsub.s32 0, %v123
    %v125 = vrot.slane %v121, %v124
    %v126 = vadd.f32 %v118, %v125
    %v127 = vadd.f32 %v119, %v125
    %v128 = vld [vmem:[%s3] sm:$0xf]
    %v129 = vld [vmem:[%s3 + $0x4] sm:$0xf]
    %v130 = vunpack.c.l.bf16 %v128
    %v131 = vunpack.c.l.bf16 %v129
    %v132 = vadd.f32 %v126, %v130
    %v133 = vadd.f32 %v127, %v131
    %v134 = vpack.c.bf16 %v133, %v132
    %v136 = vunpack.c.l.b16 %v134
    %v137 = vunpack.c.h.b16 %v134
    %v138 = vpack.c.b16 %v136, %v136
    %v139 = vpack.c.b16 %v137, %v137
    %vm142 = vcmask 519168
    %143 = vst.msk [vmem:[%s4] sm:$0xf] %vm142, %v138
    %144 = vst.msk [vmem:[%s4 + $0x4] sm:$0xf] %vm142, %v139
  $region25: #{clip_forward.56} parent=0 // pred_fallthru
    _
  // Predicated region
  $region26: #{clip_forward.56} parent=0 // pred_check
    _
  $region27: #{clip_forward.56} parent=0 // pred_check_branch
    %146 = sbr.rel (0) target = $region29
  $region28: #{clip_forward.56} parent=0 // pred_region
    _
  $region29: #{clip_forward.56} parent=0 // pred_fallthru
    _
  // Predicated region
  $region30: #{clip_forward.56} parent=0 // pred_check
    _
  $region31: #{clip_forward.56} parent=0 // pred_check_branch
    %148 = sbr.rel (0) target = $region33
  $region32: #{clip_forward.56} parent=0 // pred_region
    _
  $region33: #{clip_forward.56} parent=0 // pred_fallthru
    _

// kernel: clip_forward.55
$region0: #{clip_forward.55}
  #allocation0 [shape = 'u32[]', space=smem, size = 0x4, offset = 0x4, fixed_abs, tag = 'smem constant byte address 0x4 - core index']
  #allocation1 [shape = 'u32[144,128]{1,0:T(1,128)}', space=vmem, size = 0x12000, scoped, tag = 'internal scratch']
  %s0 = inlined_call_operand.vmem [shape: bf16[2,8,192], index: 0, kind: input, shape index: {}]
  %s1 = inlined_call_operand.vmem [shape: bf16[2,8,64], index: 1, kind: output, shape index: {}]
  %s2 = sld [smem:[#allocation0]]
  $region37: #{clip_forward.55} parent=0
    _
  %s4 = ssub.s32 1, %s2
  %s5 = scalar_select 0, %s4, %s2
  loop: start=0, step=1, limit=4
  $region2: #{clip_forward.55} parent=0 // loop_pre_header
    _
  $region3: #{clip_forward.55} parent=0 // loop_header
    %s7 = sphi 0, %s11
    %p8 = scmp.ge.s32.totalorder %s7, 4
    %s17 = sphi 0, %s19
    %s20 = sphi 0, %s17
    %s21 = sphi 0, %s20
    %s37 = sphi 0, %s21
    %s43 = sphi 0, %s45
    %s46 = sphi 0, %s43
    %s47 = sphi 0, %s46
    %s63 = sphi 0, %s47
  $region4: #{clip_forward.55} parent=0 // loop_header_branch
    %10 = sbr.rel (%p8) target = $region8
  $region5: #{clip_forward.55} parent=0 // loop_body
    %s12 = ssub.s32 %s7, 1
    %s13 = ssub.s32 %s7, 2
    %s14 = sadd.s32 %s7, 1
    %s15 = ssub.s32 %s7, %s14
    %p16 = scmp.eq.s32.totalorder %s15, 0
    %s18 = sadd.s32 %s17, 1
    %s19 = scalar_select %p16, %s17, %s18
    %p22 = pneg %p16
    %p23 = scmp.eq.s32.totalorder %s7, 1
    %p24 = por %p22, %p23
    %p25 = scmp.ne.s32.totalorder %s17, %s20
    %p26 = scmp.eq.s32.totalorder %s7, 0
    %p27 = por %p25, %p26
    %p28 = scmp.ne.s32.totalorder %s17, %s20
    %p29 = scmp.eq.s32.totalorder %s12, 1
    %p30 = por %p28, %p29
    %p31 = scmp.ne.s32.totalorder %s20, %s21
    %p32 = scmp.eq.s32.totalorder %s12, 0
    %p33 = por %p31, %p32
    %p34 = scmp.ne.s32.totalorder %s20, %s21
    %p35 = scmp.eq.s32.totalorder %s13, 1
    %p36 = por %p34, %p35
    %p38 = scmp.ne.s32.totalorder %s21, %s37
    %p39 = scmp.eq.s32.totalorder %s13, 0
    %p40 = por %p38, %p39
    %s41 = ssub.s32 %s7, %s14
    %p42 = scmp.eq.s32.totalorder %s41, 0
    %s44 = sadd.s32 %s43, 1
    %s45 = scalar_select %p42, %s43, %s44
    %p48 = pneg %p42
    %p49 = scmp.eq.s32.totalorder %s7, 1
    %p50 = por %p48, %p49
    %p51 = scmp.ne.s32.totalorder %s43, %s46
    %p52 = scmp.eq.s32.totalorder %s7, 0
    %p53 = por %p51, %p52
    %p54 = scmp.ne.s32.totalorder %s43, %s46
    %p55 = scmp.eq.s32.totalorder %s12, 1
    %p56 = por %p54, %p55
    %p57 = scmp.ne.s32.totalorder %s46, %s47
    %p58 = scmp.eq.s32.totalorder %s12, 0
    %p59 = por %p57, %p58
    %p60 = scmp.ne.s32.totalorder %s46, %s47
    %p61 = scmp.eq.s32.totalorder %s13, 1
    %p62 = por %p60, %p61
    %p64 = scmp.ne.s32.totalorder %s47, %s63
    %p65 = scmp.eq.s32.totalorder %s13, 0
    %p66 = por %p64, %p65
    %p67 = scmp.le.s32.totalorder 1, %s7
    %p68 = scmp.lt.s32.totalorder %s7, 3
    %p69 = pnand %p67, %p68
    %p70 = pneg %p69
    // Predicated region
    $region9: #{clip_forward.55} parent=5 // pred_check
      _
    $region10: #{clip_forward.55} parent=5 // pred_check_branch
      %72 = sbr.rel (%p69) target = $region12
    $region11: #{clip_forward.55} parent=5 // pred_region
      %s73 = ssub.s32 %s7, 1
    $region12: #{clip_forward.55} parent=5 // pred_fallthru
      _
    %p74 = scmp.lt.s32.totalorder %s7, 2
    // Predicated region
    $region13: #{clip_forward.55} parent=5 // pred_check
      %p75 = pneg %p74
    $region14: #{clip_forward.55} parent=5 // pred_check_branch
      %77 = sbr.rel (%p75) target = $region16
    $region15: #{clip_forward.55} parent=5 // pred_region
      // Predicated region
      $region17: #{clip_forward.55} parent=15 // pred_check
        %p78 = pneg %p27
      $region18: #{clip_forward.55} parent=15 // pred_check_branch
        %80 = sbr.rel (%p78) target = $region20
      $region19: #{clip_forward.55} parent=15 // pred_region
        %p81 = scmp.lt.s32.totalorder %s7, 1
        %s82 = scalar_select %p81, %s7, 1
        %s83 = smul.addr %s82, 2
        %s84 = smul.addr %s83, 4
        %s85 = scalar_lea.vmem %s0, %s84
      $region20: #{clip_forward.55} parent=15 // pred_fallthru
        _
    $region16: #{clip_forward.55} parent=5 // pred_fallthru
      _
    %p86 = scmp.le.s32.totalorder 1, %s7
    %p87 = scmp.lt.s32.totalorder %s7, 3
    %p88 = pnand %p86, %p87
    %p89 = pneg %p88
    // Predicated region
    $region21: #{clip_forward.55} parent=5 // pred_check
      _
    $region22: #{clip_forward.55} parent=5 // pred_check_branch
      %91 = sbr.rel (%p88) target = $region24
    $region23: #{clip_forward.55} parent=5 // pred_region
      %s92 = ssub.s32 %s7, 1
      %p93 = scmp.lt.s32.totalorder %s12, 1
      %s94 = scalar_select %p93, %s12, 1
      %s95 = smul.addr %s94, 2
      %s96 = smul.addr %s95, 4
      %s97 = scalar_lea.vmem %s0, %s96
      %p98 = pneg %p33
      %p99 = pneg %p30
      %p100 = pneg %p59
      %p101 = pneg %p56
      %p102 = scmp.lt.s32.totalorder %s12, 1
      %s103 = scalar_select %p102, %s12, 1
      %s104 = smul.addr %s103, 4
      %s105 = scalar_lea.vmem %s1, %s104
      %p106 = scmp.lt.s32.totalorder %s12, 1
      %s107 = scalar_select %p106, %s12, 1
      %s108 = smul.addr %s107, 2
      %s109 = smul.addr %s108, 4
      %s110 = scalar_lea.vmem %s0, %s109
      %p111 = scmp.lt.s32.totalorder %s12, 1
      %s112 = scalar_select %p111, %s12, 1
      %s113 = smul.addr %s112, 4
      %s114 = scalar_lea.vmem %s1, %s113
      %v116 = vld [vmem:[%s110] sm:$0xff]
      %v117 = vlaneseq
      %v118 = vshrl.u32 %v117, 7
      %v119 = vlaneseq
      %v120 = vand.u32 %v119, 127
      %vm121 = vcmp.gt.s32.totalorder %v120, %v118
      %v122 = vsel %vm121, -inf, 0.0
      %v124 = vunpack.c.l.b16 %v116
      %v125 = vpack.c.b16 %v124, %v124
      %126 = vrot.lane.b32.xlu0 %v125, 64
      %v127 = vpop.permute.xlu0 %126
      %vm128 = vcmask 261120
      %v130 = vsel %vm128, %v116, 0
      %v133 = vsel %vm128, %v127, 0
      %135 = vmatprep.subr.bf16.mxu0 0
      %136 = vmatpush1.bf16.xpose.msra.mxu0 0
      %137 = vmatprep.subr.bf16.mxu0 0
      %138 = vmatpush1.bf16.xpose.msra.mxu0 0
      %139 = vmatprep.subr.bf16.mxu0 0
      %140 = vmatpush1.bf16.xpose.msra.mxu0 0
      %141 = vmatprep.subr.bf16.mxu0 0
      %142 = vmatpush1.bf16.xpose.msra.mxu0 0
      %143 = vmatprep.subr.bf16.mxu0 0
      %144 = vmatpush1.bf16.xpose.msra.mxu0 0
      %145 = vmatprep.subr.bf16.mxu0 0
      %146 = vmatpush1.bf16.xpose.msra.mxu0 0
      %147 = vmatprep.subr.bf16.mxu0 0
      %148 = vmatpush1.bf16.xpose.msra.mxu0 0
      %149 = vmatprep.subr.bf16.mxu0 0
      %150 = vmatpush1.bf16.xpose.msra.mxu0 %v133
      %151 = vmatprep.subr.bf16.mxu0 0
      %152 = vmatpush2.bf16.xpose.msra.mxu0 0
      %153 = vmatprep.subr.bf16.mxu0 0
      %154 = vmatpush2.bf16.xpose.msra.mxu0 0
      %155 = vmatprep.subr.bf16.mxu0 0
      %156 = vmatpush2.bf16.xpose.msra.mxu0 0
      %157 = vmatprep.subr.bf16.mxu0 0
      %158 = vmatpush2.bf16.xpose.msra.mxu0 0
      %159 = vmatprep.subr.bf16.mxu0 0
      %160 = vmatpush2.bf16.xpose.msra.mxu0 0
      %161 = vmatprep.subr.bf16.mxu0 0
      %162 = vmatpush2.bf16.xpose.msra.mxu0 0
      %163 = vmatprep.subr.bf16.mxu0 0
      %164 = vmatpush2.bf16.xpose.msra.mxu0 0
      %165 = vmatprep.subr.bf16.mxu0 0
      %166 = vmatpush2.bf16.xpose.msra.mxu0 0
      %167 = vmatprep.mubr.bf16.mxu0 0
      %168 = vmatmul.mubr.bf16.gmra.mxu0 %v130
      %v169 = vpop.f32.mrf.mxu0
      %v170 = vadd.f32 0.0, %v169
      %v171 = vpop.f32.mrf.mxu0
      %v172 = vpop.f32.mrf.mxu0
      %v173 = vpop.f32.mrf.mxu0
      %174 = vdwg.mxu0
      %v175 = vmul.f32 %v170, 0.17677669
      %v176 = vadd.f32 %v175, %v122
      %vm177 = vcmask 64512
      %v178 = vsel %vm177, %v176, -inf
      %179 = vmax.xlane.f32.xlu0 %v178
      %v180 = vpop.xlane.xlu0 %179
      %v181 = vsub.f32 %v176, %v180
      %v182 = vmul.f32 %v181, 1.442695
      %v183 = vpow.pop %v182
      %v184 = vsel %vm177, %v183, 0.0
      %185 = vadd.xlane.f32.xlu0 %v184
      %v186 = vpop.xlane.xlu0 %185
      %v187 = vrcp.pop %v186
      %v188 = vmul.f32 %v183, %v187
      %v189 = vpack.c.bf16 %v188, %v188
      %v190 = vunpack.c.h.b16 %v116
      %v191 = vpack.c.b16 %v190, %v190
      %v193 = vsel %vm177, %v189, 0
      %vm195 = vcmask 1043456
      %v197 = vsel %vm195, %v191, 0
      %199 = vmatprep.subr.bf16.mxu0 0
      %200 = vmatpush1.bf16.msra.mxu0 0
      %201 = vmatprep.subr.bf16.mxu0 0
      %202 = vmatpush1.bf16.msra.mxu0 0
      %203 = vmatprep.subr.bf16.mxu0 0
      %204 = vmatpush1.bf16.msra.mxu0 0
      %205 = vmatprep.subr.bf16.mxu0 0
      %206 = vmatpush1.bf16.msra.mxu0 0
      %207 = vmatprep.subr.bf16.mxu0 0
      %208 = vmatpush1.bf16.msra.mxu0 0
      %209 = vmatprep.subr.bf16.mxu0 0
      %210 = vmatpush1.bf16.msra.mxu0 0
      %211 = vmatprep.subr.bf16.mxu0 0
      %212 = vmatpush1.bf16.msra.mxu0 0
      %213 = vmatprep.subr.bf16.mxu0 0
      %214 = vmatpush1.bf16.msra.mxu0 %v197
      %215 = vmatprep.subr.bf16.mxu0 0
      %216 = vmatpush2.bf16.msra.mxu0 0
      %217 = vmatprep.subr.bf16.mxu0 0
      %218 = vmatpush2.bf16.msra.mxu0 0
      %219 = vmatprep.subr.bf16.mxu0 0
      %220 = vmatpush2.bf16.msra.mxu0 0
      %221 = vmatprep.subr.bf16.mxu0 0
      %222 = vmatpush2.bf16.msra.mxu0 0
      %223 = vmatprep.subr.bf16.mxu0 0
      %224 = vmatpush2.bf16.msra.mxu0 0
      %225 = vmatprep.subr.bf16.mxu0 0
      %226 = vmatpush2.bf16.msra.mxu0 0
      %227 = vmatprep.subr.bf16.mxu0 0
      %228 = vmatpush2.bf16.msra.mxu0 0
      %229 = vmatprep.subr.bf16.mxu0 0
      %230 = vmatpush2.bf16.msra.mxu0 0
      %231 = vmatprep.mubr.bf16.mxu0 0
      %232 = vmatmul.mubr.bf16.gmra.mxu0 %v193
      %v233 = vpop.f32.mrf.mxu0
      %v234 = vadd.f32 0.0, %v233
      %v235 = vpop.f32.mrf.mxu0
      %v236 = vpop.f32.mrf.mxu0
      %v237 = vpop.f32.mrf.mxu0
      %238 = vdwg.mxu0
      %239 = vrot.lane.b32.xlu0 %v125, 96
      %v240 = vpop.permute.xlu0 %239
      %241 = vrot.lane.b32.xlu0 %v125, 32
      %v242 = vpop.permute.xlu0 %241
      %v244 = vsel %vm128, %v240, 0
      %v247 = vsel %vm128, %v242, 0
      %249 = vmatprep.subr.bf16.mxu0 0
      %250 = vmatpush1.bf16.xpose.msra.mxu0 0
      %251 = vmatprep.subr.bf16.mxu0 0
      %252 = vmatpush1.bf16.xpose.msra.mxu0 0
      %253 = vmatprep.subr.bf16.mxu0 0
      %254 = vmatpush1.bf16.xpose.msra.mxu0 0
      %255 = vmatprep.subr.bf16.mxu0 0
      %256 = vmatpush1.bf16.xpose.msra.mxu0 0
      %257 = vmatprep.subr.bf16.mxu0 0
      %258 = vmatpush1.bf16.xpose.msra.mxu0 0
      %259 = vmatprep.subr.bf16.mxu0 0
      %260 = vmatpush1.bf16.xpose.msra.mxu0 0
      %261 = vmatprep.subr.bf16.mxu0 0
      %262 = vmatpush1.bf16.xpose.msra.mxu0 0
      %263 = vmatprep.subr.bf16.mxu0 0
      %264 = vmatpush1.bf16.xpose.msra.mxu0 %v247
      %265 = vmatprep.subr.bf16.mxu0 0
      %266 = vmatpush2.bf16.xpose.msra.mxu0 0
      %267 = vmatprep.subr.bf16.mxu0 0
      %268 = vmatpush2.bf16.xpose.msra.mxu0 0
      %269 = vmatprep.subr.bf16.mxu0 0
      %270 = vmatpush2.bf16.xpose.msra.mxu0 0
      %271 = vmatprep.subr.bf16.mxu0 0
      %272 = vmatpush2.bf16.xpose.msra.mxu0 0
      %273 = vmatprep.subr.bf16.mxu0 0
      %274 = vmatpush2.bf16.xpose.msra.mxu0 0
      %275 = vmatprep.subr.bf16.mxu0 0
      %276 = vmatpush2.bf16.xpose.msra.mxu0 0
      %277 = vmatprep.subr.bf16.mxu0 0
      %278 = vmatpush2.bf16.xpose.msra.mxu0 0
      %279 = vmatprep.subr.bf16.mxu0 0
      %280 = vmatpush2.bf16.xpose.msra.mxu0 0
      %281 = vmatprep.mubr.bf16.mxu0 0
      %282 = vmatmul.mubr.bf16.gmra.mxu0 %v244
      %v283 = vpop.f32.mrf.mxu0
      %v284 = vadd.f32 0.0, %v283
      %v285 = vpop.f32.mrf.mxu0
      %v286 = vpop.f32.mrf.mxu0
      %v287 = vpop.f32.mrf.mxu0
      %288 = vdwg.mxu0
      %v289 = vmul.f32 %v284, 0.17677669
      %v290 = vadd.f32 %v289, %v122
      %v291 = vsel %vm177, %v290, -inf
      %292 = vmax.xlane.f32.xlu0 %v291
      %v293 = vpop.xlane.xlu0 %292
      %v294 = vsub.f32 %v290, %v293
      %v295 = vmul.f32 %v294, 1.442695
      %v296 = vpow.pop %v295
      %v297 = vsel %vm177, %v296, 0.0
      %298 = vadd.xlane.f32.xlu0 %v297
      %v299 = vpop.xlane.xlu0 %298
      %v300 = vrcp.pop %v299
      %v301 = vmul.f32 %v296, %v300
      %v302 = vpack.c.bf16 %v301, %v301
      %303 = vrot.lane.b32.xlu0 %v191, 96
      %v304 = vpop.permute.xlu0 %303
      %v306 = vsel %vm177, %v302, 0
      %v309 = vsel %vm195, %v304, 0
      %311 = vmatprep.subr.bf16.mxu0 0
      %312 = vmatpush1.bf16.msra.mxu0 0
      %313 = vmatprep.subr.bf16.mxu0 0
      %314 = vmatpush1.bf16.msra.mxu0 0
      %315 = vmatprep.subr.bf16.mxu0 0
      %316 = vmatpush1.bf16.msra.mxu0 0
      %317 = vmatprep.subr.bf16.mxu0 0
      %318 = vmatpush1.bf16.msra.mxu0 0
      %319 = vmatprep.subr.bf16.mxu0 0
      %320 = vmatpush1.bf16.msra.mxu0 0
      %321 = vmatprep.subr.bf16.mxu0 0
      %322 = vmatpush1.bf16.msra.mxu0 0
      %323 = vmatprep.subr.bf16.mxu0 0
      %324 = vmatpush1.bf16.msra.mxu0 0
      %325 = vmatprep.subr.bf16.mxu0 0
      %326 = vmatpush1.bf16.msra.mxu0 %v309
      %327 = vmatprep.subr.bf16.mxu0 0
      %328 = vmatpush2.bf16.msra.mxu0 0
      %329 = vmatprep.subr.bf16.mxu0 0
      %330 = vmatpush2.bf16.msra.mxu0 0
      %331 = vmatprep.subr.bf16.mxu0 0
      %332 = vmatpush2.bf16.msra.mxu0 0
      %333 = vmatprep.subr.bf16.mxu0 0
      %334 = vmatpush2.bf16.msra.mxu0 0
      %335 = vmatprep.subr.bf16.mxu0 0
      %336 = vmatpush2.bf16.msra.mxu0 0
      %337 = vmatprep.subr.bf16.mxu0 0
      %338 = vmatpush2.bf16.msra.mxu0 0
      %339 = vmatprep.subr.bf16.mxu0 0
      %340 = vmatpush2.bf16.msra.mxu0 0
      %341 = vmatprep.subr.bf16.mxu0 0
      %342 = vmatpush2.bf16.msra.mxu0 0
      %343 = vmatprep.mubr.bf16.mxu0 0
      %344 = vmatmul.mubr.bf16.gmra.mxu0 %v306
      %v345 = vpop.f32.mrf.mxu0
      %v346 = vadd.f32 0.0, %v345
      %v347 = vpop.f32.mrf.mxu0
      %v348 = vpop.f32.mrf.mxu0
      %v349 = vpop.f32.mrf.mxu0
      %350 = vdwg.mxu0
      %352 = vrot.lane.b32.xlu0 %v346, 32
      %v353 = vpop.permute.xlu0 %352
      %v355 = vsel %vm128, %v234, %v353
      %v356 = vpack.c.bf16 %v355, %v355
      %vm357 = vcmask 519168
      %358 = vst.msk [vmem:[%s114] sm:$0xf] %vm357, %v356
      %p359 = scmp.lt.s32.totalorder %s12, 1
      %s360 = scalar_select %p359, %s12, 1
      %s361 = smul.addr %s360, 4
      %s362 = scalar_lea.vmem %s1, %s361
      // Predicated region
      $region25: #{clip_forward.55} parent=23 // pred_check
        %p363 = pneg %p56
      $region26: #{clip_forward.55} parent=23 // pred_check_branch
        %365 = sbr.rel (%p363) target = $region28
      $region27: #{clip_forward.55} parent=23 // pred_region
        _
      $region28: #{clip_forward.55} parent=23 // pred_fallthru
        _
    $region24: #{clip_forward.55} parent=5 // pred_fallthru
      _
    %p366 = scmp.le.s32.totalorder 2, %s7
    // Predicated region
    $region29: #{clip_forward.55} parent=5 // pred_check
      %p367 = pneg %p366
    $region30: #{clip_forward.55} parent=5 // pred_check_branch
      %369 = sbr.rel (%p367) target = $region32
    $region31: #{clip_forward.55} parent=5 // pred_region
      %s370 = ssub.s32 %s7, 2
      // Predicated region
      $region33: #{clip_forward.55} parent=31 // pred_check
        %p371 = pneg %p62
      $region34: #{clip_forward.55} parent=31 // pred_check_branch
        %373 = sbr.rel (%p371) target = $region36
      $region35: #{clip_forward.55} parent=31 // pred_region
        %p374 = scmp.lt.s32.totalorder %s13, 1
        %s375 = scalar_select %p374, %s13, 1
        %s376 = smul.addr %s375, 4
        %s377 = scalar_lea.vmem %s1, %s376
      $region36: #{clip_forward.55} parent=31 // pred_fallthru
        _
    $region32: #{clip_forward.55} parent=5 // pred_fallthru
      _
  $region6: #{clip_forward.55} parent=0 // loop_footer
    %s11 = sadd.s32 1, %s7
  $region7: #{clip_forward.55} parent=0 // loop_footer_branch
    %6 = sbr.rel target = $region3
  $region8: #{clip_forward.55} parent=0 // loop_exit
    _

// kernel: clip_forward.58
$region0: #{clip_forward.58}
  #allocation0 [shape = 'u32[]', space=smem, size = 0x4, offset = 0x4, fixed_abs, tag = 'smem constant byte address 0x4 - core index']
  #allocation1 [shape = 'u32[144,128]{1,0:T(1,128)}', space=vmem, size = 0x12000, scoped, tag = 'internal scratch']
  #allocation2 [shape = 'f32[16,256]{1,0:T(8,128)}', space=vmem, size = 0x4000, scoped, tag = 'scratch operand']
  %s0 = inlined_call_operand.vmem [shape: bf16[16,64], index: 0, kind: input, shape index: {}]
  %s1 = inlined_call_operand.vmem [shape: bf16[64,256], index: 1, kind: input, shape index: {}]
  %s2 = inlined_call_operand.vmem [shape: bf16[1,256], index: 2, kind: input, shape index: {}]
  %s3 = inlined_call_operand.vmem [shape: bf16[16,256], index: 3, kind: output, shape index: {}]
  %s4 = sld [smem:[#allocation0]]
  $region30: #{clip_forward.58} parent=0
    _
  %s6 = ssub.s32 1, %s4
  %s7 = scalar_select 0, %s6, %s4
  // Predicated region
  $region2: #{clip_forward.58} parent=0 // pred_check
    _
  $region3: #{clip_forward.58} parent=0 // pred_check_branch
    %9 = sbr.rel (0) target = $region5
  $region4: #{clip_forward.58} parent=0 // pred_region
    _
  $region5: #{clip_forward.58} parent=0 // pred_fallthru
    _
  // Predicated region
  $region6: #{clip_forward.58} parent=0 // pred_check
    _
  $region7: #{clip_forward.58} parent=0 // pred_check_branch
    %11 = sbr.rel (0) target = $region9
  $region8: #{clip_forward.58} parent=0 // pred_region
    _
  $region9: #{clip_forward.58} parent=0 // pred_fallthru
    _
  // Predicated region
  $region10: #{clip_forward.58} parent=0 // pred_check
    _
  $region11: #{clip_forward.58} parent=0 // pred_check_branch
    %13 = sbr.rel (0) target = $region13
  $region12: #{clip_forward.58} parent=0 // pred_region
    _
  $region13: #{clip_forward.58} parent=0 // pred_fallthru
    _
  %p15 = scmp.eq.s32.totalorder 0, 0
  // Predicated region
  $region14: #{clip_forward.58} parent=0 // pred_check
    %p16 = pneg %p15
  $region15: #{clip_forward.58} parent=0 // pred_check_branch
    %18 = sbr.rel (%p16) target = $region17
  $region16: #{clip_forward.58} parent=0 // pred_region
    %19 = vst [vmem:[#allocation2] sm:$0xff] 0.0
    %20 = vst [vmem:[#allocation2 + $0x8] sm:$0xff] 0.0
    %21 = vst [vmem:[#allocation2 + $0x10] sm:$0xff] 0.0
    %22 = vst [vmem:[#allocation2 + $0x18] sm:$0xff] 0.0
  $region17: #{clip_forward.58} parent=0 // pred_fallthru
    _
  %v23 = vld [vmem:[#allocation2] sm:$0xff]
  %v24 = vld [vmem:[#allocation2 + $0x8] sm:$0xff]
  %v25 = vld [vmem:[#allocation2 + $0x10] sm:$0xff]
  %v26 = vld [vmem:[#allocation2 + $0x18] sm:$0xff]
  %v27 = vld [vmem:[%s0] sm:$0xf]
  %v28 = vld [vmem:[%s0 + $0x4] sm:$0xf]
  %v29 = vld [vmem:[%s1] sm:$0xff]
  %v30 = vld [vmem:[%s1 + $0x8] sm:$0xff]
  %v31 = vld [vmem:[%s1 + $0x10] sm:$0xff]
  %v32 = vld [vmem:[%s1 + $0x18] sm:$0xff]
  %v33 = vld [vmem:[%s1 + $0x20] sm:$0xff]
  %v34 = vld [vmem:[%s1 + $0x28] sm:$0xff]
  %v35 = vld [vmem:[%s1 + $0x30] sm:$0xff]
  %v36 = vld [vmem:[%s1 + $0x38] sm:$0xff]
  %v39 = vunpack.c.l.b16 %v27
  %v40 = vunpack.c.l.b16 %v28
  %v41 = vpack.c.b16 %v40, %v39
  %v50 = vunpack.c.l.b16 %v29
  %v51 = vunpack.c.h.b16 %v29
  %v52 = vunpack.c.l.b16 %v30
  %v53 = vunpack.c.h.b16 %v30
  %v54 = vunpack.c.l.b16 %v31
  %v55 = vunpack.c.h.b16 %v31
  %v56 = vunpack.c.l.b16 %v32
  %v57 = vunpack.c.h.b16 %v32
  %v58 = vunpack.c.l.b16 %v33
  %v59 = vunpack.c.h.b16 %v33
  %v60 = vunpack.c.l.b16 %v34
  %v61 = vunpack.c.h.b16 %v34
  %v62 = vunpack.c.l.b16 %v35
  %v63 = vunpack.c.h.b16 %v35
  %v64 = vunpack.c.l.b16 %v36
  %v65 = vunpack.c.h.b16 %v36
  %v66 = vpack.c.b16 %v52, %v50
  %v67 = vpack.c.b16 %v53, %v51
  %v68 = vpack.c.b16 %v56, %v54
  %v69 = vpack.c.b16 %v57, %v55
  %v70 = vpack.c.b16 %v60, %v58
  %v71 = vpack.c.b16 %v61, %v59
  %v72 = vpack.c.b16 %v64, %v62
  %v73 = vpack.c.b16 %v65, %v63
  %vm82 = vcmask 523264
  %v84 = vsel %vm82, %v41, 0
  %86 = vmatprep.subr.bf16.mxu0 0
  %87 = vmatpush1.bf16.msra.mxu0 0
  %88 = vmatprep.subr.bf16.mxu0 0
  %89 = vmatpush1.bf16.msra.mxu0 0
  %90 = vmatprep.subr.bf16.mxu0 0
  %91 = vmatpush1.bf16.msra.mxu0 0
  %92 = vmatprep.subr.bf16.mxu0 0
  %93 = vmatpush1.bf16.msra.mxu0 0
  %94 = vmatprep.subr.bf16.mxu0 %v73
  %95 = vmatpush1.bf16.msra.mxu0 %v72
  %96 = vmatprep.subr.bf16.mxu0 %v71
  %97 = vmatpush1.bf16.msra.mxu0 %v70
  %98 = vmatprep.subr.bf16.mxu0 %v69
  %99 = vmatpush1.bf16.msra.mxu0 %v68
  %100 = vmatprep.subr.bf16.mxu0 %v67
  %101 = vmatpush1.bf16.msra.mxu0 %v66
  %102 = vmatprep.subr.bf16.mxu0 0
  %103 = vmatpush2.bf16.msra.mxu0 0
  %104 = vmatprep.subr.bf16.mxu0 0
  %105 = vmatpush2.bf16.msra.mxu0 0
  %106 = vmatprep.subr.bf16.mxu0 0
  %107 = vmatpush2.bf16.msra.mxu0 0
  %108 = vmatprep.subr.bf16.mxu0 0
  %109 = vmatpush2.bf16.msra.mxu0 0
  %110 = vmatprep.subr.bf16.mxu0 0
  %111 = vmatpush2.bf16.msra.mxu0 0
  %112 = vmatprep.subr.bf16.mxu0 0
  %113 = vmatpush2.bf16.msra.mxu0 0
  %114 = vmatprep.subr.bf16.mxu0 0
  %115 = vmatpush2.bf16.msra.mxu0 0
  %116 = vmatprep.subr.bf16.mxu0 0
  %117 = vmatpush2.bf16.msra.mxu0 0
  %118 = vmatprep.mubr.bf16.mxu0 0
  %119 = vmatmul.mubr.bf16.gmra.mxu0 %v84
  %v120 = vpop.f32.mrf.mxu0
  %v121 = vadd.f32 0.0, %v120
  %v122 = vpop.f32.mrf.mxu0
  %v123 = vadd.f32 0.0, %v122
  %v124 = vpop.f32.mrf.mxu0
  %v125 = vadd.f32 0.0, %v124
  %v126 = vpop.f32.mrf.mxu0
  %v127 = vadd.f32 0.0, %v126
  %128 = vdwg.mxu0
  %v129 = vadd.f32 %v23, %v121
  %v130 = vadd.f32 %v24, %v123
  %v131 = vadd.f32 %v25, %v125
  %v132 = vadd.f32 %v26, %v127
  %133 = vst [vmem:[#allocation2] sm:$0xff] %v129
  %134 = vst [vmem:[#allocation2 + $0x8] sm:$0xff] %v130
  %135 = vst [vmem:[#allocation2 + $0x10] sm:$0xff] %v131
  %136 = vst [vmem:[#allocation2 + $0x18] sm:$0xff] %v132
  // Predicated region
  $region18: #{clip_forward.58} parent=0 // pred_check
    %p137 = pneg %p15
  $region19: #{clip_forward.58} parent=0 // pred_check_branch
    %139 = sbr.rel (%p137) target = $region21
  $region20: #{clip_forward.58} parent=0 // pred_region
    %v140 = vld [vmem:[#allocation2] sm:$0xff]
    %v141 = vld [vmem:[#allocation2 + $0x8] sm:$0xff]
    %v142 = vld [vmem:[#allocation2 + $0x10] sm:$0xff]
    %v143 = vld [vmem:[#allocation2 + $0x18] sm:$0xff]
    %v144 = vld [vmem:[%s2] sm:$0x3]
    %v145 = vunpack.c.l.bf16 %v144
    %v147 = vlaneseq
    %v148 = vshrl.u32 %v147, 7
    %v149 = vsub.s32 0, %v148
    %v150 = vrot.slane %v145, %v149
    %v151 = vlaneseq
    %v152 = vshrl.u32 %v151, 7
    %v153 = vsub.s32 2, %v152
    %v154 = vrot.slane %v145, %v153
    %v157 = vlaneseq
    %v158 = vshrl.u32 %v157, 7
    %v159 = vsub.s32 0, %v158
    %v160 = vrot.slane %v150, %v159
    %v161 = vlaneseq
    %v162 = vshrl.u32 %v161, 7
    %v163 = vsub.s32 0, %v162
    %v164 = vrot.slane %v154, %v163
    %v165 = vadd.f32 %v140, %v160
    %v166 = vadd.f32 %v141, %v164
    %v167 = vadd.f32 %v142, %v160
    %v168 = vadd.f32 %v143, %v164
    %v169 = vmul.f32 %v165, 1.702
    %v170 = vmul.f32 %v166, 1.702
    %v171 = vmul.f32 %v167, 1.702
    %v172 = vmul.f32 %v168, 1.702
    %v173 = vxor.u32 %v169, 2147483648
    %v174 = vxor.u32 %v170, 2147483648
    %v175 = vxor.u32 %v171, 2147483648
    %v176 = vxor.u32 %v172, 2147483648
    %v177 = vmul.f32 %v173, 1.442695
    %v178 = vpow.pop %v177
    %v179 = vmul.f32 %v174, 1.442695
    %v180 = vpow.pop %v179
    %v181 = vmul.f32 %v175, 1.442695
    %v182 = vpow.pop %v181
    %v183 = vmul.f32 %v176, 1.442695
    %v184 = vpow.pop %v183
    %v185 = vadd.f32 %v178, 1.0
    %v186 = vadd.f32 %v180, 1.0
    %v187 = vadd.f32 %v182, 1.0
    %v188 = vadd.f32 %v184, 1.0
    %v189 = vrcp.pop %v185
    %v190 = vmul.f32 1.0, %v189
    %v191 = vrcp.pop %v186
    %v192 = vmul.f32 1.0, %v191
    %v193 = vrcp.pop %v187
    %v194 = vmul.f32 1.0, %v193
    %v195 = vrcp.pop %v188
    %v196 = vmul.f32 1.0, %v195
    %v197 = vmul.f32 %v165, %v190
    %v198 = vmul.f32 %v166, %v192
    %v199 = vmul.f32 %v167, %v194
    %v200 = vmul.f32 %v168, %v196
    %v201 = vpack.c.bf16 %v199, %v197
    %v202 = vpack.c.bf16 %v200, %v198
    %v205 = vunpack.c.l.b16 %v201
    %v206 = vunpack.c.l.b16 %v202
    %v207 = vunpack.c.h.b16 %v201
    %v208 = vunpack.c.h.b16 %v202
    %v209 = vpack.c.b16 %v206, %v205
    %v210 = vpack.c.b16 %v208, %v207
    %213 = vst [vmem:[%s3] sm:$0xff] %v209
    %214 = vst [vmem:[%s3 + $0x8] sm:$0xff] %v210
  $region21: #{clip_forward.58} parent=0 // pred_fallthru
    _
  // Predicated region
  $region22: #{clip_forward.58} parent=0 // pred_check
    _
  $region23: #{clip_forward.58} parent=0 // pred_check_branch
    %216 = sbr.rel (0) target = $region25
  $region24: #{clip_forward.58} parent=0 // pred_region
    _
  $region25: #{clip_forward.58} parent=0 // pred_fallthru
    _
  // Predicated region
  $region26: #{clip_forward.58} parent=0 // pred_check
    _
  $region27: #{clip_forward.58} parent=0 // pred_check_branch
    %218 = sbr.rel (0) target = $region29
  $region28: #{clip_forward.58} parent=0 // pred_region
    _
  $region29: #{clip_forward.58} parent=0 // pred_fallthru
    _

// kernel: clip_forward.59
$region0: #{clip_forward.59}
  #allocation0 [shape = 'u32[]', space=smem, size = 0x4, offset = 0x4, fixed_abs, tag = 'smem constant byte address 0x4 - core index']
  #allocation1 [shape = 'u32[144,128]{1,0:T(1,128)}', space=vmem, size = 0x12000, scoped, tag = 'internal scratch']
  #allocation2 [shape = 'f32[16,64]{1,0:T(8,128)}', space=vmem, size = 0x2000, scoped, tag = 'scratch operand']
  %s0 = inlined_call_operand.vmem [shape: bf16[16,256], index: 0, kind: input, shape index: {}]
  %s1 = inlined_call_operand.vmem [shape: bf16[256,64], index: 1, kind: input, shape index: {}]
  %s2 = inlined_call_operand.vmem [shape: bf16[1,64], index: 2, kind: input, shape index: {}]
  %s3 = inlined_call_operand.vmem [shape: bf16[16,64], index: 3, kind: input, shape index: {}]
  %s4 = inlined_call_operand.vmem [shape: bf16[16,64], index: 4, kind: output, shape index: {}]
  %s5 = sld [smem:[#allocation0]]
  $region34: #{clip_forward.59} parent=0
    _
  %s7 = ssub.s32 1, %s5
  %s8 = scalar_select 0, %s7, %s5
  // Predicated region
  $region2: #{clip_forward.59} parent=0 // pred_check
    _
  $region3: #{clip_forward.59} parent=0 // pred_check_branch
    %10 = sbr.rel (0) target = $region5
  $region4: #{clip_forward.59} parent=0 // pred_region
    _
  $region5: #{clip_forward.59} parent=0 // pred_fallthru
    _
  // Predicated region
  $region6: #{clip_forward.59} parent=0 // pred_check
    _
  $region7: #{clip_forward.59} parent=0 // pred_check_branch
    %12 = sbr.rel (0) target = $region9
  $region8: #{clip_forward.59} parent=0 // pred_region
    _
  $region9: #{clip_forward.59} parent=0 // pred_fallthru
    _
  // Predicated region
  $region10: #{clip_forward.59} parent=0 // pred_check
    _
  $region11: #{clip_forward.59} parent=0 // pred_check_branch
    %14 = sbr.rel (0) target = $region13
  $region12: #{clip_forward.59} parent=0 // pred_region
    _
  $region13: #{clip_forward.59} parent=0 // pred_fallthru
    _
  // Predicated region
  $region14: #{clip_forward.59} parent=0 // pred_check
    _
  $region15: #{clip_forward.59} parent=0 // pred_check_branch
    %16 = sbr.rel (0) target = $region17
  $region16: #{clip_forward.59} parent=0 // pred_region
    _
  $region17: #{clip_forward.59} parent=0 // pred_fallthru
    _
  %p18 = scmp.eq.s32.totalorder 0, 0
  // Predicated region
  $region18: #{clip_forward.59} parent=0 // pred_check
    %p19 = pneg %p18
  $region19: #{clip_forward.59} parent=0 // pred_check_branch
    %21 = sbr.rel (%p19) target = $region21
  $region20: #{clip_forward.59} parent=0 // pred_region
    %vm22 = vcmask 523264
    %23 = vst.msk [vmem:[#allocation2] sm:$0xff] %vm22, 0.0
    %24 = vst.msk [vmem:[#allocation2 + $0x8] sm:$0xff] %vm22, 0.0
  $region21: #{clip_forward.59} parent=0 // pred_fallthru
    _
  %v25 = vld [vmem:[#allocation2] sm:$0xff]
  %v26 = vld [vmem:[#allocation2 + $0x8] sm:$0xff]
  %v27 = vld [vmem:[%s0] sm:$0xff]
  %v28 = vld [vmem:[%s0 + $0x8] sm:$0xff]
  %v29 = vld [vmem:[%s1] sm:$0xf]
  %v30 = vld [vmem:[%s1 + $0x4] sm:$0xf]
  %v31 = vld [vmem:[%s1 + $0x8] sm:$0xf]
  %v32 = vld [vmem:[%s1 + $0xc] sm:$0xf]
  %v33 = vld [vmem:[%s1 + $0x10] sm:$0xf]
  %v34 = vld [vmem:[%s1 + $0x14] sm:$0xf]
  %v35 = vld [vmem:[%s1 + $0x18] sm:$0xf]
  %v36 = vld [vmem:[%s1 + $0x1c] sm:$0xf]
  %v37 = vld [vmem:[%s1 + $0x20] sm:$0xf]
  %v38 = vld [vmem:[%s1 + $0x24] sm:$0xf]
  %v39 = vld [vmem:[%s1 + $0x28] sm:$0xf]
  %v40 = vld [vmem:[%s1 + $0x2c] sm:$0xf]
  %v41 = vld [vmem:[%s1 + $0x30] sm:$0xf]
  %v42 = vld [vmem:[%s1 + $0x34] sm:$0xf]
  %v43 = vld [vmem:[%s1 + $0x38] sm:$0xf]
  %v44 = vld [vmem:[%s1 + $0x3c] sm:$0xf]
  %v45 = vld [vmem:[%s1 + $0x40] sm:$0xf]
  %v46 = vld [vmem:[%s1 + $0x44] sm:$0xf]
  %v47 = vld [vmem:[%s1 + $0x48] sm:$0xf]
  %v48 = vld [vmem:[%s1 + $0x4c] sm:$0xf]
  %v49 = vld [vmem:[%s1 + $0x50] sm:$0xf]
  %v50 = vld [vmem:[%s1 + $0x54] sm:$0xf]
  %v51 = vld [vmem:[%s1 + $0x58] sm:$0xf]
  %v52 = vld [vmem:[%s1 + $0x5c] sm:$0xf]
  %v53 = vld [vmem:[%s1 + $0x60] sm:$0xf]
  %v54 = vld [vmem:[%s1 + $0x64] sm:$0xf]
  %v55 = vld [vmem:[%s1 + $0x68] sm:$0xf]
  %v56 = vld [vmem:[%s1 + $0x6c] sm:$0xf]
  %v57 = vld [vmem:[%s1 + $0x70] sm:$0xf]
  %v58 = vld [vmem:[%s1 + $0x74] sm:$0xf]
  %v59 = vld [vmem:[%s1 + $0x78] sm:$0xf]
  %v60 = vld [vmem:[%s1 + $0x7c] sm:$0xf]
  %v63 = vunpack.c.l.b16 %v27
  %v64 = vunpack.c.h.b16 %v27
  %v65 = vunpack.c.l.b16 %v28
  %v66 = vunpack.c.h.b16 %v28
  %v67 = vpack.c.b16 %v65, %v63
  %v68 = vpack.c.b16 %v66, %v64
  %v103 = vunpack.c.l.b16 %v29
  %v104 = vunpack.c.l.b16 %v30
  %v105 = vunpack.c.l.b16 %v31
  %v106 = vunpack.c.l.b16 %v32
  %v107 = vunpack.c.l.b16 %v33
  %v108 = vunpack.c.l.b16 %v34
  %v109 = vunpack.c.l.b16 %v35
  %v110 = vunpack.c.l.b16 %v36
  %v111 = vunpack.c.l.b16 %v37
  %v112 = vunpack.c.l.b16 %v38
  %v113 = vunpack.c.l.b16 %v39
  %v114 = vunpack.c.l.b16 %v40
  %v115 = vunpack.c.l.b16 %v41
  %v116 = vunpack.c.l.b16 %v42
  %v117 = vunpack.c.l.b16 %v43
  %v118 = vunpack.c.l.b16 %v44
  %v119 = vunpack.c.l.b16 %v45
  %v120 = vunpack.c.l.b16 %v46
  %v121 = vunpack.c.l.b16 %v47
  %v122 = vunpack.c.l.b16 %v48
  %v123 = vunpack.c.l.b16 %v49
  %v124 = vunpack.c.l.b16 %v50
  %v125 = vunpack.c.l.b16 %v51
  %v126 = vunpack.c.l.b16 %v52
  %v127 = vunpack.c.l.b16 %v53
  %v128 = vunpack.c.l.b16 %v54
  %v129 = vunpack.c.l.b16 %v55
  %v130 = vunpack.c.l.b16 %v56
  %v131 = vunpack.c.l.b16 %v57
  %v132 = vunpack.c.l.b16 %v58
  %v133 = vunpack.c.l.b16 %v59
  %v134 = vunpack.c.l.b16 %v60
  %v135 = vpack.c.b16 %v104, %v103
  %v136 = vpack.c.b16 %v106, %v105
  %v137 = vpack.c.b16 %v108, %v107
  %v138 = vpack.c.b16 %v110, %v109
  %v139 = vpack.c.b16 %v112, %v111
  %v140 = vpack.c.b16 %v114, %v113
  %v141 = vpack.c.b16 %v116, %v115
  %v142 = vpack.c.b16 %v118, %v117
  %v143 = vpack.c.b16 %v120, %v119
  %v144 = vpack.c.b16 %v122, %v121
  %v145 = vpack.c.b16 %v124, %v123
  %v146 = vpack.c.b16 %v126, %v125
  %v147 = vpack.c.b16 %v128, %v127
  %v148 = vpack.c.b16 %v130, %v129
  %v149 = vpack.c.b16 %v132, %v131
  %v150 = vpack.c.b16 %v134, %v133
  %167 = vmatprep.subr.bf16.mxu0 0
  %168 = vmatpush1.bf16.msra.mxu0 %v142
  %169 = vmatprep.subr.bf16.mxu0 0
  %170 = vmatpush1.bf16.msra.mxu0 %v141
  %171 = vmatprep.subr.bf16.mxu0 0
  %172 = vmatpush1.bf16.msra.mxu0 %v140
  %173 = vmatprep.subr.bf16.mxu0 0
  %174 = vmatpush1.bf16.msra.mxu0 %v139
  %175 = vmatprep.subr.bf16.mxu0 0
  %176 = vmatpush1.bf16.msra.mxu0 %v138
  %177 = vmatprep.subr.bf16.mxu0 0
  %178 = vmatpush1.bf16.msra.mxu0 %v137
  %179 = vmatprep.subr.bf16.mxu0 0
  %180 = vmatpush1.bf16.msra.mxu0 %v136
  %181 = vmatprep.subr.bf16.mxu0 0
  %182 = vmatpush1.bf16.msra.mxu0 %v135
  %183 = vmatprep.subr.bf16.mxu0 0
  %184 = vmatpush2.bf16.msra.mxu0 %v150
  %185 = vmatprep.subr.bf16.mxu0 0
  %186 = vmatpush2.bf16.msra.mxu0 %v149
  %187 = vmatprep.subr.bf16.mxu0 0
  %188 = vmatpush2.bf16.msra.mxu0 %v148
  %189 = vmatprep.subr.bf16.mxu0 0
  %190 = vmatpush2.bf16.msra.mxu0 %v147
  %191 = vmatprep.subr.bf16.mxu0 0
  %192 = vmatpush2.bf16.msra.mxu0 %v146
  %193 = vmatprep.subr.bf16.mxu0 0
  %194 = vmatpush2.bf16.msra.mxu0 %v145
  %195 = vmatprep.subr.bf16.mxu0 0
  %196 = vmatpush2.bf16.msra.mxu0 %v144
  %197 = vmatprep.subr.bf16.mxu0 0
  %198 = vmatpush2.bf16.msra.mxu0 %v143
  %199 = vmatprep.mubr.bf16.mxu0 %v68
  %200 = vmatmul.mubr.bf16.gmra.mxu0 %v67
  %v201 = vpop.f32.mrf.mxu0
  %v202 = vadd.f32 0.0, %v201
  %v203 = vpop.f32.mrf.mxu0
  %v204 = vpop.f32.mrf.mxu0
  %v205 = vadd.f32 0.0, %v204
  %v206 = vpop.f32.mrf.mxu0
  %207 = vdwg.mxu0
  %v208 = vadd.f32 %v25, %v202
  %v209 = vadd.f32 %v26, %v205
  %vm210 = vcmask 523264
  %211 = vst.msk [vmem:[#allocation2] sm:$0xff] %vm210, %v208
  %212 = vst.msk [vmem:[#allocation2 + $0x8] sm:$0xff] %vm210, %v209
  // Predicated region
  $region22: #{clip_forward.59} parent=0 // pred_check
    %p213 = pneg %p18
  $region23: #{clip_forward.59} parent=0 // pred_check_branch
    %215 = sbr.rel (%p213) target = $region25
  $region24: #{clip_forward.59} parent=0 // pred_region
    %v216 = vld [vmem:[#allocation2] sm:$0xff]
    %v217 = vld [vmem:[#allocation2 + $0x8] sm:$0xff]
    %v218 = vld [vmem:[%s2] sm:$0x1]
    %v219 = vunpack.c.l.bf16 %v218
    %v220 = vlaneseq
    %v221 = vshrl.u32 %v220, 7
    %v222 = vsub.s32 0, %v221
    %v223 = vrot.slane %v219, %v222
    %v224 = vadd.f32 %v216, %v223
    %v225 = vadd.f32 %v217, %v223
    %v226 = vld [vmem:[%s3] sm:$0xf]
    %v227 = vld [vmem:[%s3 + $0x4] sm:$0xf]
    %v228 = vunpack.c.l.bf16 %v226
    %v229 = vunpack.c.l.bf16 %v227
    %v230 = vadd.f32 %v224, %v228
    %v231 = vadd.f32 %v225, %v229
    %v232 = vpack.c.bf16 %v231, %v230
    %v234 = vunpack.c.l.b16 %v232
    %v235 = vunpack.c.h.b16 %v232
    %v236 = vpack.c.b16 %v234, %v234
    %v237 = vpack.c.b16 %v235, %v235
    %vm240 = vcmask 519168
    %241 = vst.msk [vmem:[%s4] sm:$0xf] %vm240, %v236
    %242 = vst.msk [vmem:[%s4 + $0x4] sm:$0xf] %vm240, %v237
  $region25: #{clip_forward.59} parent=0 // pred_fallthru
    _
  // Predicated region
  $region26: #{clip_forward.59} parent=0 // pred_check
    _
  $region27: #{clip_forward.59} parent=0 // pred_check_branch
    %244 = sbr.rel (0) target = $region29
  $region28: #{clip_forward.59} parent=0 // pred_region
    _
  $region29: #{clip_forward.59} parent=0 // pred_fallthru
    _
  // Predicated region
  $region30: #{clip_forward.59} parent=0 // pred_check
    _
  $region31: #{clip_forward.59} parent=0 // pred_check_branch
    %246 = sbr.rel (0) target = $region33
  $region32: #{clip_forward.59} parent=0 // pred_region
    _
  $region33: #{clip_forward.59} parent=0 // pred_fallthru
    _

// kernel: clip_forward.68
$region0: #{clip_forward.68}
  #allocation0 [shape = 'u32[]', space=smem, size = 0x4, offset = 0x4, fixed_abs, tag = 'smem constant byte address 0x4 - core index']
  #allocation1 [shape = 'u32[144,128]{1,0:T(1,128)}', space=vmem, size = 0x12000, scoped, tag = 'internal scratch']
  #allocation2 [shape = 'f32[2,32]{1,0:T(2,128)}', space=vmem, size = 0x400, scoped, tag = 'scratch operand']
  %s0 = inlined_call_operand.vmem [shape: bf16[2,64], index: 0, kind: input, shape index: {}]
  %s1 = inlined_call_operand.vmem [shape: bf16[64,32], index: 1, kind: input, shape index: {}]
  %s2 = inlined_call_operand.vmem [shape: bf16[2,32], index: 2, kind: output, shape index: {}]
  %s3 = sld [smem:[#allocation0]]
  $region26: #{clip_forward.68} parent=0
    _
  %s5 = ssub.s32 1, %s3
  %s6 = scalar_select 0, %s5, %s3
  // Predicated region
  $region2: #{clip_forward.68} parent=0 // pred_check
    _
  $region3: #{clip_forward.68} parent=0 // pred_check_branch
    %8 = sbr.rel (0) target = $region5
  $region4: #{clip_forward.68} parent=0 // pred_region
    _
  $region5: #{clip_forward.68} parent=0 // pred_fallthru
    _
  // Predicated region
  $region6: #{clip_forward.68} parent=0 // pred_check
    _
  $region7: #{clip_forward.68} parent=0 // pred_check_branch
    %10 = sbr.rel (0) target = $region9
  $region8: #{clip_forward.68} parent=0 // pred_region
    _
  $region9: #{clip_forward.68} parent=0 // pred_fallthru
    _
  %p12 = scmp.eq.s32.totalorder 0, 0
  // Predicated region
  $region10: #{clip_forward.68} parent=0 // pred_check
    %p13 = pneg %p12
  $region11: #{clip_forward.68} parent=0 // pred_check_branch
    %15 = sbr.rel (%p13) target = $region13
  $region12: #{clip_forward.68} parent=0 // pred_region
    %vm16 = vcmask 254976
    %17 = vst.msk [vmem:[#allocation2] sm:$0x3] %vm16, 0.0
  $region13: #{clip_forward.68} parent=0 // pred_fallthru
    _
  %v18 = vld [vmem:[#allocation2] sm:$0x3]
  %v19 = vld [vmem:[%s0] sm:$0x1]
  %v20 = vld [vmem:[%s1] sm:$0xf]
  %v21 = vld [vmem:[%s1 + $0x4] sm:$0xf]
  %v22 = vld [vmem:[%s1 + $0x8] sm:$0xf]
  %v23 = vld [vmem:[%s1 + $0xc] sm:$0xf]
  %v24 = vld [vmem:[%s1 + $0x10] sm:$0xf]
  %v25 = vld [vmem:[%s1 + $0x14] sm:$0xf]
  %v26 = vld [vmem:[%s1 + $0x18] sm:$0xf]
  %v27 = vld [vmem:[%s1 + $0x1c] sm:$0xf]
  %v36 = vunpack.c.l.b16 %v20
  %v37 = vunpack.c.l.b16 %v21
  %v38 = vunpack.c.l.b16 %v22
  %v39 = vunpack.c.l.b16 %v23
  %v40 = vunpack.c.l.b16 %v24
  %v41 = vunpack.c.l.b16 %v25
  %v42 = vunpack.c.l.b16 %v26
  %v43 = vunpack.c.l.b16 %v27
  %v44 = vpack.c.b16 %v37, %v36
  %v45 = vpack.c.b16 %v39, %v38
  %v46 = vpack.c.b16 %v41, %v40
  %v47 = vpack.c.b16 %v43, %v42
  %vm52 = vcmask 523264
  %v54 = vsel %vm52, %v19, 0
  %56 = vmatprep.subr.bf16.mxu0 0
  %57 = vmatpush1.bf16.msra.mxu0 0
  %58 = vmatprep.subr.bf16.mxu0 0
  %59 = vmatpush1.bf16.msra.mxu0 0
  %60 = vmatprep.subr.bf16.mxu0 0
  %61 = vmatpush1.bf16.msra.mxu0 0
  %62 = vmatprep.subr.bf16.mxu0 0
  %63 = vmatpush1.bf16.msra.mxu0 0
  %64 = vmatprep.subr.bf16.mxu0 0
  %65 = vmatpush1.bf16.msra.mxu0 %v47
  %66 = vmatprep.subr.bf16.mxu0 0
  %67 = vmatpush1.bf16.msra.mxu0 %v46
  %68 = vmatprep.subr.bf16.mxu0 0
  %69 = vmatpush1.bf16.msra.mxu0 %v45
  %70 = vmatprep.subr.bf16.mxu0 0
  %71 = vmatpush1.bf16.msra.mxu0 %v44
  %72 = vmatprep.subr.bf16.mxu0 0
  %73 = vmatpush2.bf16.msra.mxu0 0
  %74 = vmatprep.subr.bf16.mxu0 0
  %75 = vmatpush2.bf16.msra.mxu0 0
  %76 = vmatprep.subr.bf16.mxu0 0
  %77 = vmatpush2.bf16.msra.mxu0 0
  %78 = vmatprep.subr.bf16.mxu0 0
  %79 = vmatpush2.bf16.msra.mxu0 0
  %80 = vmatprep.subr.bf16.mxu0 0
  %81 = vmatpush2.bf16.msra.mxu0 0
  %82 = vmatprep.subr.bf16.mxu0 0
  %83 = vmatpush2.bf16.msra.mxu0 0
  %84 = vmatprep.subr.bf16.mxu0 0
  %85 = vmatpush2.bf16.msra.mxu0 0
  %86 = vmatprep.subr.bf16.mxu0 0
  %87 = vmatpush2.bf16.msra.mxu0 0
  %88 = vmatprep.mubr.bf16.mxu0 0
  %89 = vmatmul.mubr.bf16.gmra.mxu0 %v54
  %v90 = vpop.f32.mrf.mxu0
  %v91 = vadd.f32 0.0, %v90
  %v92 = vpop.f32.mrf.mxu0
  %v93 = vpop.f32.mrf.mxu0
  %v94 = vpop.f32.mrf.mxu0
  %95 = vdwg.mxu0
  %v96 = vadd.f32 %v18, %v91
  %vm97 = vcmask 254976
  %98 = vst.msk [vmem:[#allocation2] sm:$0x3] %vm97, %v96
  // Predicated region
  $region14: #{clip_forward.68} parent=0 // pred_check
    %p99 = pneg %p12
  $region15: #{clip_forward.68} parent=0 // pred_check_branch
    %101 = sbr.rel (%p99) target = $region17
  $region16: #{clip_forward.68} parent=0 // pred_region
    %v102 = vld [vmem:[#allocation2] sm:$0x3]
    %v103 = vpack.c.bf16 %v102, %v102
    %vm104 = vcmask 253952
    %105 = vst.msk [vmem:[%s2] sm:$0x1] %vm104, %v103
  $region17: #{clip_forward.68} parent=0 // pred_fallthru
    _
  // Predicated region
  $region18: #{clip_forward.68} parent=0 // pred_check
    _
  $region19: #{clip_forward.68} parent=0 // pred_check_branch
    %107 = sbr.rel (0) target = $region21
  $region20: #{clip_forward.68} parent=0 // pred_region
    _
  $region21: #{clip_forward.68} parent=0 // pred_fallthru
    _
  // Predicated region
  $region22: #{clip_forward.68} parent=0 // pred_check
    _
  $region23: #{clip_forward.68} parent=0 // pred_check_branch
    %109 = sbr.rel (0) target = $region25
  $region24: #{clip_forward.68} parent=0 // pred_region
    _
  $region25: #{clip_forward.68} parent=0 // pred_fallthru
    _

// kernel: clip_forward.69
$region0: #{clip_forward.69}
  #allocation0 [shape = 'u32[]', space=smem, size = 0x4, offset = 0x4, fixed_abs, tag = 'smem constant byte address 0x4 - core index']
  #allocation1 [shape = 'u32[144,128]{1,0:T(1,128)}', space=vmem, size = 0x12000, scoped, tag = 'internal scratch']
  #allocation2 [shape = 'f32[1,1]{1,0:T(1,128)S(1)}', space=vmem, size = 0x200, scoped, tag = 'scoped memory for clip_forward.69']
  %s0 = inlined_call_operand.vmem [shape: bf16[2,32], index: 0, kind: input, shape index: {}]
  %s1 = inlined_call_operand.vmem [shape: bf16[2,32], index: 1, kind: input, shape index: {}]
  %s2 = inlined_call_operand.<no memory space> [shape: f32[1,1], index: 2, kind: input, shape index: {}]
  %s3 = inlined_call_operand.hbm [shape: f32[2,2], index: 3, kind: output, shape index: {0}]
  %s4 = inlined_call_operand.hbm [shape: f32[2,2], index: 4, kind: output, shape index: {1}]
  %5 = xla_tuple %s3, %s4
  %s6 = sld [smem:[#allocation0]]
  $region30: #{clip_forward.69} parent=0
    _
  %s8 = ssub.s32 1, %s6
  %s9 = scalar_select 0, %s8, %s6
  %v10 = vstv %s2
  %11 = vst [vmem:[#allocation2] sm:$0x1] %v10
  $region1: #{clip_forward.69} parent=0
    #allocation3 [shape = 'u8[1024]{0}', space=vmem, size = 0x400, scoped, tag = 'output window, operand 0, single buffered']
    #allocation4 [shape = 's32[1]{0}', space=sflag, size = 0x4, scoped, tag = 'scoped memory for clip_forward.69']
    #allocation5 [shape = 'u8[1024]{0}', space=vmem, size = 0x400, scoped, tag = 'output window, operand 1, single buffered']
    #allocation6 [shape = 's32[1]{0}', space=sflag, size = 0x4, scoped, tag = 'scoped memory for clip_forward.69']
    %12 = vsyncpa [#allocation4], 0
    %13 = vsyncpa [#allocation6], 0
    // Predicated region
    $region2: #{clip_forward.69} parent=1 // pred_check
      _
    $region3: #{clip_forward.69} parent=1 // pred_check_branch
      %15 = sbr.rel (0) target = $region5
    $region4: #{clip_forward.69} parent=1 // pred_region
      _
    $region5: #{clip_forward.69} parent=1 // pred_fallthru
      _
    // Predicated region
    $region6: #{clip_forward.69} parent=1 // pred_check
      _
    $region7: #{clip_forward.69} parent=1 // pred_check_branch
      %17 = sbr.rel (0) target = $region9
    $region8: #{clip_forward.69} parent=1 // pred_region
      _
    $region9: #{clip_forward.69} parent=1 // pred_fallthru
      _
    // Predicated region
    $region10: #{clip_forward.69} parent=1 // pred_check
      _
    $region11: #{clip_forward.69} parent=1 // pred_check_branch
      %19 = sbr.rel (0) target = $region13
    $region12: #{clip_forward.69} parent=1 // pred_region
      _
    $region13: #{clip_forward.69} parent=1 // pred_fallthru
      _
    %v20 = vld [vmem:[%s0] sm:$0x1]
    %v21 = vunpack.c.l.bf16 %v20
    %v22 = vld [vmem:[%s1] sm:$0x1]
    %v23 = vunpack.c.l.bf16 %v22
    %v24 = vmul.f32 %v21, %v21
    %vm25 = vcmask 254976
    %v26 = vsel %vm25, %v24, 0.0
    %27 = vadd.xlane.f32.xlu0 %v26
    %v28 = vpop.xlane.xlu0 %27
    %v29 = vrsqrt.pop %v28
    %v30 = vmul.f32 %v21, %v29
    %v31 = vmul.f32 %v23, %v23
    %v32 = vsel %vm25, %v31, 0.0
    %33 = vadd.xlane.f32.xlu0 %v32
    %v34 = vpop.xlane.xlu0 %33
    %v35 = vrsqrt.pop %v34
    %v36 = vmul.f32 %v23, %v35
    %v37 = vld [vmem:[#allocation2] sm:$0x1]
    %s38 = vtos %v37
    %v39 = vstv %s38
    %v40 = vmul.f32 %v39, 1.442695
    %v41 = vpow.pop %v40
    %s42 = vtos %v41
    %vm43 = vcmask 261120
    %v45 = vsel %vm43, %v30, 0
    %v48 = vsel %vm43, %v36, 0
    %50 = vmatprep.subr.mxu0 0.0
    %51 = vmatpush1.xpose.msra.mxu0 0.0
    %52 = vmatprep.subr.mxu0 0.0
    %53 = vmatpush1.xpose.msra.mxu0 0.0
    %54 = vmatprep.subr.mxu0 0.0
    %55 = vmatpush1.xpose.msra.mxu0 0.0
    %56 = vmatprep.subr.mxu0 0.0
    %57 = vmatpush1.xpose.msra.mxu0 0.0
    %58 = vmatprep.subr.mxu0 0.0
    %59 = vmatpush1.xpose.msra.mxu0 0.0
    %60 = vmatprep.subr.mxu0 0.0
    %61 = vmatpush1.xpose.msra.mxu0 0.0
    %62 = vmatprep.subr.mxu0 0.0
    %63 = vmatpush1.xpose.msra.mxu0 0.0
    %64 = vmatprep.subr.mxu0 0.0
    %65 = vmatpush1.xpose.msra.mxu0 0.0
    %66 = vmatprep.subr.mxu0 0.0
    %67 = vmatpush1.xpose.msra.mxu0 0.0
    %68 = vmatprep.subr.mxu0 0.0
    %69 = vmatpush1.xpose.msra.mxu0 0.0
    %70 = vmatprep.subr.mxu0 0.0
    %71 = vmatpush1.xpose.msra.mxu0 0.0
    %72 = vmatprep.subr.mxu0 0.0
    %73 = vmatpush1.xpose.msra.mxu0 0.0
    %74 = vmatprep.subr.mxu0 0.0
    %75 = vmatpush1.xpose.msra.mxu0 0.0
    %76 = vmatprep.subr.mxu0 0.0
    %77 = vmatpush1.xpose.msra.mxu0 0.0
    %78 = vmatprep.subr.mxu0 0.0
    %79 = vmatpush1.xpose.msra.mxu0 0.0
    %80 = vmatprep.subr.mxu0 0.0
    %81 = vmatpush1.xpose.msra.mxu0 %v48
    %82 = vmatprep.subr.mxu0 0.0
    %83 = vmatpush2.xpose.msra.mxu0 0.0
    %84 = vmatprep.subr.mxu0 0.0
    %85 = vmatpush2.xpose.msra.mxu0 0.0
    %86 = vmatprep.subr.mxu0 0.0
    %87 = vmatpush2.xpose.msra.mxu0 0.0
    %88 = vmatprep.subr.mxu0 0.0
    %89 = vmatpush2.xpose.msra.mxu0 0.0
    %90 = vmatprep.subr.mxu0 0.0
    %91 = vmatpush2.xpose.msra.mxu0 0.0
    %92 = vmatprep.subr.mxu0 0.0
    %93 = vmatpush2.xpose.msra.mxu0 0.0
    %94 = vmatprep.subr.mxu0 0.0
    %95 = vmatpush2.xpose.msra.mxu0 0.0
    %96 = vmatprep.subr.mxu0 0.0
    %97 = vmatpush2.xpose.msra.mxu0 0.0
    %98 = vmatprep.subr.mxu0 0.0
    %99 = vmatpush2.xpose.msra.mxu0 0.0
    %100 = vmatprep.subr.mxu0 0.0
    %101 = vmatpush2.xpose.msra.mxu0 0.0
    %102 = vmatprep.subr.mxu0 0.0
    %103 = vmatpush2.xpose.msra.mxu0 0.0
    %104 = vmatprep.subr.mxu0 0.0
    %105 = vmatpush2.xpose.msra.mxu0 0.0
    %106 = vmatprep.subr.mxu0 0.0
    %107 = vmatpush2.xpose.msra.mxu0 0.0
    %108 = vmatprep.subr.mxu0 0.0
    %109 = vmatpush2.xpose.msra.mxu0 0.0
    %110 = vmatprep.subr.mxu0 0.0
    %111 = vmatpush2.xpose.msra.mxu0 0.0
    %112 = vmatprep.subr.mxu0 0.0
    %113 = vmatpush2.xpose.msra.mxu0 0.0
    %114 = vmatprep.mubr.f32.mxu0 0.0
    %115 = vmatmul.mubr.f32.gmra.mxu0 %v45
    %v116 = vpop.f32.mrf.mxu0
    %v117 = vadd.f32 0.0, %v116
    %v118 = vpop.f32.mrf.mxu0
    %119 = vdwg.mxu0
    %v120 = vstv %s42
    %v121 = vmul.f32 %v120, %v117
    %vm122 = vcmask 9216
    %123 = vst.msk [vmem:[#allocation3] sm:$0x3] %vm122, %v121
    %124 = vmatprep.subr.mxu0 0.0
    %125 = vmatpush1.xpose.msra.mxu0 0.0
    %126 = vmatprep.subr.mxu0 0.0
    %127 = vmatpush1.xpose.msra.mxu0 0.0
    %128 = vmatprep.subr.mxu0 0.0
    %129 = vmatpush1.xpose.msra.mxu0 0.0
    %130 = vmatprep.subr.mxu0 0.0
    %131 = vmatpush1.xpose.msra.mxu0 0.0
    %132 = vmatprep.subr.mxu0 0.0
    %133 = vmatpush1.xpose.msra.mxu0 0.0
    %134 = vmatprep.subr.mxu0 0.0
    %135 = vmatpush1.xpose.msra.mxu0 0.0
    %136 = vmatprep.subr.mxu0 0.0
    %137 = vmatpush1.xpose.msra.mxu0 0.0
    %138 = vmatprep.subr.mxu0 0.0
    %139 = vmatpush1.xpose.msra.mxu0 0.0
    %140 = vmatprep.subr.mxu0 0.0
    %141 = vmatpush1.xpose.msra.mxu0 0.0
    %142 = vmatprep.subr.mxu0 0.0
    %143 = vmatpush1.xpose.msra.mxu0 0.0
    %144 = vmatprep.subr.mxu0 0.0
    %145 = vmatpush1.xpose.msra.mxu0 0.0
    %146 = vmatprep.subr.mxu0 0.0
    %147 = vmatpush1.xpose.msra.mxu0 0.0
    %148 = vmatprep.subr.mxu0 0.0
    %149 = vmatpush1.xpose.msra.mxu0 0.0
    %150 = vmatprep.subr.mxu0 0.0
    %151 = vmatpush1.xpose.msra.mxu0 0.0
    %152 = vmatprep.subr.mxu0 0.0
    %153 = vmatpush1.xpose.msra.mxu0 0.0
    %154 = vmatprep.subr.mxu0 0.0
    %155 = vmatpush1.xpose.msra.mxu0 %v45
    %156 = vmatprep.subr.mxu0 0.0
    %157 = vmatpush2.xpose.msra.mxu0 0.0
    %158 = vmatprep.subr.mxu0 0.0
    %159 = vmatpush2.xpose.msra.mxu0 0.0
    %160 = vmatprep.subr.mxu0 0.0
    %161 = vmatpush2.xpose.msra.mxu0 0.0
    %162 = vmatprep.subr.mxu0 0.0
    %163 = vmatpush2.xpose.msra.mxu0 0.0
    %164 = vmatprep.subr.mxu0 0.0
    %165 = vmatpush2.xpose.msra.mxu0 0.0
    %166 = vmatprep.subr.mxu0 0.0
    %167 = vmatpush2.xpose.msra.mxu0 0.0
    %168 = vmatprep.subr.mxu0 0.0
    %169 = vmatpush2.xpose.msra.mxu0 0.0
    %170 = vmatprep.subr.mxu0 0.0
    %171 = vmatpush2.xpose.msra.mxu0 0.0
    %172 = vmatprep.subr.mxu0 0.0
    %173 = vmatpush2.xpose.msra.mxu0 0.0
    %174 = vmatprep.subr.mxu0 0.0
    %175 = vmatpush2.xpose.msra.mxu0 0.0
    %176 = vmatprep.subr.mxu0 0.0
    %177 = vmatpush2.xpose.msra.mxu0 0.0
    %178 = vmatprep.subr.mxu0 0.0
    %179 = vmatpush2.xpose.msra.mxu0 0.0
    %180 = vmatprep.subr.mxu0 0.0
    %181 = vmatpush2.xpose.msra.mxu0 0.0
    %182 = vmatprep.subr.mxu0 0.0
    %183 = vmatpush2.xpose.msra.mxu0 0.0
    %184 = vmatprep.subr.mxu0 0.0
    %185 = vmatpush2.xpose.msra.mxu0 0.0
    %186 = vmatprep.subr.mxu0 0.0
    %187 = vmatpush2.xpose.msra.mxu0 0.0
    %188 = vmatprep.mubr.f32.mxu0 0.0
    %189 = vmatmul.mubr.f32.gmra.mxu0 %v48
    %v190 = vpop.f32.mrf.mxu0
    %v191 = vadd.f32 0.0, %v190
    %v192 = vpop.f32.mrf.mxu0
    %193 = vdwg.mxu0
    %v194 = vmul.f32 %v120, %v191
    %195 = vst.msk [vmem:[#allocation5] sm:$0x3] %vm122, %v194
    // Predicated region
    $region14: #{clip_forward.69} parent=1 // pred_check
      _
    $region15: #{clip_forward.69} parent=1 // pred_check_branch
      %197 = sbr.rel (0) target = $region17
    $region16: #{clip_forward.69} parent=1 // pred_region
      %s199 = ssub.s32 32, 32
      %200 = vsyncadd [#allocation4], %s199
      %s202 = sshll.u32 [#allocation3], 4
      %s203 = int_to_ptr.vmem [resolvable:$true] %s202
      %205 = dma.vmem_to_hbm [thread:$0]  %s203, 32, %s3, [#allocation4]
    $region17: #{clip_forward.69} parent=1 // pred_fallthru
      _
    // Predicated region
    $region18: #{clip_forward.69} parent=1 // pred_check
      _
    $region19: #{clip_forward.69} parent=1 // pred_check_branch
      %207 = sbr.rel (0) target = $region21
    $region20: #{clip_forward.69} parent=1 // pred_region
      %s209 = ssub.s32 32, 32
      %210 = vsyncadd [#allocation6], %s209
      %s212 = sshll.u32 [#allocation5], 4
      %s213 = int_to_ptr.vmem [resolvable:$true] %s212
      %215 = dma.vmem_to_hbm [thread:$0]  %s213, 32, %s4, [#allocation6]
    $region21: #{clip_forward.69} parent=1 // pred_fallthru
      _
    // Predicated region
    $region22: #{clip_forward.69} parent=1 // pred_check
      _
    $region23: #{clip_forward.69} parent=1 // pred_check_branch
      %217 = sbr.rel (0) target = $region25
    $region24: #{clip_forward.69} parent=1 // pred_region
      %218 = dma.done [#allocation4], 32
    $region25: #{clip_forward.69} parent=1 // pred_fallthru
      _
    // Predicated region
    $region26: #{clip_forward.69} parent=1 // pred_check
      _
    $region27: #{clip_forward.69} parent=1 // pred_check_branch
      %220 = sbr.rel (0) target = $region29
    $region28: #{clip_forward.69} parent=1 // pred_region
      %221 = dma.done [#allocation6], 32
    $region29: #{clip_forward.69} parent=1 // pred_fallthru
      _
    %222 = vsyncpa [#allocation4], 1
    %223 = vsyncpa [#allocation6], 1

</llo_original>
